<compile_context>
chip_gen: v7x
topology: tpu7x:2x2x1
jax: 0.10.0
libtpu: 0.0.40
codegen_flags: <defaults>
</compile_context>

<pallas_src>
import functools

import numpy as np
import jax
import jax.numpy as jnp
from jax.experimental import pallas as pl
from jax.experimental.pallas import tpu as pltpu


# ------------------------------ Pallas kernel --------------------------------
def _sandglass_kernel(xp_ref, w_dw1_ref, b_dw1_ref, w_pw1_ref, b_pw1_ref,
                      w_pw2_ref, b_pw2_ref, w_dw2_ref, b_dw2_ref,
                      o_ref, mid_ref, *, H, W, apply_residual):
    """Whole sand-glass block for one image, fully fused in VMEM.

    BN is inference-mode; its scale is pre-folded into the conv weights, so
    only the per-channel bias is added here.
    """
    # Zero the scratch halo once (the interior is overwritten every step).
    @pl.when(pl.program_id(0) == 0)
    def _():
        mid_ref[...] = jnp.zeros_like(mid_ref)

    # ---- depthwise 3x3, stride 1, pad 1 (VPU) + BN + ReLU6 -------------------
    acc = xp_ref[0, 0:H, 0:W, :] * w_dw1_ref[0, :]
    for k in range(1, 9):
        dy, dx = divmod(k, 3)
        acc = acc + xp_ref[0, dy:dy + H, dx:dx + W, :] * w_dw1_ref[k, :]
    y1 = jnp.clip(acc + b_dw1_ref[0, :], 0.0, 6.0)

    # ---- bottleneck: two 1x1 convs as MXU matmuls (bf16 in, f32 acc) ---------
    y1_2d = y1.reshape(H * W, y1.shape[-1]).astype(jnp.bfloat16)
    h = jnp.dot(y1_2d, w_pw1_ref[...], preferred_element_type=jnp.float32)
    h = h + b_pw1_ref[...]                       # no activation after this BN
    z = jnp.dot(h.astype(jnp.bfloat16), w_pw2_ref[...],
                preferred_element_type=jnp.float32)
    z = jnp.clip(z + b_pw2_ref[...], 0.0, 6.0)

    # ---- stage into the zero-haloed VMEM scratch for the 2nd depthwise ------
    mid_ref[1:H + 1, 1:W + 1, :] = z.reshape(H, W, z.shape[-1])

    # ---- depthwise 3x3 (stride applied by the wrapper) + BN ------------------
    # TODO(synk): for stride > 1 the subsampling happens in the wrapper slice;
    # an in-kernel strided gather would avoid computing the skipped positions.
    out = mid_ref[0:H, 0:W, :] * w_dw2_ref[0, :]
    for k in range(1, 9):
        dy, dx = divmod(k, 3)
        out = out + mid_ref[dy:dy + H, dx:dx + W, :] * w_dw2_ref[k, :]
    out = out + b_dw2_ref[0, :]

    if apply_residual:                           # stride == 1 and C_in == C_out
        out = out + xp_ref[0, 1:H + 1, 1:W + 1, :]

    o_ref[0] = out.astype(o_ref.dtype)


# -------------------------------- JAX glue ------------------------------------
def _round_up(x, m=128):
    return ((x + m - 1) // m) * m


def _fold_bn(gamma, beta, mean, var, eps=1e-5):
    scale = (gamma / jnp.sqrt(var + eps)).astype(jnp.float32)
    bias = (beta - mean * scale).astype(jnp.float32)
    return scale, bias


def sandglass_forward(x_nchw, params, stride, eps=1e-5):
    """Forward pass of SandGlassLayer.  x is NCHW (PyTorch layout)."""
    x = jnp.transpose(x_nchw, (0, 2, 3, 1)).astype(jnp.float32)   # -> NHWC
    N, H, W, Cin = x.shape
    Chid = params["w_pw1"].shape[0]
    Cout = params["w_dw2"].shape[0]
    identity = (stride == 1 and Cin == Cout)

    # lane-dense padded channel counts
    Cpi, Cph, Cpo = _round_up(Cin), _round_up(Chid), _round_up(Cout)

    # fold inference-mode BN: scale into the weights, keep only the bias
    s1, b1 = _fold_bn(params["g1"], params["b1"], params["m1"], params["v1"], eps)
    s2, b2 = _fold_bn(params["g2"], params["b2"], params["m2"], params["v2"], eps)
    s3, b3 = _fold_bn(params["g3"], params["b3"], params["m3"], params["v3"], eps)
    s4, b4 = _fold_bn(params["g4"], params["b4"], params["m4"], params["v4"], eps)

    w_dw1 = params["w_dw1"][:, 0].reshape(Cin, 9).T * s1[None, :]      # (9, Cin)
    w_pw1 = params["w_pw1"][:, :, 0, 0].T * s2[None, :]                # (Cin, Chid)
    w_pw2 = params["w_pw2"][:, :, 0, 0].T * s3[None, :]                # (Chid, Cout)
    w_dw2 = params["w_dw2"][:, 0].reshape(Cout, 9).T * s4[None, :]     # (9, Cout)

    # pad channel dims to multiples of 128 with zeros (zero weight/bias in the
    # padded lanes keeps them exactly 0 end-to-end; sliced off below)
    w_dw1 = jnp.pad(w_dw1, ((0, 0), (0, Cpi - Cin))).astype(jnp.float32)
    w_pw1 = jnp.pad(w_pw1, ((0, Cpi - Cin), (0, Cph - Chid))).astype(jnp.bfloat16)
    w_pw2 = jnp.pad(w_pw2, ((0, Cph - Chid), (0, Cpo - Cout))).astype(jnp.bfloat16)
    w_dw2 = jnp.pad(w_dw2, ((0, 0), (0, Cpo - Cout))).astype(jnp.float32)
    b_dw1 = jnp.pad(b1, (0, Cpi - Cin)).reshape(1, Cpi)
    b_pw1 = jnp.pad(b2, (0, Cph - Chid)).reshape(1, Cph)
    b_pw2 = jnp.pad(b3, (0, Cpo - Cout)).reshape(1, Cpo)
    b_dw2 = jnp.pad(b4, (0, Cpo - Cout)).reshape(1, Cpo)

    # spatial pad=1 halo for the first depthwise conv + channel pad for lanes
    xp = jnp.pad(x, ((0, 0), (1, 1), (1, 1), (0, Cpi - Cin)))   # (N, H+2, W+2, Cpi)

    kernel = functools.partial(_sandglass_kernel, H=H, W=W,
                               apply_residual=identity)

    out_full = pl.pallas_call(
        kernel,
        out_shape=jax.ShapeDtypeStruct((N, H, W, Cpo), jnp.float32),
        grid=(N,),
        in_specs=[
            pl.BlockSpec((1, H + 2, W + 2, Cpi), lambda n: (n, 0, 0, 0)),
            pl.BlockSpec((9, Cpi), lambda n: (0, 0)),
            pl.BlockSpec((1, Cpi), lambda n: (0, 0)),
            pl.BlockSpec((Cpi, Cph), lambda n: (0, 0)),
            pl.BlockSpec((1, Cph), lambda n: (0, 0)),
            pl.BlockSpec((Cph, Cpo), lambda n: (0, 0)),
            pl.BlockSpec((1, Cpo), lambda n: (0, 0)),
            pl.BlockSpec((9, Cpo), lambda n: (0, 0)),
            pl.BlockSpec((1, Cpo), lambda n: (0, 0)),
        ],
        out_specs=pl.BlockSpec((1, H, W, Cpo), lambda n: (n, 0, 0, 0)),
        scratch_shapes=[pltpu.VMEM((H + 2, W + 2, Cpo), jnp.float32)],
        compiler_params=pltpu.CompilerParams(
            dimension_semantics=("parallel",),
            vmem_limit_bytes=64 * 1024 * 1024),
    )(xp, w_dw1, b_dw1, w_pw1, b_pw1, w_pw2, b_pw2, w_dw2, b_dw2)

    # apply the final depthwise conv's stride and drop channel padding
    out = out_full[:, ::stride, ::stride, :Cout]
    return jnp.transpose(out, (0, 3, 1, 2))      # back to NCHW


# ------------------------- pure-JAX reference (check) -------------------------
def _reference(x_nchw, params, stride, eps=1e-5):
    x = jnp.transpose(x_nchw, (0, 2, 3, 1)).astype(jnp.float32)
    Cin = x.shape[-1]
    Cout = params["w_dw2"].shape[0]

    def conv(z, w_oihw, s, pad, groups=1):
        wt = jnp.transpose(w_oihw, (2, 3, 1, 0))   # OIHW -> HWIO
        return jax.lax.conv_general_dilated(
            z, wt, (s, s), [(pad, pad), (pad, pad)],
            dimension_numbers=("NHWC", "HWIO", "NHWC"),
            feature_group_count=groups)

    def bn(z, g, b, m, v):
        return (z - m) / jnp.sqrt(v + eps) * g + b

    y = conv(x, params["w_dw1"], 1, 1, groups=Cin)
    y = jnp.clip(bn(y, params["g1"], params["b1"], params["m1"], params["v1"]), 0.0, 6.0)
    y = bn(conv(y, params["w_pw1"], 1, 0),
           params["g2"], params["b2"], params["m2"], params["v2"])
    y = conv(y, params["w_pw2"], 1, 0)
    y = jnp.clip(bn(y, params["g3"], params["b3"], params["m3"], params["v3"]), 0.0, 6.0)
    y = conv(y, params["w_dw2"], stride, 1, groups=Cout)
    y = bn(y, params["g4"], params["b4"], params["m4"], params["v4"])
    if stride == 1 and Cin == Cout:
        y = y + x
    return jnp.transpose(y, (0, 3, 1, 2))


# ----------------------------------- main --------------------------------------
def _bn_init(k, C):
    k1, k2, k3, k4 = jax.random.split(k, 4)
    g = 1.0 + 0.1 * jax.random.normal(k1, (C,), jnp.float32)
    b = 0.1 * jax.random.normal(k2, (C,), jnp.float32)
    m = 0.05 * jax.random.normal(k3, (C,), jnp.float32)
    v = 1.0 + 0.1 * jnp.abs(jax.random.normal(k4, (C,), jnp.float32))
    return g, b, m, v


def make_params(key, inputs, outputs, reduction_ratio):
    hidden = round(inputs // reduction_ratio)
    ks = jax.random.split(key, 8)
    p = {}
    p["w_dw1"] = 0.15 * jax.random.normal(ks[0], (inputs, 1, 3, 3), jnp.float32)
    p["g1"], p["b1"], p["m1"], p["v1"] = _bn_init(ks[1], inputs)
    p["w_pw1"] = 0.15 * jax.random.normal(ks[2], (hidden, inputs, 1, 1), jnp.float32)
    p["g2"], p["b2"], p["m2"], p["v2"] = _bn_init(ks[3], hidden)
    p["w_pw2"] = 0.15 * jax.random.normal(ks[4], (outputs, hidden, 1, 1), jnp.float32)
    p["g3"], p["b3"], p["m3"], p["v3"] = _bn_init(ks[5], outputs)
    p["w_dw2"] = 0.15 * jax.random.normal(ks[6], (outputs, 1, 3, 3), jnp.float32)
    p["g4"], p["b4"], p["m4"], p["v4"] = _bn_init(ks[7], outputs)
    return p


if __name__ == "__main__":
    key = jax.random.PRNGKey(0)
    kx1, kx2, kp1, kp2 = jax.random.split(key, 4)
    N, H, W = 2, 16, 16

    # Config A: identity branch (stride=1, inputs == outputs) -> residual add
    in_a = out_a = 8
    params_a = make_params(kp1, in_a, out_a, reduction_ratio=2)
    xa = jax.random.normal(kx1, (N, in_a, H, W), jnp.float32)     # NCHW like PyTorch
    ya = jax.block_until_ready(sandglass_forward(xa, params_a, stride=1))
    ra = jax.block_until_ready(_reference(xa, params_a, 1))
    assert ya.shape == (N, out_a, H, W), ya.shape
    assert np.allclose(np.asarray(ya), np.asarray(ra), rtol=2e-2, atol=2e-2), \
        "identity-path mismatch vs JAX reference"

    # Config B: downsampling branch (stride=2, inputs != outputs)
    in_b, out_b = 4, 8
    params_b = make_params(kp2, in_b, out_b, reduction_ratio=2)
    xb = jax.random.normal(kx2, (N, in_b, H, W), jnp.float32)
    yb = jax.block_until_ready(sandglass_forward(xb, params_b, stride=2))
    rb = jax.block_until_ready(_reference(xb, params_b, 2))
    assert yb.shape == (N, out_b, H // 2, W // 2), yb.shape
    assert np.allclose(np.asarray(yb), np.asarray(rb), rtol=2e-2, atol=2e-2), \
        "downsample-path mismatch vs JAX reference"

    print("KERNEL_OK")
</pallas_src>

<mosaic_0001>
module attributes {stable_mosaic.version = 11 : i64} {
  func.func @_sandglass_kernel(%arg0: i32, %arg1: memref<1x18x18x128xf32, #tpu.memory_space<vmem>>, %arg2: memref<9x128xf32, #tpu.memory_space<vmem>>, %arg3: memref<1x128xf32, #tpu.memory_space<vmem>>, %arg4: memref<128x128xbf16, #tpu.memory_space<vmem>>, %arg5: memref<1x128xf32, #tpu.memory_space<vmem>>, %arg6: memref<128x128xbf16, #tpu.memory_space<vmem>>, %arg7: memref<1x128xf32, #tpu.memory_space<vmem>>, %arg8: memref<9x128xf32, #tpu.memory_space<vmem>>, %arg9: memref<1x128xf32, #tpu.memory_space<vmem>>, %arg10: memref<1x16x16x128xf32, #tpu.memory_space<vmem>>, %arg11: memref<18x18x128xf32, #tpu.memory_space<vmem>>) attributes {dimension_semantics = [#tpu.dimension_semantics<parallel>], iteration_bounds = array<i64: 2>, scalar_prefetch = 0 : i64, scratch_operands = 1 : i64, tpu.core_type = #tpu.core_type<tc>, window_params = [{transform_indices = @transform_0, window_bounds = array<i64: 1, 18, 18, 128>}, {pipeline_mode = #tpu.pipeline_mode<synchronous>, transform_indices = @transform_1, window_bounds = array<i64: 9, 128>}, {pipeline_mode = #tpu.pipeline_mode<synchronous>, transform_indices = @transform_2, window_bounds = array<i64: 1, 128>}, {pipeline_mode = #tpu.pipeline_mode<synchronous>, transform_indices = @transform_3, window_bounds = array<i64: 128, 128>}, {pipeline_mode = #tpu.pipeline_mode<synchronous>, transform_indices = @transform_4, window_bounds = array<i64: 1, 128>}, {pipeline_mode = #tpu.pipeline_mode<synchronous>, transform_indices = @transform_5, window_bounds = array<i64: 128, 128>}, {pipeline_mode = #tpu.pipeline_mode<synchronous>, transform_indices = @transform_6, window_bounds = array<i64: 1, 128>}, {pipeline_mode = #tpu.pipeline_mode<synchronous>, transform_indices = @transform_7, window_bounds = array<i64: 9, 128>}, {pipeline_mode = #tpu.pipeline_mode<synchronous>, transform_indices = @transform_8, window_bounds = array<i64: 1, 128>}, {transform_indices = @transform_9, window_bounds = array<i64: 1, 16, 16, 128>}]} {
    %c0_i32 = arith.constant 0 : i32
    %0 = arith.cmpi eq, %arg0, %c0_i32 : i32
    %1 = arith.extui %0 : i1 to i32
    %c0_i32_0 = arith.constant 0 : i32
    %2 = arith.cmpi ne, %1, %c0_i32_0 : i32
    scf.if %2 {
      %cst_119 = arith.constant 0.000000e+00 : f32
      %175 = vector.broadcast %cst_119 : f32 to vector<18x18x128xf32>
      %c0_120 = arith.constant 0 : index
      %c0_121 = arith.constant 0 : index
      %c0_122 = arith.constant 0 : index
      %176 = vector.load %arg11[%c0_120, %c0_121, %c0_122] : memref<18x18x128xf32, #tpu.memory_space<vmem>>, vector<18x18x128xf32>
      tpu.vector_store %arg11[%c0_120, %c0_121, %c0_122], %175 {strides = array<i32>} : memref<18x18x128xf32, #tpu.memory_space<vmem>>, vector<18x18x128xf32>,
    } else {
    }
    %c0 = arith.constant 0 : index
    %c0_1 = arith.constant 0 : index
    %c0_2 = arith.constant 0 : index
    %c0_3 = arith.constant 0 : index
    %3 = vector.load %arg1[%c0, %c0_1, %c0_2, %c0_3] : memref<1x18x18x128xf32, #tpu.memory_space<vmem>>, vector<1x16x16x128xf32>
    %4 = vector.shape_cast %3 : vector<1x16x16x128xf32> to vector<16x16x128xf32>
    %c0_4 = arith.constant 0 : index
    %c0_5 = arith.constant 0 : index
    %5 = vector.load %arg2[%c0_4, %c0_5] : memref<9x128xf32, #tpu.memory_space<vmem>>, vector<1x128xf32>
    %6 = vector.shape_cast %5 : vector<1x128xf32> to vector<128xf32>
    %7 = vector.shape_cast %6 : vector<128xf32> to vector<1x1x128xf32>
    %8 = vector.broadcast %7 : vector<1x1x128xf32> to vector<16x16x128xf32>
    %9 = arith.mulf %4, %8 : vector<16x16x128xf32>
    %c0_6 = arith.constant 0 : index
    %c0_7 = arith.constant 0 : index
    %c1 = arith.constant 1 : index
    %c0_8 = arith.constant 0 : index
    %10 = vector.load %arg1[%c0_6, %c0_7, %c1, %c0_8] : memref<1x18x18x128xf32, #tpu.memory_space<vmem>>, vector<1x16x16x128xf32>
    %11 = vector.shape_cast %10 : vector<1x16x16x128xf32> to vector<16x16x128xf32>
    %c1_9 = arith.constant 1 : index
    %c0_10 = arith.constant 0 : index
    %12 = vector.load %arg2[%c1_9, %c0_10] : memref<9x128xf32, #tpu.memory_space<vmem>>, vector<1x128xf32>
    %13 = vector.shape_cast %12 : vector<1x128xf32> to vector<128xf32>
    %14 = vector.shape_cast %13 : vector<128xf32> to vector<1x1x128xf32>
    %15 = vector.broadcast %14 : vector<1x1x128xf32> to vector<16x16x128xf32>
    %16 = arith.mulf %11, %15 : vector<16x16x128xf32>
    %17 = arith.addf %9, %16 : vector<16x16x128xf32>
    %c0_11 = arith.constant 0 : index
    %c0_12 = arith.constant 0 : index
    %c2 = arith.constant 2 : index
    %c0_13 = arith.constant 0 : index
    %18 = vector.load %arg1[%c0_11, %c0_12, %c2, %c0_13] : memref<1x18x18x128xf32, #tpu.memory_space<vmem>>, vector<1x16x16x128xf32>
    %19 = vector.shape_cast %18 : vector<1x16x16x128xf32> to vector<16x16x128xf32>
    %c2_14 = arith.constant 2 : index
    %c0_15 = arith.constant 0 : index
    %20 = vector.load %arg2[%c2_14, %c0_15] : memref<9x128xf32, #tpu.memory_space<vmem>>, vector<1x128xf32>
    %21 = vector.shape_cast %20 : vector<1x128xf32> to vector<128xf32>
    %22 = vector.shape_cast %21 : vector<128xf32> to vector<1x1x128xf32>
    %23 = vector.broadcast %22 : vector<1x1x128xf32> to vector<16x16x128xf32>
    %24 = arith.mulf %19, %23 : vector<16x16x128xf32>
    %25 = arith.addf %17, %24 : vector<16x16x128xf32>
    %c0_16 = arith.constant 0 : index
    %c1_17 = arith.constant 1 : index
    %c0_18 = arith.constant 0 : index
    %c0_19 = arith.constant 0 : index
    %26 = vector.load %arg1[%c0_16, %c1_17, %c0_18, %c0_19] : memref<1x18x18x128xf32, #tpu.memory_space<vmem>>, vector<1x16x16x128xf32>
    %27 = vector.shape_cast %26 : vector<1x16x16x128xf32> to vector<16x16x128xf32>
    %c3 = arith.constant 3 : index
    %c0_20 = arith.constant 0 : index
    %28 = vector.load %arg2[%c3, %c0_20] : memref<9x128xf32, #tpu.memory_space<vmem>>, vector<1x128xf32>
    %29 = vector.shape_cast %28 : vector<1x128xf32> to vector<128xf32>
    %30 = vector.shape_cast %29 : vector<128xf32> to vector<1x1x128xf32>
    %31 = vector.broadcast %30 : vector<1x1x128xf32> to vector<16x16x128xf32>
    %32 = arith.mulf %27, %31 : vector<16x16x128xf32>
    %33 = arith.addf %25, %32 : vector<16x16x128xf32>
    %c0_21 = arith.constant 0 : index
    %c1_22 = arith.constant 1 : index
    %c1_23 = arith.constant 1 : index
    %c0_24 = arith.constant 0 : index
    %34 = vector.load %arg1[%c0_21, %c1_22, %c1_23, %c0_24] : memref<1x18x18x128xf32, #tpu.memory_space<vmem>>, vector<1x16x16x128xf32>
    %35 = vector.shape_cast %34 : vector<1x16x16x128xf32> to vector<16x16x128xf32>
    %c4 = arith.constant 4 : index
    %c0_25 = arith.constant 0 : index
    %36 = vector.load %arg2[%c4, %c0_25] : memref<9x128xf32, #tpu.memory_space<vmem>>, vector<1x128xf32>
    %37 = vector.shape_cast %36 : vector<1x128xf32> to vector<128xf32>
    %38 = vector.shape_cast %37 : vector<128xf32> to vector<1x1x128xf32>
    %39 = vector.broadcast %38 : vector<1x1x128xf32> to vector<16x16x128xf32>
    %40 = arith.mulf %35, %39 : vector<16x16x128xf32>
    %41 = arith.addf %33, %40 : vector<16x16x128xf32>
    %c0_26 = arith.constant 0 : index
    %c1_27 = arith.constant 1 : index
    %c2_28 = arith.constant 2 : index
    %c0_29 = arith.constant 0 : index
    %42 = vector.load %arg1[%c0_26, %c1_27, %c2_28, %c0_29] : memref<1x18x18x128xf32, #tpu.memory_space<vmem>>, vector<1x16x16x128xf32>
    %43 = vector.shape_cast %42 : vector<1x16x16x128xf32> to vector<16x16x128xf32>
    %c5 = arith.constant 5 : index
    %c0_30 = arith.constant 0 : index
    %44 = vector.load %arg2[%c5, %c0_30] : memref<9x128xf32, #tpu.memory_space<vmem>>, vector<1x128xf32>
    %45 = vector.shape_cast %44 : vector<1x128xf32> to vector<128xf32>
    %46 = vector.shape_cast %45 : vector<128xf32> to vector<1x1x128xf32>
    %47 = vector.broadcast %46 : vector<1x1x128xf32> to vector<16x16x128xf32>
    %48 = arith.mulf %43, %47 : vector<16x16x128xf32>
    %49 = arith.addf %41, %48 : vector<16x16x128xf32>
    %c0_31 = arith.constant 0 : index
    %c2_32 = arith.constant 2 : index
    %c0_33 = arith.constant 0 : index
    %c0_34 = arith.constant 0 : index
    %50 = vector.load %arg1[%c0_31, %c2_32, %c0_33, %c0_34] : memref<1x18x18x128xf32, #tpu.memory_space<vmem>>, vector<1x16x16x128xf32>
    %51 = vector.shape_cast %50 : vector<1x16x16x128xf32> to vector<16x16x128xf32>
    %c6 = arith.constant 6 : index
    %c0_35 = arith.constant 0 : index
    %52 = vector.load %arg2[%c6, %c0_35] : memref<9x128xf32, #tpu.memory_space<vmem>>, vector<1x128xf32>
    %53 = vector.shape_cast %52 : vector<1x128xf32> to vector<128xf32>
    %54 = vector.shape_cast %53 : vector<128xf32> to vector<1x1x128xf32>
    %55 = vector.broadcast %54 : vector<1x1x128xf32> to vector<16x16x128xf32>
    %56 = arith.mulf %51, %55 : vector<16x16x128xf32>
    %57 = arith.addf %49, %56 : vector<16x16x128xf32>
    %c0_36 = arith.constant 0 : index
    %c2_37 = arith.constant 2 : index
    %c1_38 = arith.constant 1 : index
    %c0_39 = arith.constant 0 : index
    %58 = vector.load %arg1[%c0_36, %c2_37, %c1_38, %c0_39] : memref<1x18x18x128xf32, #tpu.memory_space<vmem>>, vector<1x16x16x128xf32>
    %59 = vector.shape_cast %58 : vector<1x16x16x128xf32> to vector<16x16x128xf32>
    %c7 = arith.constant 7 : index
    %c0_40 = arith.constant 0 : index
    %60 = vector.load %arg2[%c7, %c0_40] : memref<9x128xf32, #tpu.memory_space<vmem>>, vector<1x128xf32>
    %61 = vector.shape_cast %60 : vector<1x128xf32> to vector<128xf32>
    %62 = vector.shape_cast %61 : vector<128xf32> to vector<1x1x128xf32>
    %63 = vector.broadcast %62 : vector<1x1x128xf32> to vector<16x16x128xf32>
    %64 = arith.mulf %59, %63 : vector<16x16x128xf32>
    %65 = arith.addf %57, %64 : vector<16x16x128xf32>
    %c0_41 = arith.constant 0 : index
    %c2_42 = arith.constant 2 : index
    %c2_43 = arith.constant 2 : index
    %c0_44 = arith.constant 0 : index
    %66 = vector.load %arg1[%c0_41, %c2_42, %c2_43, %c0_44] : memref<1x18x18x128xf32, #tpu.memory_space<vmem>>, vector<1x16x16x128xf32>
    %67 = vector.shape_cast %66 : vector<1x16x16x128xf32> to vector<16x16x128xf32>
    %c8 = arith.constant 8 : index
    %c0_45 = arith.constant 0 : index
    %68 = vector.load %arg2[%c8, %c0_45] : memref<9x128xf32, #tpu.memory_space<vmem>>, vector<1x128xf32>
    %69 = vector.shape_cast %68 : vector<1x128xf32> to vector<128xf32>
    %70 = vector.shape_cast %69 : vector<128xf32> to vector<1x1x128xf32>
    %71 = vector.broadcast %70 : vector<1x1x128xf32> to vector<16x16x128xf32>
    %72 = arith.mulf %67, %71 : vector<16x16x128xf32>
    %73 = arith.addf %65, %72 : vector<16x16x128xf32>
    %c0_46 = arith.constant 0 : index
    %c0_47 = arith.constant 0 : index
    %74 = vector.load %arg3[%c0_46, %c0_47] : memref<1x128xf32, #tpu.memory_space<vmem>>, vector<1x128xf32>
    %75 = vector.shape_cast %74 : vector<1x128xf32> to vector<128xf32>
    %76 = vector.shape_cast %75 : vector<128xf32> to vector<1x1x128xf32>
    %77 = vector.broadcast %76 : vector<1x1x128xf32> to vector<16x16x128xf32>
    %78 = arith.addf %73, %77 : vector<16x16x128xf32>
    %cst = arith.constant 0.000000e+00 : f32
    %cst_48 = arith.constant 6.000000e+00 : f32
    %79 = vector.broadcast %cst : f32 to vector<16x16x128xf32>
    %80 = arith.maximumf %79, %78 : vector<16x16x128xf32>
    %81 = vector.broadcast %cst_48 : f32 to vector<16x16x128xf32>
    %82 = arith.minimumf %81, %80 : vector<16x16x128xf32>
    %83 = vector.shape_cast %82 : vector<16x16x128xf32> to vector<256x128xf32>
    %84 = arith.truncf %83 : vector<256x128xf32> to vector<256x128xbf16>
    %c0_49 = arith.constant 0 : index
    %c0_50 = arith.constant 0 : index
    %85 = vector.load %arg4[%c0_49, %c0_50] : memref<128x128xbf16, #tpu.memory_space<vmem>>, vector<128x128xbf16>
    %cst_51 = arith.constant dense<0.000000e+00> : vector<256x128xf32>
    %86 = tpu.matmul %84, %85, %cst_51 {dimension_numbers = #tpu.dot_dimension_numbers<[1], [0], [0], [1], [0, 0, 1, 1], [], []>} : vector<256x128xbf16>, vector<128x128xbf16>, vector<256x128xf32> -> vector<256x128xf32>
    %c0_52 = arith.constant 0 : index
    %c0_53 = arith.constant 0 : index
    %87 = vector.load %arg5[%c0_52, %c0_53] : memref<1x128xf32, #tpu.memory_space<vmem>>, vector<1x128xf32>
    %88 = vector.broadcast %87 : vector<1x128xf32> to vector<256x128xf32>
    %89 = arith.addf %86, %88 : vector<256x128xf32>
    %90 = arith.truncf %89 : vector<256x128xf32> to vector<256x128xbf16>
    %c0_54 = arith.constant 0 : index
    %c0_55 = arith.constant 0 : index
    %91 = vector.load %arg6[%c0_54, %c0_55] : memref<128x128xbf16, #tpu.memory_space<vmem>>, vector<128x128xbf16>
    %cst_56 = arith.constant dense<0.000000e+00> : vector<256x128xf32>
    %92 = tpu.matmul %90, %91, %cst_56 {dimension_numbers = #tpu.dot_dimension_numbers<[1], [0], [0], [1], [0, 0, 1, 1], [], []>} : vector<256x128xbf16>, vector<128x128xbf16>, vector<256x128xf32> -> vector<256x128xf32>
    %c0_57 = arith.constant 0 : index
    %c0_58 = arith.constant 0 : index
    %93 = vector.load %arg7[%c0_57, %c0_58] : memref<1x128xf32, #tpu.memory_space<vmem>>, vector<1x128xf32>
    %94 = vector.broadcast %93 : vector<1x128xf32> to vector<256x128xf32>
    %95 = arith.addf %92, %94 : vector<256x128xf32>
    %cst_59 = arith.constant 0.000000e+00 : f32
    %cst_60 = arith.constant 6.000000e+00 : f32
    %96 = vector.broadcast %cst_59 : f32 to vector<256x128xf32>
    %97 = arith.maximumf %96, %95 : vector<256x128xf32>
    %98 = vector.broadcast %cst_60 : f32 to vector<256x128xf32>
    %99 = arith.minimumf %98, %97 : vector<256x128xf32>
    %100 = vector.shape_cast %99 : vector<256x128xf32> to vector<16x16x128xf32>
    %c1_61 = arith.constant 1 : index
    %c1_62 = arith.constant 1 : index
    %c0_63 = arith.constant 0 : index
    %101 = vector.load %arg11[%c1_61, %c1_62, %c0_63] : memref<18x18x128xf32, #tpu.memory_space<vmem>>, vector<16x16x128xf32>
    tpu.vector_store %arg11[%c1_61, %c1_62, %c0_63], %100 {strides = array<i32>} : memref<18x18x128xf32, #tpu.memory_space<vmem>>, vector<16x16x128xf32>,
    %c0_64 = arith.constant 0 : index
    %c0_65 = arith.constant 0 : index
    %c0_66 = arith.constant 0 : index
    %102 = vector.load %arg11[%c0_64, %c0_65, %c0_66] : memref<18x18x128xf32, #tpu.memory_space<vmem>>, vector<16x16x128xf32>
    %c0_67 = arith.constant 0 : index
    %c0_68 = arith.constant 0 : index
    %103 = vector.load %arg8[%c0_67, %c0_68] : memref<9x128xf32, #tpu.memory_space<vmem>>, vector<1x128xf32>
    %104 = vector.shape_cast %103 : vector<1x128xf32> to vector<128xf32>
    %105 = vector.shape_cast %104 : vector<128xf32> to vector<1x1x128xf32>
    %106 = vector.broadcast %105 : vector<1x1x128xf32> to vector<16x16x128xf32>
    %107 = arith.mulf %102, %106 : vector<16x16x128xf32>
    %c0_69 = arith.constant 0 : index
    %c1_70 = arith.constant 1 : index
    %c0_71 = arith.constant 0 : index
    %108 = vector.load %arg11[%c0_69, %c1_70, %c0_71] : memref<18x18x128xf32, #tpu.memory_space<vmem>>, vector<16x16x128xf32>
    %c1_72 = arith.constant 1 : index
    %c0_73 = arith.constant 0 : index
    %109 = vector.load %arg8[%c1_72, %c0_73] : memref<9x128xf32, #tpu.memory_space<vmem>>, vector<1x128xf32>
    %110 = vector.shape_cast %109 : vector<1x128xf32> to vector<128xf32>
    %111 = vector.shape_cast %110 : vector<128xf32> to vector<1x1x128xf32>
    %112 = vector.broadcast %111 : vector<1x1x128xf32> to vector<16x16x128xf32>
    %113 = arith.mulf %108, %112 : vector<16x16x128xf32>
    %114 = arith.addf %107, %113 : vector<16x16x128xf32>
    %c0_74 = arith.constant 0 : index
    %c2_75 = arith.constant 2 : index
    %c0_76 = arith.constant 0 : index
    %115 = vector.load %arg11[%c0_74, %c2_75, %c0_76] : memref<18x18x128xf32, #tpu.memory_space<vmem>>, vector<16x16x128xf32>
    %c2_77 = arith.constant 2 : index
    %c0_78 = arith.constant 0 : index
    %116 = vector.load %arg8[%c2_77, %c0_78] : memref<9x128xf32, #tpu.memory_space<vmem>>, vector<1x128xf32>
    %117 = vector.shape_cast %116 : vector<1x128xf32> to vector<128xf32>
    %118 = vector.shape_cast %117 : vector<128xf32> to vector<1x1x128xf32>
    %119 = vector.broadcast %118 : vector<1x1x128xf32> to vector<16x16x128xf32>
    %120 = arith.mulf %115, %119 : vector<16x16x128xf32>
    %121 = arith.addf %114, %120 : vector<16x16x128xf32>
    %c1_79 = arith.constant 1 : index
    %c0_80 = arith.constant 0 : index
    %c0_81 = arith.constant 0 : index
    %122 = vector.load %arg11[%c1_79, %c0_80, %c0_81] : memref<18x18x128xf32, #tpu.memory_space<vmem>>, vector<16x16x128xf32>
    %c3_82 = arith.constant 3 : index
    %c0_83 = arith.constant 0 : index
    %123 = vector.load %arg8[%c3_82, %c0_83] : memref<9x128xf32, #tpu.memory_space<vmem>>, vector<1x128xf32>
    %124 = vector.shape_cast %123 : vector<1x128xf32> to vector<128xf32>
    %125 = vector.shape_cast %124 : vector<128xf32> to vector<1x1x128xf32>
    %126 = vector.broadcast %125 : vector<1x1x128xf32> to vector<16x16x128xf32>
    %127 = arith.mulf %122, %126 : vector<16x16x128xf32>
    %128 = arith.addf %121, %127 : vector<16x16x128xf32>
    %c1_84 = arith.constant 1 : index
    %c1_85 = arith.constant 1 : index
    %c0_86 = arith.constant 0 : index
    %129 = vector.load %arg11[%c1_84, %c1_85, %c0_86] : memref<18x18x128xf32, #tpu.memory_space<vmem>>, vector<16x16x128xf32>
    %c4_87 = arith.constant 4 : index
    %c0_88 = arith.constant 0 : index
    %130 = vector.load %arg8[%c4_87, %c0_88] : memref<9x128xf32, #tpu.memory_space<vmem>>, vector<1x128xf32>
    %131 = vector.shape_cast %130 : vector<1x128xf32> to vector<128xf32>
    %132 = vector.shape_cast %131 : vector<128xf32> to vector<1x1x128xf32>
    %133 = vector.broadcast %132 : vector<1x1x128xf32> to vector<16x16x128xf32>
    %134 = arith.mulf %129, %133 : vector<16x16x128xf32>
    %135 = arith.addf %128, %134 : vector<16x16x128xf32>
    %c1_89 = arith.constant 1 : index
    %c2_90 = arith.constant 2 : index
    %c0_91 = arith.constant 0 : index
    %136 = vector.load %arg11[%c1_89, %c2_90, %c0_91] : memref<18x18x128xf32, #tpu.memory_space<vmem>>, vector<16x16x128xf32>
    %c5_92 = arith.constant 5 : index
    %c0_93 = arith.constant 0 : index
    %137 = vector.load %arg8[%c5_92, %c0_93] : memref<9x128xf32, #tpu.memory_space<vmem>>, vector<1x128xf32>
    %138 = vector.shape_cast %137 : vector<1x128xf32> to vector<128xf32>
    %139 = vector.shape_cast %138 : vector<128xf32> to vector<1x1x128xf32>
    %140 = vector.broadcast %139 : vector<1x1x128xf32> to vector<16x16x128xf32>
    %141 = arith.mulf %136, %140 : vector<16x16x128xf32>
    %142 = arith.addf %135, %141 : vector<16x16x128xf32>
    %c2_94 = arith.constant 2 : index
    %c0_95 = arith.constant 0 : index
    %c0_96 = arith.constant 0 : index
    %143 = vector.load %arg11[%c2_94, %c0_95, %c0_96] : memref<18x18x128xf32, #tpu.memory_space<vmem>>, vector<16x16x128xf32>
    %c6_97 = arith.constant 6 : index
    %c0_98 = arith.constant 0 : index
    %144 = vector.load %arg8[%c6_97, %c0_98] : memref<9x128xf32, #tpu.memory_space<vmem>>, vector<1x128xf32>
    %145 = vector.shape_cast %144 : vector<1x128xf32> to vector<128xf32>
    %146 = vector.shape_cast %145 : vector<128xf32> to vector<1x1x128xf32>
    %147 = vector.broadcast %146 : vector<1x1x128xf32> to vector<16x16x128xf32>
    %148 = arith.mulf %143, %147 : vector<16x16x128xf32>
    %149 = arith.addf %142, %148 : vector<16x16x128xf32>
    %c2_99 = arith.constant 2 : index
    %c1_100 = arith.constant 1 : index
    %c0_101 = arith.constant 0 : index
    %150 = vector.load %arg11[%c2_99, %c1_100, %c0_101] : memref<18x18x128xf32, #tpu.memory_space<vmem>>, vector<16x16x128xf32>
    %c7_102 = arith.constant 7 : index
    %c0_103 = arith.constant 0 : index
    %151 = vector.load %arg8[%c7_102, %c0_103] : memref<9x128xf32, #tpu.memory_space<vmem>>, vector<1x128xf32>
    %152 = vector.shape_cast %151 : vector<1x128xf32> to vector<128xf32>
    %153 = vector.shape_cast %152 : vector<128xf32> to vector<1x1x128xf32>
    %154 = vector.broadcast %153 : vector<1x1x128xf32> to vector<16x16x128xf32>
    %155 = arith.mulf %150, %154 : vector<16x16x128xf32>
    %156 = arith.addf %149, %155 : vector<16x16x128xf32>
    %c2_104 = arith.constant 2 : index
    %c2_105 = arith.constant 2 : index
    %c0_106 = arith.constant 0 : index
    %157 = vector.load %arg11[%c2_104, %c2_105, %c0_106] : memref<18x18x128xf32, #tpu.memory_space<vmem>>, vector<16x16x128xf32>
    %c8_107 = arith.constant 8 : index
    %c0_108 = arith.constant 0 : index
    %158 = vector.load %arg8[%c8_107, %c0_108] : memref<9x128xf32, #tpu.memory_space<vmem>>, vector<1x128xf32>
    %159 = vector.shape_cast %158 : vector<1x128xf32> to vector<128xf32>
    %160 = vector.shape_cast %159 : vector<128xf32> to vector<1x1x128xf32>
    %161 = vector.broadcast %160 : vector<1x1x128xf32> to vector<16x16x128xf32>
    %162 = arith.mulf %157, %161 : vector<16x16x128xf32>
    %163 = arith.addf %156, %162 : vector<16x16x128xf32>
    %c0_109 = arith.constant 0 : index
    %c0_110 = arith.constant 0 : index
    %164 = vector.load %arg9[%c0_109, %c0_110] : memref<1x128xf32, #tpu.memory_space<vmem>>, vector<1x128xf32>
    %165 = vector.shape_cast %164 : vector<1x128xf32> to vector<128xf32>
    %166 = vector.shape_cast %165 : vector<128xf32> to vector<1x1x128xf32>
    %167 = vector.broadcast %166 : vector<1x1x128xf32> to vector<16x16x128xf32>
    %168 = arith.addf %163, %167 : vector<16x16x128xf32>
    %c0_111 = arith.constant 0 : index
    %c1_112 = arith.constant 1 : index
    %c1_113 = arith.constant 1 : index
    %c0_114 = arith.constant 0 : index
    %169 = vector.load %arg1[%c0_111, %c1_112, %c1_113, %c0_114] : memref<1x18x18x128xf32, #tpu.memory_space<vmem>>, vector<1x16x16x128xf32>
    %170 = vector.shape_cast %169 : vector<1x16x16x128xf32> to vector<16x16x128xf32>
    %171 = arith.addf %168, %170 : vector<16x16x128xf32>
    %c0_115 = arith.constant 0 : index
    %c0_116 = arith.constant 0 : index
    %c0_117 = arith.constant 0 : index
    %c0_118 = arith.constant 0 : index
    %172 = vector.load %arg10[%c0_115, %c0_116, %c0_117, %c0_118] : memref<1x16x16x128xf32, #tpu.memory_space<vmem>>, vector<1x16x16x128xf32>
    %173 = vector.shape_cast %172 : vector<1x16x16x128xf32> to vector<16x16x128xf32>
    %174 = vector.shape_cast %171 : vector<16x16x128xf32> to vector<1x16x16x128xf32>
    tpu.vector_store %arg10[%c0_115, %c0_116, %c0_117, %c0_118], %174 {strides = array<i32>} : memref<1x16x16x128xf32, #tpu.memory_space<vmem>>, vector<1x16x16x128xf32>,
    return
  }
  func.func @transform_0(%arg0: i32) -> (i32, i32, i32, i32) {
    %c0_i32 = arith.constant 0 : i32
    %c0_i32_0 = arith.constant 0 : i32
    %c0_i32_1 = arith.constant 0 : i32
    %c0_i32_2 = arith.constant 0 : i32
    return %arg0, %c0_i32, %c0_i32_0, %c0_i32_1 : i32, i32, i32, i32
  }
  func.func @transform_1(%arg0: i32) -> (i32, i32) {
    %c0_i32 = arith.constant 0 : i32
    %c0_i32_0 = arith.constant 0 : i32
    %c0_i32_1 = arith.constant 0 : i32
    return %c0_i32, %c0_i32_0 : i32, i32
  }
  func.func @transform_2(%arg0: i32) -> (i32, i32) {
    %c0_i32 = arith.constant 0 : i32
    %c0_i32_0 = arith.constant 0 : i32
    %c0_i32_1 = arith.constant 0 : i32
    return %c0_i32, %c0_i32_0 : i32, i32
  }
  func.func @transform_3(%arg0: i32) -> (i32, i32) {
    %c0_i32 = arith.constant 0 : i32
    %c0_i32_0 = arith.constant 0 : i32
    %c0_i32_1 = arith.constant 0 : i32
    return %c0_i32, %c0_i32_0 : i32, i32
  }
  func.func @transform_4(%arg0: i32) -> (i32, i32) {
    %c0_i32 = arith.constant 0 : i32
    %c0_i32_0 = arith.constant 0 : i32
    %c0_i32_1 = arith.constant 0 : i32
    return %c0_i32, %c0_i32_0 : i32, i32
  }
  func.func @transform_5(%arg0: i32) -> (i32, i32) {
    %c0_i32 = arith.constant 0 : i32
    %c0_i32_0 = arith.constant 0 : i32
    %c0_i32_1 = arith.constant 0 : i32
    return %c0_i32, %c0_i32_0 : i32, i32
  }
  func.func @transform_6(%arg0: i32) -> (i32, i32) {
    %c0_i32 = arith.constant 0 : i32
    %c0_i32_0 = arith.constant 0 : i32
    %c0_i32_1 = arith.constant 0 : i32
    return %c0_i32, %c0_i32_0 : i32, i32
  }
  func.func @transform_7(%arg0: i32) -> (i32, i32) {
    %c0_i32 = arith.constant 0 : i32
    %c0_i32_0 = arith.constant 0 : i32
    %c0_i32_1 = arith.constant 0 : i32
    return %c0_i32, %c0_i32_0 : i32, i32
  }
  func.func @transform_8(%arg0: i32) -> (i32, i32) {
    %c0_i32 = arith.constant 0 : i32
    %c0_i32_0 = arith.constant 0 : i32
    %c0_i32_1 = arith.constant 0 : i32
    return %c0_i32, %c0_i32_0 : i32, i32
  }
  func.func @transform_9(%arg0: i32) -> (i32, i32, i32, i32) {
    %c0_i32 = arith.constant 0 : i32
    %c0_i32_0 = arith.constant 0 : i32
    %c0_i32_1 = arith.constant 0 : i32
    %c0_i32_2 = arith.constant 0 : i32
    return %arg0, %c0_i32, %c0_i32_0, %c0_i32_1 : i32, i32, i32, i32
  }
}

</mosaic_0001>

<llo_original>
// kernel: tpu_custom_call.1
$region0: #{tpu_custom_call.1}
  #allocation0 [shape = 'u32[]', space=smem, size = 0x4, offset = 0x4, fixed_abs, tag = 'smem constant byte address 0x4 - core index']
  #allocation1 [shape = 'u32[144,128]{1,0:T(1,128)}', space=vmem, size = 0x12000, scoped, tag = 'internal scratch']
  #allocation2 [shape = 'f32[18,18,128]{2,1,0:T(8,128)}', space=vmem, size = 0x36000, scoped, tag = 'scratch operand']
  %s0 = inlined_call_operand.hbm [shape: f32[2,18,18,128], index: 0, kind: input, shape index: {}]
  %s1 = inlined_call_operand.hbm [shape: f32[9,128], index: 1, kind: input, shape index: {}]
  %s2 = inlined_call_operand.hbm [shape: f32[1,128], index: 2, kind: input, shape index: {}]
  %s3 = inlined_call_operand.hbm [shape: bf16[128,128], index: 3, kind: input, shape index: {}]
  %s4 = inlined_call_operand.hbm [shape: f32[1,128], index: 4, kind: input, shape index: {}]
  %s5 = inlined_call_operand.hbm [shape: bf16[128,128], index: 5, kind: input, shape index: {}]
  %s6 = inlined_call_operand.hbm [shape: f32[1,128], index: 6, kind: input, shape index: {}]
  %s7 = inlined_call_operand.hbm [shape: f32[9,128], index: 7, kind: input, shape index: {}]
  %s8 = inlined_call_operand.hbm [shape: f32[1,128], index: 8, kind: input, shape index: {}]
  %s9 = inlined_call_operand.hbm [shape: f32[2,16,16,128], index: 9, kind: output, shape index: {}]
  %s10 = sld [smem:[#allocation0]]
  $region109: #{tpu_custom_call.1} parent=0
    _
  %s12 = ssub.s32 1, %s10
  %s13 = scalar_select 0, %s12, %s10
  $region1: #{tpu_custom_call.1} parent=0
    #allocation3 [shape = 'u8[442368]{0}', space=vmem, size = 0x6c000, scoped, tag = 'input window, operand 0']
    #allocation4 [shape = 's32[2]{0}', space=sflag, size = 0x8, scoped, tag = 'scoped memory for tpu_custom_call.1']
    #allocation5 [shape = 's32[2]{0}', space=sflag, size = 0x8, scoped, tag = 'scoped memory for tpu_custom_call.1']
    #allocation6 [shape = 'u8[8192]{0}', space=vmem, size = 0x2000, scoped, tag = 'input window, operand 1, single buffered']
    #allocation7 [shape = 's32[1]{0}', space=sflag, size = 0x4, scoped, tag = 'scoped memory for tpu_custom_call.1']
    #allocation8 [shape = 'u8[512]{0}', space=vmem, size = 0x400, scoped, tag = 'input window, operand 2, single buffered']
    #allocation9 [shape = 'u8[32768]{0}', space=vmem, size = 0x8000, scoped, tag = 'input window, operand 3, single buffered']
    #allocation10 [shape = 's32[1]{0}', space=sflag, size = 0x4, scoped, tag = 'scoped memory for tpu_custom_call.1']
    #allocation11 [shape = 'u8[512]{0}', space=vmem, size = 0x400, scoped, tag = 'input window, operand 4, single buffered']
    #allocation12 [shape = 'u8[32768]{0}', space=vmem, size = 0x8000, scoped, tag = 'input window, operand 5, single buffered']
    #allocation13 [shape = 's32[1]{0}', space=sflag, size = 0x4, scoped, tag = 'scoped memory for tpu_custom_call.1']
    #allocation14 [shape = 'u8[512]{0}', space=vmem, size = 0x400, scoped, tag = 'input window, operand 6, single buffered']
    #allocation15 [shape = 'u8[8192]{0}', space=vmem, size = 0x2000, scoped, tag = 'input window, operand 7, single buffered']
    #allocation16 [shape = 's32[1]{0}', space=sflag, size = 0x4, scoped, tag = 'scoped memory for tpu_custom_call.1']
    #allocation17 [shape = 'u8[512]{0}', space=vmem, size = 0x400, scoped, tag = 'input window, operand 8, single buffered']
    #allocation18 [shape = 'u8[262144]{0}', space=vmem, size = 0x40000, scoped, tag = 'output window, operand 0']
    %14 = vsyncpa [#allocation4], 0
    %s15 = scalar_lea.sflag [#allocation4], 1
    %16 = vsyncpa %s15, 0
    %17 = vsyncpa [#allocation7], 0
    %18 = vsyncpa [#allocation10], 0
    %19 = vsyncpa [#allocation13], 0
    %20 = vsyncpa [#allocation16], 0
    %21 = vsyncpa [#allocation5], 0
    %s22 = scalar_lea.sflag [#allocation5], 1
    %23 = vsyncpa %s22, 0
    loop: start=0, step=1, limit=4
    $region2: #{tpu_custom_call.1} parent=1 // loop_pre_header
      _
    $region3: #{tpu_custom_call.1} parent=1 // loop_header
      %s25 = sphi 0, %s29
      %p26 = scmp.ge.s32.totalorder %s25, 4
      %s35 = sphi 0, %s37
      %s38 = sphi 0, %s35
      %s39 = sphi 0, %s38
      %s55 = sphi 0, %s39
      %s59 = sphi 0, %s59
      %s61 = sphi 0, %s59
      %s62 = sphi 0, %s61
      %s76 = sphi 0, %s62
      %s80 = sphi 0, %s80
      %s82 = sphi 0, %s80
      %s83 = sphi 0, %s82
      %s97 = sphi 0, %s83
      %s101 = sphi 0, %s101
      %s103 = sphi 0, %s101
      %s104 = sphi 0, %s103
      %s118 = sphi 0, %s104
      %s122 = sphi 0, %s122
      %s124 = sphi 0, %s122
      %s125 = sphi 0, %s124
      %s139 = sphi 0, %s125
      %s143 = sphi 0, %s143
      %s145 = sphi 0, %s143
      %s146 = sphi 0, %s145
      %s160 = sphi 0, %s146
      %s164 = sphi 0, %s164
      %s166 = sphi 0, %s164
      %s167 = sphi 0, %s166
      %s181 = sphi 0, %s167
      %s185 = sphi 0, %s185
      %s187 = sphi 0, %s185
      %s188 = sphi 0, %s187
      %s202 = sphi 0, %s188
      %s206 = sphi 0, %s206
      %s208 = sphi 0, %s206
      %s209 = sphi 0, %s208
      %s223 = sphi 0, %s209
      %s229 = sphi 0, %s231
      %s232 = sphi 0, %s229
      %s233 = sphi 0, %s232
      %s249 = sphi 0, %s233
    $region4: #{tpu_custom_call.1} parent=1 // loop_header_branch
      %28 = sbr.rel (%p26) target = $region8
    $region5: #{tpu_custom_call.1} parent=1 // loop_body
      %s30 = ssub.s32 %s25, 1
      %s31 = ssub.s32 %s25, 2
      %s32 = sadd.s32 %s25, 1
      %s33 = ssub.s32 %s25, %s32
      %p34 = scmp.eq.s32.totalorder %s33, 0
      %s36 = sadd.s32 %s35, 1
      %s37 = scalar_select %p34, %s35, %s36
      %p40 = pneg %p34
      %p41 = scmp.eq.s32.totalorder %s25, 1
      %p42 = por %p40, %p41
      %p43 = scmp.ne.s32.totalorder %s35, %s38
      %p44 = scmp.eq.s32.totalorder %s25, 0
      %p45 = por %p43, %p44
      %p46 = scmp.ne.s32.totalorder %s35, %s38
      %p47 = scmp.eq.s32.totalorder %s30, 1
      %p48 = por %p46, %p47
      %p49 = scmp.ne.s32.totalorder %s38, %s39
      %p50 = scmp.eq.s32.totalorder %s30, 0
      %p51 = por %p49, %p50
      %p52 = scmp.ne.s32.totalorder %s38, %s39
      %p53 = scmp.eq.s32.totalorder %s31, 1
      %p54 = por %p52, %p53
      %p56 = scmp.ne.s32.totalorder %s39, %s55
      %p57 = scmp.eq.s32.totalorder %s31, 0
      %p58 = por %p56, %p57
      %s60 = sadd.s32 %s59, 1
      %p63 = scmp.eq.s32.totalorder %s25, 1
      %p64 = scmp.ne.s32.totalorder %s59, %s61
      %p65 = scmp.eq.s32.totalorder %s25, 0
      %p66 = por %p64, %p65
      %p67 = scmp.ne.s32.totalorder %s59, %s61
      %p68 = scmp.eq.s32.totalorder %s30, 1
      %p69 = por %p67, %p68
      %p70 = scmp.ne.s32.totalorder %s61, %s62
      %p71 = scmp.eq.s32.totalorder %s30, 0
      %p72 = por %p70, %p71
      %p73 = scmp.ne.s32.totalorder %s61, %s62
      %p74 = scmp.eq.s32.totalorder %s31, 1
      %p75 = por %p73, %p74
      %p77 = scmp.ne.s32.totalorder %s62, %s76
      %p78 = scmp.eq.s32.totalorder %s31, 0
      %p79 = por %p77, %p78
      %s81 = sadd.s32 %s80, 1
      %p84 = scmp.eq.s32.totalorder %s25, 1
      %p85 = scmp.ne.s32.totalorder %s80, %s82
      %p86 = scmp.eq.s32.totalorder %s25, 0
      %p87 = por %p85, %p86
      %p88 = scmp.ne.s32.totalorder %s80, %s82
      %p89 = scmp.eq.s32.totalorder %s30, 1
      %p90 = por %p88, %p89
      %p91 = scmp.ne.s32.totalorder %s82, %s83
      %p92 = scmp.eq.s32.totalorder %s30, 0
      %p93 = por %p91, %p92
      %p94 = scmp.ne.s32.totalorder %s82, %s83
      %p95 = scmp.eq.s32.totalorder %s31, 1
      %p96 = por %p94, %p95
      %p98 = scmp.ne.s32.totalorder %s83, %s97
      %p99 = scmp.eq.s32.totalorder %s31, 0
      %p100 = por %p98, %p99
      %s102 = sadd.s32 %s101, 1
      %p105 = scmp.eq.s32.totalorder %s25, 1
      %p106 = scmp.ne.s32.totalorder %s101, %s103
      %p107 = scmp.eq.s32.totalorder %s25, 0
      %p108 = por %p106, %p107
      %p109 = scmp.ne.s32.totalorder %s101, %s103
      %p110 = scmp.eq.s32.totalorder %s30, 1
      %p111 = por %p109, %p110
      %p112 = scmp.ne.s32.totalorder %s103, %s104
      %p113 = scmp.eq.s32.totalorder %s30, 0
      %p114 = por %p112, %p113
      %p115 = scmp.ne.s32.totalorder %s103, %s104
      %p116 = scmp.eq.s32.totalorder %s31, 1
      %p117 = por %p115, %p116
      %p119 = scmp.ne.s32.totalorder %s104, %s118
      %p120 = scmp.eq.s32.totalorder %s31, 0
      %p121 = por %p119, %p120
      %s123 = sadd.s32 %s122, 1
      %p126 = scmp.eq.s32.totalorder %s25, 1
      %p127 = scmp.ne.s32.totalorder %s122, %s124
      %p128 = scmp.eq.s32.totalorder %s25, 0
      %p129 = por %p127, %p128
      %p130 = scmp.ne.s32.totalorder %s122, %s124
      %p131 = scmp.eq.s32.totalorder %s30, 1
      %p132 = por %p130, %p131
      %p133 = scmp.ne.s32.totalorder %s124, %s125
      %p134 = scmp.eq.s32.totalorder %s30, 0
      %p135 = por %p133, %p134
      %p136 = scmp.ne.s32.totalorder %s124, %s125
      %p137 = scmp.eq.s32.totalorder %s31, 1
      %p138 = por %p136, %p137
      %p140 = scmp.ne.s32.totalorder %s125, %s139
      %p141 = scmp.eq.s32.totalorder %s31, 0
      %p142 = por %p140, %p141
      %s144 = sadd.s32 %s143, 1
      %p147 = scmp.eq.s32.totalorder %s25, 1
      %p148 = scmp.ne.s32.totalorder %s143, %s145
      %p149 = scmp.eq.s32.totalorder %s25, 0
      %p150 = por %p148, %p149
      %p151 = scmp.ne.s32.totalorder %s143, %s145
      %p152 = scmp.eq.s32.totalorder %s30, 1
      %p153 = por %p151, %p152
      %p154 = scmp.ne.s32.totalorder %s145, %s146
      %p155 = scmp.eq.s32.totalorder %s30, 0
      %p156 = por %p154, %p155
      %p157 = scmp.ne.s32.totalorder %s145, %s146
      %p158 = scmp.eq.s32.totalorder %s31, 1
      %p159 = por %p157, %p158
      %p161 = scmp.ne.s32.totalorder %s146, %s160
      %p162 = scmp.eq.s32.totalorder %s31, 0
      %p163 = por %p161, %p162
      %s165 = sadd.s32 %s164, 1
      %p168 = scmp.eq.s32.totalorder %s25, 1
      %p169 = scmp.ne.s32.totalorder %s164, %s166
      %p170 = scmp.eq.s32.totalorder %s25, 0
      %p171 = por %p169, %p170
      %p172 = scmp.ne.s32.totalorder %s164, %s166
      %p173 = scmp.eq.s32.totalorder %s30, 1
      %p174 = por %p172, %p173
      %p175 = scmp.ne.s32.totalorder %s166, %s167
      %p176 = scmp.eq.s32.totalorder %s30, 0
      %p177 = por %p175, %p176
      %p178 = scmp.ne.s32.totalorder %s166, %s167
      %p179 = scmp.eq.s32.totalorder %s31, 1
      %p180 = por %p178, %p179
      %p182 = scmp.ne.s32.totalorder %s167, %s181
      %p183 = scmp.eq.s32.totalorder %s31, 0
      %p184 = por %p182, %p183
      %s186 = sadd.s32 %s185, 1
      %p189 = scmp.eq.s32.totalorder %s25, 1
      %p190 = scmp.ne.s32.totalorder %s185, %s187
      %p191 = scmp.eq.s32.totalorder %s25, 0
      %p192 = por %p190, %p191
      %p193 = scmp.ne.s32.totalorder %s185, %s187
      %p194 = scmp.eq.s32.totalorder %s30, 1
      %p195 = por %p193, %p194
      %p196 = scmp.ne.s32.totalorder %s187, %s188
      %p197 = scmp.eq.s32.totalorder %s30, 0
      %p198 = por %p196, %p197
      %p199 = scmp.ne.s32.totalorder %s187, %s188
      %p200 = scmp.eq.s32.totalorder %s31, 1
      %p201 = por %p199, %p200
      %p203 = scmp.ne.s32.totalorder %s188, %s202
      %p204 = scmp.eq.s32.totalorder %s31, 0
      %p205 = por %p203, %p204
      %s207 = sadd.s32 %s206, 1
      %p210 = scmp.eq.s32.totalorder %s25, 1
      %p211 = scmp.ne.s32.totalorder %s206, %s208
      %p212 = scmp.eq.s32.totalorder %s25, 0
      %p213 = por %p211, %p212
      %p214 = scmp.ne.s32.totalorder %s206, %s208
      %p215 = scmp.eq.s32.totalorder %s30, 1
      %p216 = por %p214, %p215
      %p217 = scmp.ne.s32.totalorder %s208, %s209
      %p218 = scmp.eq.s32.totalorder %s30, 0
      %p219 = por %p217, %p218
      %p220 = scmp.ne.s32.totalorder %s208, %s209
      %p221 = scmp.eq.s32.totalorder %s31, 1
      %p222 = por %p220, %p221
      %p224 = scmp.ne.s32.totalorder %s209, %s223
      %p225 = scmp.eq.s32.totalorder %s31, 0
      %p226 = por %p224, %p225
      %s227 = ssub.s32 %s25, %s32
      %p228 = scmp.eq.s32.totalorder %s227, 0
      %s230 = sadd.s32 %s229, 1
      %s231 = scalar_select %p228, %s229, %s230
      %p234 = pneg %p228
      %p235 = scmp.eq.s32.totalorder %s25, 1
      %p236 = por %p234, %p235
      %p237 = scmp.ne.s32.totalorder %s229, %s232
      %p238 = scmp.eq.s32.totalorder %s25, 0
      %p239 = por %p237, %p238
      %p240 = scmp.ne.s32.totalorder %s229, %s232
      %p241 = scmp.eq.s32.totalorder %s30, 1
      %p242 = por %p240, %p241
      %p243 = scmp.ne.s32.totalorder %s232, %s233
      %p244 = scmp.eq.s32.totalorder %s30, 0
      %p245 = por %p243, %p244
      %p246 = scmp.ne.s32.totalorder %s232, %s233
      %p247 = scmp.eq.s32.totalorder %s31, 1
      %p248 = por %p246, %p247
      %p250 = scmp.ne.s32.totalorder %s233, %s249
      %p251 = scmp.eq.s32.totalorder %s31, 0
      %p252 = por %p250, %p251
      %p253 = scmp.le.s32.totalorder 1, %s25
      %p254 = scmp.lt.s32.totalorder %s25, 3
      %p255 = pnand %p253, %p254
      %p256 = pneg %p255
      // Predicated region
      $region9: #{tpu_custom_call.1} parent=5 // pred_check
        _
      $region10: #{tpu_custom_call.1} parent=5 // pred_check_branch
        %258 = sbr.rel (%p255) target = $region12
      $region11: #{tpu_custom_call.1} parent=5 // pred_region
        %s259 = ssub.s32 %s25, 1
        // Predicated region
        $region13: #{tpu_custom_call.1} parent=11 // pred_check
          %p260 = pneg %p72
        $region14: #{tpu_custom_call.1} parent=11 // pred_check_branch
          %262 = sbr.rel (%p260) target = $region16
        $region15: #{tpu_custom_call.1} parent=11 // pred_region
          %s264 = ssub.s32 256, 256
          %265 = vsyncadd [#allocation7], %s264
          %s266 = sshll.u32 [#allocation6], 4
          %s267 = int_to_ptr.vmem [resolvable:$true] %s266
          %272 = dma.hbm_to_vmem [thread:$0]  %s1, 256, %s267, [#allocation7], 128, 128, 8
        $region16: #{tpu_custom_call.1} parent=11 // pred_fallthru
          _
        // Predicated region
        $region17: #{tpu_custom_call.1} parent=11 // pred_check
          %p273 = pneg %p93
        $region18: #{tpu_custom_call.1} parent=11 // pred_check_branch
          %275 = sbr.rel (%p273) target = $region20
        $region19: #{tpu_custom_call.1} parent=11 // pred_region
          %s277 = ssub.s32 16, 16
          %278 = vsyncadd [#allocation7], %s277
          %s280 = sshll.u32 [#allocation8], 4
          %s281 = int_to_ptr.vmem [resolvable:$true] %s280
          %283 = dma.hbm_to_vmem [thread:$0]  %s2, 16, %s281, [#allocation7]
        $region20: #{tpu_custom_call.1} parent=11 // pred_fallthru
          _
        // Predicated region
        $region21: #{tpu_custom_call.1} parent=11 // pred_check
          %p284 = pneg %p114
        $region22: #{tpu_custom_call.1} parent=11 // pred_check_branch
          %286 = sbr.rel (%p284) target = $region24
        $region23: #{tpu_custom_call.1} parent=11 // pred_region
          %s288 = ssub.s32 1024, 1024
          %289 = vsyncadd [#allocation10], %s288
          %s290 = sshll.u32 [#allocation9], 4
          %s291 = int_to_ptr.vmem [resolvable:$true] %s290
          %296 = dma.hbm_to_vmem [thread:$0]  %s3, 1024, %s291, [#allocation10], 64, 64, 4
        $region24: #{tpu_custom_call.1} parent=11 // pred_fallthru
          _
        // Predicated region
        $region25: #{tpu_custom_call.1} parent=11 // pred_check
          %p297 = pneg %p135
        $region26: #{tpu_custom_call.1} parent=11 // pred_check_branch
          %299 = sbr.rel (%p297) target = $region28
        $region27: #{tpu_custom_call.1} parent=11 // pred_region
          %s301 = ssub.s32 16, 16
          %302 = vsyncadd [#allocation10], %s301
          %s304 = sshll.u32 [#allocation11], 4
          %s305 = int_to_ptr.vmem [resolvable:$true] %s304
          %307 = dma.hbm_to_vmem [thread:$0]  %s4, 16, %s305, [#allocation10]
        $region28: #{tpu_custom_call.1} parent=11 // pred_fallthru
          _
        // Predicated region
        $region29: #{tpu_custom_call.1} parent=11 // pred_check
          %p308 = pneg %p156
        $region30: #{tpu_custom_call.1} parent=11 // pred_check_branch
          %310 = sbr.rel (%p308) target = $region32
        $region31: #{tpu_custom_call.1} parent=11 // pred_region
          %s312 = ssub.s32 1024, 1024
          %313 = vsyncadd [#allocation13], %s312
          %s314 = sshll.u32 [#allocation12], 4
          %s315 = int_to_ptr.vmem [resolvable:$true] %s314
          %320 = dma.hbm_to_vmem [thread:$0]  %s5, 1024, %s315, [#allocation13], 64, 64, 4
        $region32: #{tpu_custom_call.1} parent=11 // pred_fallthru
          _
        // Predicated region
        $region33: #{tpu_custom_call.1} parent=11 // pred_check
          %p321 = pneg %p177
        $region34: #{tpu_custom_call.1} parent=11 // pred_check_branch
          %323 = sbr.rel (%p321) target = $region36
        $region35: #{tpu_custom_call.1} parent=11 // pred_region
          %s325 = ssub.s32 16, 16
          %326 = vsyncadd [#allocation13], %s325
          %s328 = sshll.u32 [#allocation14], 4
          %s329 = int_to_ptr.vmem [resolvable:$true] %s328
          %331 = dma.hbm_to_vmem [thread:$0]  %s6, 16, %s329, [#allocation13]
        $region36: #{tpu_custom_call.1} parent=11 // pred_fallthru
          _
        // Predicated region
        $region37: #{tpu_custom_call.1} parent=11 // pred_check
          %p332 = pneg %p198
        $region38: #{tpu_custom_call.1} parent=11 // pred_check_branch
          %334 = sbr.rel (%p332) target = $region40
        $region39: #{tpu_custom_call.1} parent=11 // pred_region
          %s336 = ssub.s32 256, 256
          %337 = vsyncadd [#allocation16], %s336
          %s338 = sshll.u32 [#allocation15], 4
          %s339 = int_to_ptr.vmem [resolvable:$true] %s338
          %344 = dma.hbm_to_vmem [thread:$0]  %s7, 256, %s339, [#allocation16], 128, 128, 8
        $region40: #{tpu_custom_call.1} parent=11 // pred_fallthru
          _
        // Predicated region
        $region41: #{tpu_custom_call.1} parent=11 // pred_check
          %p345 = pneg %p219
        $region42: #{tpu_custom_call.1} parent=11 // pred_check_branch
          %347 = sbr.rel (%p345) target = $region44
        $region43: #{tpu_custom_call.1} parent=11 // pred_region
          %s349 = ssub.s32 16, 16
          %350 = vsyncadd [#allocation16], %s349
          %s352 = sshll.u32 [#allocation17], 4
          %s353 = int_to_ptr.vmem [resolvable:$true] %s352
          %355 = dma.hbm_to_vmem [thread:$0]  %s8, 16, %s353, [#allocation16]
        $region44: #{tpu_custom_call.1} parent=11 // pred_fallthru
          _
      $region12: #{tpu_custom_call.1} parent=5 // pred_fallthru
        _
      %p356 = scmp.lt.s32.totalorder %s25, 2
      // Predicated region
      $region45: #{tpu_custom_call.1} parent=5 // pred_check
        %p357 = pneg %p356
      $region46: #{tpu_custom_call.1} parent=5 // pred_check_branch
        %359 = sbr.rel (%p357) target = $region48
      $region47: #{tpu_custom_call.1} parent=5 // pred_region
        // Predicated region
        $region49: #{tpu_custom_call.1} parent=47 // pred_check
          %p360 = pneg %p45
        $region50: #{tpu_custom_call.1} parent=47 // pred_check_branch
          %362 = sbr.rel (%p360) target = $region52
        $region51: #{tpu_custom_call.1} parent=47 // pred_region
          %s363 = sand.u32 %s35, 1
          %s364 = scalar_lea.sflag [#allocation4], %s363
          %s365 = sand.u32 %s35, 1
          %s366 = smul.addr %s365, 432
          %s367 = scalar_lea.vmem [#allocation3], %s366
          %s369 = ssub.s32 6912, 6912
          %370 = vsyncadd %s364, %s369
          %s371 = smul.addr %s25, 54
          %s372 = smul.addr %s371, 128
          %s373 = scalar_lea.hbm %s0, %s372
          %s374 = sshll.u32 %s367, 4
          %s375 = int_to_ptr.vmem [resolvable:$true] %s374
          %380 = dma.hbm_to_vmem [thread:$0]  %s373, 6912, %s375, %s364, 128, 128, 8
        $region52: #{tpu_custom_call.1} parent=47 // pred_fallthru
          _
      $region48: #{tpu_custom_call.1} parent=5 // pred_fallthru
        _
      %p381 = scmp.le.s32.totalorder 1, %s25
      %p382 = scmp.lt.s32.totalorder %s25, 3
      %p383 = pnand %p381, %p382
      %p384 = pneg %p383
      // Predicated region
      $region53: #{tpu_custom_call.1} parent=5 // pred_check
        _
      $region54: #{tpu_custom_call.1} parent=5 // pred_check_branch
        %386 = sbr.rel (%p383) target = $region56
      $region55: #{tpu_custom_call.1} parent=5 // pred_region
        %s387 = ssub.s32 %s25, 1
        %s388 = sand.u32 %s38, 1
        %s389 = scalar_lea.sflag [#allocation4], %s388
        %s390 = sand.u32 %s38, 1
        %s391 = smul.addr %s390, 432
        %s392 = scalar_lea.vmem [#allocation3], %s391
        // Predicated region
        $region57: #{tpu_custom_call.1} parent=55 // pred_check
          %p393 = pneg %p51
        $region58: #{tpu_custom_call.1} parent=55 // pred_check_branch
          %395 = sbr.rel (%p393) target = $region60
        $region59: #{tpu_custom_call.1} parent=55 // pred_region
          %396 = dma.done %s389, 6912
        $region60: #{tpu_custom_call.1} parent=55 // pred_fallthru
          _
        // Predicated region
        $region61: #{tpu_custom_call.1} parent=55 // pred_check
          %p397 = pneg %p72
        $region62: #{tpu_custom_call.1} parent=55 // pred_check_branch
          %399 = sbr.rel (%p397) target = $region64
        $region63: #{tpu_custom_call.1} parent=55 // pred_region
          %400 = dma.done [#allocation7], 256
        $region64: #{tpu_custom_call.1} parent=55 // pred_fallthru
          _
        // Predicated region
        $region65: #{tpu_custom_call.1} parent=55 // pred_check
          %p401 = pneg %p93
        $region66: #{tpu_custom_call.1} parent=55 // pred_check_branch
          %403 = sbr.rel (%p401) target = $region68
        $region67: #{tpu_custom_call.1} parent=55 // pred_region
          %404 = dma.done [#allocation7], 16
        $region68: #{tpu_custom_call.1} parent=55 // pred_fallthru
          _
        // Predicated region
        $region69: #{tpu_custom_call.1} parent=55 // pred_check
          %p405 = pneg %p114
        $region70: #{tpu_custom_call.1} parent=55 // pred_check_branch
          %407 = sbr.rel (%p405) target = $region72
        $region71: #{tpu_custom_call.1} parent=55 // pred_region
          %408 = dma.done [#allocation10], 1024
        $region72: #{tpu_custom_call.1} parent=55 // pred_fallthru
          _
        // Predicated region
        $region73: #{tpu_custom_call.1} parent=55 // pred_check
          %p409 = pneg %p135
        $region74: #{tpu_custom_call.1} parent=55 // pred_check_branch
          %411 = sbr.rel (%p409) target = $region76
        $region75: #{tpu_custom_call.1} parent=55 // pred_region
          %412 = dma.done [#allocation10], 16
        $region76: #{tpu_custom_call.1} parent=55 // pred_fallthru
          _
        // Predicated region
        $region77: #{tpu_custom_call.1} parent=55 // pred_check
          %p413 = pneg %p156
        $region78: #{tpu_custom_call.1} parent=55 // pred_check_branch
          %415 = sbr.rel (%p413) target = $region80
        $region79: #{tpu_custom_call.1} parent=55 // pred_region
          %416 = dma.done [#allocation13], 1024
        $region80: #{tpu_custom_call.1} parent=55 // pred_fallthru
          _
        // Predicated region
        $region81: #{tpu_custom_call.1} parent=55 // pred_check
          %p417 = pneg %p177
        $region82: #{tpu_custom_call.1} parent=55 // pred_check_branch
          %419 = sbr.rel (%p417) target = $region84
        $region83: #{tpu_custom_call.1} parent=55 // pred_region
          %420 = dma.done [#allocation13], 16
        $region84: #{tpu_custom_call.1} parent=55 // pred_fallthru
          _
        // Predicated region
        $region85: #{tpu_custom_call.1} parent=55 // pred_check
          %p421 = pneg %p198
        $region86: #{tpu_custom_call.1} parent=55 // pred_check_branch
          %423 = sbr.rel (%p421) target = $region88
        $region87: #{tpu_custom_call.1} parent=55 // pred_region
          %424 = dma.done [#allocation16], 256
        $region88: #{tpu_custom_call.1} parent=55 // pred_fallthru
          _
        // Predicated region
        $region89: #{tpu_custom_call.1} parent=55 // pred_check
          %p425 = pneg %p219
        $region90: #{tpu_custom_call.1} parent=55 // pred_check_branch
          %427 = sbr.rel (%p425) target = $region92
        $region91: #{tpu_custom_call.1} parent=55 // pred_region
          %428 = dma.done [#allocation16], 16
        $region92: #{tpu_custom_call.1} parent=55 // pred_fallthru
          _
        %s429 = sand.u32 %s38, 1
        %s430 = scalar_lea.sflag [#allocation4], %s429
        %s431 = sand.u32 %s38, 1
        %s432 = smul.addr %s431, 432
        %s433 = scalar_lea.vmem [#allocation3], %s432
        %p434 = pneg %p51
        %p435 = pneg %p48
        %p436 = pneg %p72
        %p437 = pneg %p69
        %p438 = pneg %p93
        %p439 = pneg %p90
        %p440 = pneg %p114
        %p441 = pneg %p111
        %p442 = pneg %p135
        %p443 = pneg %p132
        %p444 = pneg %p156
        %p445 = pneg %p153
        %p446 = pneg %p177
        %p447 = pneg %p174
        %p448 = pneg %p198
        %p449 = pneg %p195
        %p450 = pneg %p219
        %p451 = pneg %p216
        %p452 = pneg %p245
        %p453 = pneg %p242
        %s454 = sand.u32 %s232, 1
        %s455 = scalar_lea.sflag [#allocation5], %s454
        %s456 = sand.u32 %s232, 1
        %s457 = smul.addr %s456, 256
        %s458 = scalar_lea.vmem [#allocation18], %s457
        %p460 = scmp.eq.s32.totalorder %s30, 0
        // Predicated region
        $region93: #{tpu_custom_call.1} parent=55 // pred_check
          %p461 = pneg %p460
        $region94: #{tpu_custom_call.1} parent=55 // pred_check_branch
          %463 = sbr.rel (%p461) target = $region96
        $region95: #{tpu_custom_call.1} parent=55 // pred_region
          %464 = vst [vmem:[#allocation2] sm:$0xff] 0.0
          %465 = vst [vmem:[#allocation2 + $0x8] sm:$0xff] 0.0
          %466 = vst [vmem:[#allocation2 + $0x10] sm:$0x3] 0.0
          %467 = vst [vmem:[#allocation2 + $0x18] sm:$0xff] 0.0
          %468 = vst [vmem:[#allocation2 + $0x20] sm:$0xff] 0.0
          %469 = vst [vmem:[#allocation2 + $0x28] sm:$0x3] 0.0
          %470 = vst [vmem:[#allocation2 + $0x30] sm:$0xff] 0.0
          %471 = vst [vmem:[#allocation2 + $0x38] sm:$0xff] 0.0
          %472 = vst [vmem:[#allocation2 + $0x40] sm:$0x3] 0.0
          %473 = vst [vmem:[#allocation2 + $0x48] sm:$0xff] 0.0
          %474 = vst [vmem:[#allocation2 + $0x50] sm:$0xff] 0.0
          %475 = vst [vmem:[#allocation2 + $0x58] sm:$0x3] 0.0
          %476 = vst [vmem:[#allocation2 + $0x60] sm:$0xff] 0.0
          %477 = vst [vmem:[#allocation2 + $0x68] sm:$0xff] 0.0
          %478 = vst [vmem:[#allocation2 + $0x70] sm:$0x3] 0.0
          %479 = vst [vmem:[#allocation2 + $0x78] sm:$0xff] 0.0
          %480 = vst [vmem:[#allocation2 + $0x80] sm:$0xff] 0.0
          %481 = vst [vmem:[#allocation2 + $0x88] sm:$0x3] 0.0
          %482 = vst [vmem:[#allocation2 + $0x90] sm:$0xff] 0.0
          %483 = vst [vmem:[#allocation2 + $0x98] sm:$0xff] 0.0
          %484 = vst [vmem:[#allocation2 + $0xa0] sm:$0x3] 0.0
          %485 = vst [vmem:[#allocation2 + $0xa8] sm:$0xff] 0.0
          %486 = vst [vmem:[#allocation2 + $0xb0] sm:$0xff] 0.0
          %487 = vst [vmem:[#allocation2 + $0xb8] sm:$0x3] 0.0
          %488 = vst [vmem:[#allocation2 + $0xc0] sm:$0xff] 0.0
          %489 = vst [vmem:[#allocation2 + $0xc8] sm:$0xff] 0.0
          %490 = vst [vmem:[#allocation2 + $0xd0] sm:$0x3] 0.0
          %491 = vst [vmem:[#allocation2 + $0xd8] sm:$0xff] 0.0
          %492 = vst [vmem:[#allocation2 + $0xe0] sm:$0xff] 0.0
          %493 = vst [vmem:[#allocation2 + $0xe8] sm:$0x3] 0.0
          %494 = vst [vmem:[#allocation2 + $0xf0] sm:$0xff] 0.0
          %495 = vst [vmem:[#allocation2 + $0xf8] sm:$0xff] 0.0
          %496 = vst [vmem:[#allocation2 + $0x100] sm:$0x3] 0.0
          %497 = vst [vmem:[#allocation2 + $0x108] sm:$0xff] 0.0
          %498 = vst [vmem:[#allocation2 + $0x110] sm:$0xff] 0.0
          %499 = vst [vmem:[#allocation2 + $0x118] sm:$0x3] 0.0
          %500 = vst [vmem:[#allocation2 + $0x120] sm:$0xff] 0.0
          %501 = vst [vmem:[#allocation2 + $0x128] sm:$0xff] 0.0
          %502 = vst [vmem:[#allocation2 + $0x130] sm:$0x3] 0.0
          %503 = vst [vmem:[#allocation2 + $0x138] sm:$0xff] 0.0
          %504 = vst [vmem:[#allocation2 + $0x140] sm:$0xff] 0.0
          %505 = vst [vmem:[#allocation2 + $0x148] sm:$0x3] 0.0
          %506 = vst [vmem:[#allocation2 + $0x150] sm:$0xff] 0.0
          %507 = vst [vmem:[#allocation2 + $0x158] sm:$0xff] 0.0
          %508 = vst [vmem:[#allocation2 + $0x160] sm:$0x3] 0.0
          %509 = vst [vmem:[#allocation2 + $0x168] sm:$0xff] 0.0
          %510 = vst [vmem:[#allocation2 + $0x170] sm:$0xff] 0.0
          %511 = vst [vmem:[#allocation2 + $0x178] sm:$0x3] 0.0
          %512 = vst [vmem:[#allocation2 + $0x180] sm:$0xff] 0.0
          %513 = vst [vmem:[#allocation2 + $0x188] sm:$0xff] 0.0
          %514 = vst [vmem:[#allocation2 + $0x190] sm:$0x3] 0.0
          %515 = vst [vmem:[#allocation2 + $0x198] sm:$0xff] 0.0
          %516 = vst [vmem:[#allocation2 + $0x1a0] sm:$0xff] 0.0
          %517 = vst [vmem:[#allocation2 + $0x1a8] sm:$0x3] 0.0
        $region96: #{tpu_custom_call.1} parent=55 // pred_fallthru
          _
        %v518 = vld [vmem:[%s392] sm:$0xff]
        %v519 = vld [vmem:[%s392 + $0x8] sm:$0xff]
        %v520 = vld [vmem:[%s392 + $0x18] sm:$0xff]
        %v521 = vld [vmem:[%s392 + $0x20] sm:$0xff]
        %v522 = vld [vmem:[%s392 + $0x30] sm:$0xff]
        %v523 = vld [vmem:[%s392 + $0x38] sm:$0xff]
        %v524 = vld [vmem:[%s392 + $0x48] sm:$0xff]
        %v525 = vld [vmem:[%s392 + $0x50] sm:$0xff]
        %v526 = vld [vmem:[%s392 + $0x60] sm:$0xff]
        %v527 = vld [vmem:[%s392 + $0x68] sm:$0xff]
        %v528 = vld [vmem:[%s392 + $0x78] sm:$0xff]
        %v529 = vld [vmem:[%s392 + $0x80] sm:$0xff]
        %v530 = vld [vmem:[%s392 + $0x90] sm:$0xff]
        %v531 = vld [vmem:[%s392 + $0x98] sm:$0xff]
        %v532 = vld [vmem:[%s392 + $0xa8] sm:$0xff]
        %v533 = vld [vmem:[%s392 + $0xb0] sm:$0xff]
        %v534 = vld [vmem:[%s392 + $0xc0] sm:$0xff]
        %v535 = vld [vmem:[%s392 + $0xc8] sm:$0xff]
        %v536 = vld [vmem:[%s392 + $0xd8] sm:$0xff]
        %v537 = vld [vmem:[%s392 + $0xe0] sm:$0xff]
        %v538 = vld [vmem:[%s392 + $0xf0] sm:$0xff]
        %v539 = vld [vmem:[%s392 + $0xf8] sm:$0xff]
        %v540 = vld [vmem:[%s392 + $0x108] sm:$0xff]
        %v541 = vld [vmem:[%s392 + $0x110] sm:$0xff]
        %v542 = vld [vmem:[%s392 + $0x120] sm:$0xff]
        %v543 = vld [vmem:[%s392 + $0x128] sm:$0xff]
        %v544 = vld [vmem:[%s392 + $0x138] sm:$0xff]
        %v545 = vld [vmem:[%s392 + $0x140] sm:$0xff]
        %v546 = vld [vmem:[%s392 + $0x150] sm:$0xff]
        %v547 = vld [vmem:[%s392 + $0x158] sm:$0xff]
        %v548 = vld [vmem:[%s392 + $0x168] sm:$0xff]
        %v549 = vld [vmem:[%s392 + $0x170] sm:$0xff]
        %v550 = vld [vmem:[#allocation6] sm:$0x1]
        %v551 = vlaneseq
        %v552 = vshrl.u32 %v551, 7
        %v553 = vsub.s32 0, %v552
        %v554 = vrot.slane %v550, %v553
        %v555 = vmul.f32 %v518, %v554
        %v556 = vmul.f32 %v519, %v554
        %v557 = vmul.f32 %v520, %v554
        %v558 = vmul.f32 %v521, %v554
        %v559 = vmul.f32 %v522, %v554
        %v560 = vmul.f32 %v523, %v554
        %v561 = vmul.f32 %v524, %v554
        %v562 = vmul.f32 %v525, %v554
        %v563 = vmul.f32 %v526, %v554
        %v564 = vmul.f32 %v527, %v554
        %v565 = vmul.f32 %v528, %v554
        %v566 = vmul.f32 %v529, %v554
        %v567 = vmul.f32 %v530, %v554
        %v568 = vmul.f32 %v531, %v554
        %v569 = vmul.f32 %v532, %v554
        %v570 = vmul.f32 %v533, %v554
        %v571 = vmul.f32 %v534, %v554
        %v572 = vmul.f32 %v535, %v554
        %v573 = vmul.f32 %v536, %v554
        %v574 = vmul.f32 %v537, %v554
        %v575 = vmul.f32 %v538, %v554
        %v576 = vmul.f32 %v539, %v554
        %v577 = vmul.f32 %v540, %v554
        %v578 = vmul.f32 %v541, %v554
        %v579 = vmul.f32 %v542, %v554
        %v580 = vmul.f32 %v543, %v554
        %v581 = vmul.f32 %v544, %v554
        %v582 = vmul.f32 %v545, %v554
        %v583 = vmul.f32 %v546, %v554
        %v584 = vmul.f32 %v547, %v554
        %v585 = vmul.f32 %v548, %v554
        %v586 = vmul.f32 %v549, %v554
        %v587 = vld [vmem:[%s392 + $0x1] sm:$0xff]
        %v588 = vld [vmem:[%s392 + $0x9] sm:$0xff]
        %v589 = vld [vmem:[%s392 + $0x19] sm:$0xff]
        %v590 = vld [vmem:[%s392 + $0x21] sm:$0xff]
        %v591 = vld [vmem:[%s392 + $0x31] sm:$0xff]
        %v592 = vld [vmem:[%s392 + $0x39] sm:$0xff]
        %v593 = vld [vmem:[%s392 + $0x49] sm:$0xff]
        %v594 = vld [vmem:[%s392 + $0x51] sm:$0xff]
        %v595 = vld [vmem:[%s392 + $0x61] sm:$0xff]
        %v596 = vld [vmem:[%s392 + $0x69] sm:$0xff]
        %v597 = vld [vmem:[%s392 + $0x79] sm:$0xff]
        %v598 = vld [vmem:[%s392 + $0x81] sm:$0xff]
        %v599 = vld [vmem:[%s392 + $0x91] sm:$0xff]
        %v600 = vld [vmem:[%s392 + $0x99] sm:$0xff]
        %v601 = vld [vmem:[%s392 + $0xa9] sm:$0xff]
        %v602 = vld [vmem:[%s392 + $0xb1] sm:$0xff]
        %v603 = vld [vmem:[%s392 + $0xc1] sm:$0xff]
        %v604 = vld [vmem:[%s392 + $0xc9] sm:$0xff]
        %v605 = vld [vmem:[%s392 + $0xd9] sm:$0xff]
        %v606 = vld [vmem:[%s392 + $0xe1] sm:$0xff]
        %v607 = vld [vmem:[%s392 + $0xf1] sm:$0xff]
        %v608 = vld [vmem:[%s392 + $0xf9] sm:$0xff]
        %v609 = vld [vmem:[%s392 + $0x109] sm:$0xff]
        %v610 = vld [vmem:[%s392 + $0x111] sm:$0xff]
        %v611 = vld [vmem:[%s392 + $0x121] sm:$0xff]
        %v612 = vld [vmem:[%s392 + $0x129] sm:$0xff]
        %v613 = vld [vmem:[%s392 + $0x139] sm:$0xff]
        %v614 = vld [vmem:[%s392 + $0x141] sm:$0xff]
        %v615 = vld [vmem:[%s392 + $0x151] sm:$0xff]
        %v616 = vld [vmem:[%s392 + $0x159] sm:$0xff]
        %v617 = vld [vmem:[%s392 + $0x169] sm:$0xff]
        %v618 = vld [vmem:[%s392 + $0x171] sm:$0xff]
        %v619 = vld [vmem:[#allocation6 + $0x1] sm:$0x1]
        %v620 = vlaneseq
        %v621 = vshrl.u32 %v620, 7
        %v622 = vsub.s32 0, %v621
        %v623 = vrot.slane %v619, %v622
        %v624 = vmul.f32 %v587, %v623
        %v625 = vmul.f32 %v588, %v623
        %v626 = vmul.f32 %v589, %v623
        %v627 = vmul.f32 %v590, %v623
        %v628 = vmul.f32 %v591, %v623
        %v629 = vmul.f32 %v592, %v623
        %v630 = vmul.f32 %v593, %v623
        %v631 = vmul.f32 %v594, %v623
        %v632 = vmul.f32 %v595, %v623
        %v633 = vmul.f32 %v596, %v623
        %v634 = vmul.f32 %v597, %v623
        %v635 = vmul.f32 %v598, %v623
        %v636 = vmul.f32 %v599, %v623
        %v637 = vmul.f32 %v600, %v623
        %v638 = vmul.f32 %v601, %v623
        %v639 = vmul.f32 %v602, %v623
        %v640 = vmul.f32 %v603, %v623
        %v641 = vmul.f32 %v604, %v623
        %v642 = vmul.f32 %v605, %v623
        %v643 = vmul.f32 %v606, %v623
        %v644 = vmul.f32 %v607, %v623
        %v645 = vmul.f32 %v608, %v623
        %v646 = vmul.f32 %v609, %v623
        %v647 = vmul.f32 %v610, %v623
        %v648 = vmul.f32 %v611, %v623
        %v649 = vmul.f32 %v612, %v623
        %v650 = vmul.f32 %v613, %v623
        %v651 = vmul.f32 %v614, %v623
        %v652 = vmul.f32 %v615, %v623
        %v653 = vmul.f32 %v616, %v623
        %v654 = vmul.f32 %v617, %v623
        %v655 = vmul.f32 %v618, %v623
        %v656 = vadd.f32 %v555, %v624
        %v657 = vadd.f32 %v556, %v625
        %v658 = vadd.f32 %v557, %v626
        %v659 = vadd.f32 %v558, %v627
        %v660 = vadd.f32 %v559, %v628
        %v661 = vadd.f32 %v560, %v629
        %v662 = vadd.f32 %v561, %v630
        %v663 = vadd.f32 %v562, %v631
        %v664 = vadd.f32 %v563, %v632
        %v665 = vadd.f32 %v564, %v633
        %v666 = vadd.f32 %v565, %v634
        %v667 = vadd.f32 %v566, %v635
        %v668 = vadd.f32 %v567, %v636
        %v669 = vadd.f32 %v568, %v637
        %v670 = vadd.f32 %v569, %v638
        %v671 = vadd.f32 %v570, %v639
        %v672 = vadd.f32 %v571, %v640
        %v673 = vadd.f32 %v572, %v641
        %v674 = vadd.f32 %v573, %v642
        %v675 = vadd.f32 %v574, %v643
        %v676 = vadd.f32 %v575, %v644
        %v677 = vadd.f32 %v576, %v645
        %v678 = vadd.f32 %v577, %v646
        %v679 = vadd.f32 %v578, %v647
        %v680 = vadd.f32 %v579, %v648
        %v681 = vadd.f32 %v580, %v649
        %v682 = vadd.f32 %v581, %v650
        %v683 = vadd.f32 %v582, %v651
        %v684 = vadd.f32 %v583, %v652
        %v685 = vadd.f32 %v584, %v653
        %v686 = vadd.f32 %v585, %v654
        %v687 = vadd.f32 %v586, %v655
        %v688 = vld [vmem:[%s392 + $0x2] sm:$0xff]
        %v689 = vld [vmem:[%s392 + $0xa] sm:$0xff]
        %v690 = vld [vmem:[%s392 + $0x1a] sm:$0xff]
        %v691 = vld [vmem:[%s392 + $0x22] sm:$0xff]
        %v692 = vld [vmem:[%s392 + $0x32] sm:$0xff]
        %v693 = vld [vmem:[%s392 + $0x3a] sm:$0xff]
        %v694 = vld [vmem:[%s392 + $0x4a] sm:$0xff]
        %v695 = vld [vmem:[%s392 + $0x52] sm:$0xff]
        %v696 = vld [vmem:[%s392 + $0x62] sm:$0xff]
        %v697 = vld [vmem:[%s392 + $0x6a] sm:$0xff]
        %v698 = vld [vmem:[%s392 + $0x7a] sm:$0xff]
        %v699 = vld [vmem:[%s392 + $0x82] sm:$0xff]
        %v700 = vld [vmem:[%s392 + $0x92] sm:$0xff]
        %v701 = vld [vmem:[%s392 + $0x9a] sm:$0xff]
        %v702 = vld [vmem:[%s392 + $0xaa] sm:$0xff]
        %v703 = vld [vmem:[%s392 + $0xb2] sm:$0xff]
        %v704 = vld [vmem:[%s392 + $0xc2] sm:$0xff]
        %v705 = vld [vmem:[%s392 + $0xca] sm:$0xff]
        %v706 = vld [vmem:[%s392 + $0xda] sm:$0xff]
        %v707 = vld [vmem:[%s392 + $0xe2] sm:$0xff]
        %v708 = vld [vmem:[%s392 + $0xf2] sm:$0xff]
        %v709 = vld [vmem:[%s392 + $0xfa] sm:$0xff]
        %v710 = vld [vmem:[%s392 + $0x10a] sm:$0xff]
        %v711 = vld [vmem:[%s392 + $0x112] sm:$0xff]
        %v712 = vld [vmem:[%s392 + $0x122] sm:$0xff]
        %v713 = vld [vmem:[%s392 + $0x12a] sm:$0xff]
        %v714 = vld [vmem:[%s392 + $0x13a] sm:$0xff]
        %v715 = vld [vmem:[%s392 + $0x142] sm:$0xff]
        %v716 = vld [vmem:[%s392 + $0x152] sm:$0xff]
        %v717 = vld [vmem:[%s392 + $0x15a] sm:$0xff]
        %v718 = vld [vmem:[%s392 + $0x16a] sm:$0xff]
        %v719 = vld [vmem:[%s392 + $0x172] sm:$0xff]
        %v720 = vld [vmem:[#allocation6 + $0x2] sm:$0x1]
        %v721 = vlaneseq
        %v722 = vshrl.u32 %v721, 7
        %v723 = vsub.s32 0, %v722
        %v724 = vrot.slane %v720, %v723
        %v725 = vmul.f32 %v688, %v724
        %v726 = vmul.f32 %v689, %v724
        %v727 = vmul.f32 %v690, %v724
        %v728 = vmul.f32 %v691, %v724
        %v729 = vmul.f32 %v692, %v724
        %v730 = vmul.f32 %v693, %v724
        %v731 = vmul.f32 %v694, %v724
        %v732 = vmul.f32 %v695, %v724
        %v733 = vmul.f32 %v696, %v724
        %v734 = vmul.f32 %v697, %v724
        %v735 = vmul.f32 %v698, %v724
        %v736 = vmul.f32 %v699, %v724
        %v737 = vmul.f32 %v700, %v724
        %v738 = vmul.f32 %v701, %v724
        %v739 = vmul.f32 %v702, %v724
        %v740 = vmul.f32 %v703, %v724
        %v741 = vmul.f32 %v704, %v724
        %v742 = vmul.f32 %v705, %v724
        %v743 = vmul.f32 %v706, %v724
        %v744 = vmul.f32 %v707, %v724
        %v745 = vmul.f32 %v708, %v724
        %v746 = vmul.f32 %v709, %v724
        %v747 = vmul.f32 %v710, %v724
        %v748 = vmul.f32 %v711, %v724
        %v749 = vmul.f32 %v712, %v724
        %v750 = vmul.f32 %v713, %v724
        %v751 = vmul.f32 %v714, %v724
        %v752 = vmul.f32 %v715, %v724
        %v753 = vmul.f32 %v716, %v724
        %v754 = vmul.f32 %v717, %v724
        %v755 = vmul.f32 %v718, %v724
        %v756 = vmul.f32 %v719, %v724
        %v757 = vadd.f32 %v656, %v725
        %v758 = vadd.f32 %v657, %v726
        %v759 = vadd.f32 %v658, %v727
        %v760 = vadd.f32 %v659, %v728
        %v761 = vadd.f32 %v660, %v729
        %v762 = vadd.f32 %v661, %v730
        %v763 = vadd.f32 %v662, %v731
        %v764 = vadd.f32 %v663, %v732
        %v765 = vadd.f32 %v664, %v733
        %v766 = vadd.f32 %v665, %v734
        %v767 = vadd.f32 %v666, %v735
        %v768 = vadd.f32 %v667, %v736
        %v769 = vadd.f32 %v668, %v737
        %v770 = vadd.f32 %v669, %v738
        %v771 = vadd.f32 %v670, %v739
        %v772 = vadd.f32 %v671, %v740
        %v773 = vadd.f32 %v672, %v741
        %v774 = vadd.f32 %v673, %v742
        %v775 = vadd.f32 %v674, %v743
        %v776 = vadd.f32 %v675, %v744
        %v777 = vadd.f32 %v676, %v745
        %v778 = vadd.f32 %v677, %v746
        %v779 = vadd.f32 %v678, %v747
        %v780 = vadd.f32 %v679, %v748
        %v781 = vadd.f32 %v680, %v749
        %v782 = vadd.f32 %v681, %v750
        %v783 = vadd.f32 %v682, %v751
        %v784 = vadd.f32 %v683, %v752
        %v785 = vadd.f32 %v684, %v753
        %v786 = vadd.f32 %v685, %v754
        %v787 = vadd.f32 %v686, %v755
        %v788 = vadd.f32 %v687, %v756
        %s789 = scalar_lea.vmem %s392, 24 [#allocation3]
        %v790 = vld [vmem:[%s789] sm:$0xff]
        %v791 = vld [vmem:[%s789 + $0x8] sm:$0xff]
        %v792 = vld [vmem:[%s789 + $0x18] sm:$0xff]
        %v793 = vld [vmem:[%s789 + $0x20] sm:$0xff]
        %v794 = vld [vmem:[%s789 + $0x30] sm:$0xff]
        %v795 = vld [vmem:[%s789 + $0x38] sm:$0xff]
        %v796 = vld [vmem:[%s789 + $0x48] sm:$0xff]
        %v797 = vld [vmem:[%s789 + $0x50] sm:$0xff]
        %v798 = vld [vmem:[%s789 + $0x60] sm:$0xff]
        %v799 = vld [vmem:[%s789 + $0x68] sm:$0xff]
        %v800 = vld [vmem:[%s789 + $0x78] sm:$0xff]
        %v801 = vld [vmem:[%s789 + $0x80] sm:$0xff]
        %v802 = vld [vmem:[%s789 + $0x90] sm:$0xff]
        %v803 = vld [vmem:[%s789 + $0x98] sm:$0xff]
        %v804 = vld [vmem:[%s789 + $0xa8] sm:$0xff]
        %v805 = vld [vmem:[%s789 + $0xb0] sm:$0xff]
        %v806 = vld [vmem:[%s789 + $0xc0] sm:$0xff]
        %v807 = vld [vmem:[%s789 + $0xc8] sm:$0xff]
        %v808 = vld [vmem:[%s789 + $0xd8] sm:$0xff]
        %v809 = vld [vmem:[%s789 + $0xe0] sm:$0xff]
        %v810 = vld [vmem:[%s789 + $0xf0] sm:$0xff]
        %v811 = vld [vmem:[%s789 + $0xf8] sm:$0xff]
        %v812 = vld [vmem:[%s789 + $0x108] sm:$0xff]
        %v813 = vld [vmem:[%s789 + $0x110] sm:$0xff]
        %v814 = vld [vmem:[%s789 + $0x120] sm:$0xff]
        %v815 = vld [vmem:[%s789 + $0x128] sm:$0xff]
        %v816 = vld [vmem:[%s789 + $0x138] sm:$0xff]
        %v817 = vld [vmem:[%s789 + $0x140] sm:$0xff]
        %v818 = vld [vmem:[%s789 + $0x150] sm:$0xff]
        %v819 = vld [vmem:[%s789 + $0x158] sm:$0xff]
        %v820 = vld [vmem:[%s789 + $0x168] sm:$0xff]
        %v821 = vld [vmem:[%s789 + $0x170] sm:$0xff]
        %v822 = vld [vmem:[#allocation6 + $0x3] sm:$0x1]
        %v823 = vlaneseq
        %v824 = vshrl.u32 %v823, 7
        %v825 = vsub.s32 0, %v824
        %v826 = vrot.slane %v822, %v825
        %v827 = vmul.f32 %v790, %v826
        %v828 = vmul.f32 %v791, %v826
        %v829 = vmul.f32 %v792, %v826
        %v830 = vmul.f32 %v793, %v826
        %v831 = vmul.f32 %v794, %v826
        %v832 = vmul.f32 %v795, %v826
        %v833 = vmul.f32 %v796, %v826
        %v834 = vmul.f32 %v797, %v826
        %v835 = vmul.f32 %v798, %v826
        %v836 = vmul.f32 %v799, %v826
        %v837 = vmul.f32 %v800, %v826
        %v838 = vmul.f32 %v801, %v826
        %v839 = vmul.f32 %v802, %v826
        %v840 = vmul.f32 %v803, %v826
        %v841 = vmul.f32 %v804, %v826
        %v842 = vmul.f32 %v805, %v826
        %v843 = vmul.f32 %v806, %v826
        %v844 = vmul.f32 %v807, %v826
        %v845 = vmul.f32 %v808, %v826
        %v846 = vmul.f32 %v809, %v826
        %v847 = vmul.f32 %v810, %v826
        %v848 = vmul.f32 %v811, %v826
        %v849 = vmul.f32 %v812, %v826
        %v850 = vmul.f32 %v813, %v826
        %v851 = vmul.f32 %v814, %v826
        %v852 = vmul.f32 %v815, %v826
        %v853 = vmul.f32 %v816, %v826
        %v854 = vmul.f32 %v817, %v826
        %v855 = vmul.f32 %v818, %v826
        %v856 = vmul.f32 %v819, %v826
        %v857 = vmul.f32 %v820, %v826
        %v858 = vmul.f32 %v821, %v826
        %v859 = vadd.f32 %v757, %v827
        %v860 = vadd.f32 %v758, %v828
        %v861 = vadd.f32 %v759, %v829
        %v862 = vadd.f32 %v760, %v830
        %v863 = vadd.f32 %v761, %v831
        %v864 = vadd.f32 %v762, %v832
        %v865 = vadd.f32 %v763, %v833
        %v866 = vadd.f32 %v764, %v834
        %v867 = vadd.f32 %v765, %v835
        %v868 = vadd.f32 %v766, %v836
        %v869 = vadd.f32 %v767, %v837
        %v870 = vadd.f32 %v768, %v838
        %v871 = vadd.f32 %v769, %v839
        %v872 = vadd.f32 %v770, %v840
        %v873 = vadd.f32 %v771, %v841
        %v874 = vadd.f32 %v772, %v842
        %v875 = vadd.f32 %v773, %v843
        %v876 = vadd.f32 %v774, %v844
        %v877 = vadd.f32 %v775, %v845
        %v878 = vadd.f32 %v776, %v846
        %v879 = vadd.f32 %v777, %v847
        %v880 = vadd.f32 %v778, %v848
        %v881 = vadd.f32 %v779, %v849
        %v882 = vadd.f32 %v780, %v850
        %v883 = vadd.f32 %v781, %v851
        %v884 = vadd.f32 %v782, %v852
        %v885 = vadd.f32 %v783, %v853
        %v886 = vadd.f32 %v784, %v854
        %v887 = vadd.f32 %v785, %v855
        %v888 = vadd.f32 %v786, %v856
        %v889 = vadd.f32 %v787, %v857
        %v890 = vadd.f32 %v788, %v858
        %v891 = vld [vmem:[%s789 + $0x1] sm:$0xff]
        %v892 = vld [vmem:[%s789 + $0x9] sm:$0xff]
        %v893 = vld [vmem:[%s789 + $0x19] sm:$0xff]
        %v894 = vld [vmem:[%s789 + $0x21] sm:$0xff]
        %v895 = vld [vmem:[%s789 + $0x31] sm:$0xff]
        %v896 = vld [vmem:[%s789 + $0x39] sm:$0xff]
        %v897 = vld [vmem:[%s789 + $0x49] sm:$0xff]
        %v898 = vld [vmem:[%s789 + $0x51] sm:$0xff]
        %v899 = vld [vmem:[%s789 + $0x61] sm:$0xff]
        %v900 = vld [vmem:[%s789 + $0x69] sm:$0xff]
        %v901 = vld [vmem:[%s789 + $0x79] sm:$0xff]
        %v902 = vld [vmem:[%s789 + $0x81] sm:$0xff]
        %v903 = vld [vmem:[%s789 + $0x91] sm:$0xff]
        %v904 = vld [vmem:[%s789 + $0x99] sm:$0xff]
        %v905 = vld [vmem:[%s789 + $0xa9] sm:$0xff]
        %v906 = vld [vmem:[%s789 + $0xb1] sm:$0xff]
        %v907 = vld [vmem:[%s789 + $0xc1] sm:$0xff]
        %v908 = vld [vmem:[%s789 + $0xc9] sm:$0xff]
        %v909 = vld [vmem:[%s789 + $0xd9] sm:$0xff]
        %v910 = vld [vmem:[%s789 + $0xe1] sm:$0xff]
        %v911 = vld [vmem:[%s789 + $0xf1] sm:$0xff]
        %v912 = vld [vmem:[%s789 + $0xf9] sm:$0xff]
        %v913 = vld [vmem:[%s789 + $0x109] sm:$0xff]
        %v914 = vld [vmem:[%s789 + $0x111] sm:$0xff]
        %v915 = vld [vmem:[%s789 + $0x121] sm:$0xff]
        %v916 = vld [vmem:[%s789 + $0x129] sm:$0xff]
        %v917 = vld [vmem:[%s789 + $0x139] sm:$0xff]
        %v918 = vld [vmem:[%s789 + $0x141] sm:$0xff]
        %v919 = vld [vmem:[%s789 + $0x151] sm:$0xff]
        %v920 = vld [vmem:[%s789 + $0x159] sm:$0xff]
        %v921 = vld [vmem:[%s789 + $0x169] sm:$0xff]
        %v922 = vld [vmem:[%s789 + $0x171] sm:$0xff]
        %v923 = vld [vmem:[#allocation6 + $0x4] sm:$0x1]
        %v924 = vlaneseq
        %v925 = vshrl.u32 %v924, 7
        %v926 = vsub.s32 0, %v925
        %v927 = vrot.slane %v923, %v926
        %v928 = vmul.f32 %v891, %v927
        %v929 = vmul.f32 %v892, %v927
        %v930 = vmul.f32 %v893, %v927
        %v931 = vmul.f32 %v894, %v927
        %v932 = vmul.f32 %v895, %v927
        %v933 = vmul.f32 %v896, %v927
        %v934 = vmul.f32 %v897, %v927
        %v935 = vmul.f32 %v898, %v927
        %v936 = vmul.f32 %v899, %v927
        %v937 = vmul.f32 %v900, %v927
        %v938 = vmul.f32 %v901, %v927
        %v939 = vmul.f32 %v902, %v927
        %v940 = vmul.f32 %v903, %v927
        %v941 = vmul.f32 %v904, %v927
        %v942 = vmul.f32 %v905, %v927
        %v943 = vmul.f32 %v906, %v927
        %v944 = vmul.f32 %v907, %v927
        %v945 = vmul.f32 %v908, %v927
        %v946 = vmul.f32 %v909, %v927
        %v947 = vmul.f32 %v910, %v927
        %v948 = vmul.f32 %v911, %v927
        %v949 = vmul.f32 %v912, %v927
        %v950 = vmul.f32 %v913, %v927
        %v951 = vmul.f32 %v914, %v927
        %v952 = vmul.f32 %v915, %v927
        %v953 = vmul.f32 %v916, %v927
        %v954 = vmul.f32 %v917, %v927
        %v955 = vmul.f32 %v918, %v927
        %v956 = vmul.f32 %v919, %v927
        %v957 = vmul.f32 %v920, %v927
        %v958 = vmul.f32 %v921, %v927
        %v959 = vmul.f32 %v922, %v927
        %v960 = vadd.f32 %v859, %v928
        %v961 = vadd.f32 %v860, %v929
        %v962 = vadd.f32 %v861, %v930
        %v963 = vadd.f32 %v862, %v931
        %v964 = vadd.f32 %v863, %v932
        %v965 = vadd.f32 %v864, %v933
        %v966 = vadd.f32 %v865, %v934
        %v967 = vadd.f32 %v866, %v935
        %v968 = vadd.f32 %v867, %v936
        %v969 = vadd.f32 %v868, %v937
        %v970 = vadd.f32 %v869, %v938
        %v971 = vadd.f32 %v870, %v939
        %v972 = vadd.f32 %v871, %v940
        %v973 = vadd.f32 %v872, %v941
        %v974 = vadd.f32 %v873, %v942
        %v975 = vadd.f32 %v874, %v943
        %v976 = vadd.f32 %v875, %v944
        %v977 = vadd.f32 %v876, %v945
        %v978 = vadd.f32 %v877, %v946
        %v979 = vadd.f32 %v878, %v947
        %v980 = vadd.f32 %v879, %v948
        %v981 = vadd.f32 %v880, %v949
        %v982 = vadd.f32 %v881, %v950
        %v983 = vadd.f32 %v882, %v951
        %v984 = vadd.f32 %v883, %v952
        %v985 = vadd.f32 %v884, %v953
        %v986 = vadd.f32 %v885, %v954
        %v987 = vadd.f32 %v886, %v955
        %v988 = vadd.f32 %v887, %v956
        %v989 = vadd.f32 %v888, %v957
        %v990 = vadd.f32 %v889, %v958
        %v991 = vadd.f32 %v890, %v959
        %v992 = vld [vmem:[%s789 + $0x2] sm:$0xff]
        %v993 = vld [vmem:[%s789 + $0xa] sm:$0xff]
        %v994 = vld [vmem:[%s789 + $0x1a] sm:$0xff]
        %v995 = vld [vmem:[%s789 + $0x22] sm:$0xff]
        %v996 = vld [vmem:[%s789 + $0x32] sm:$0xff]
        %v997 = vld [vmem:[%s789 + $0x3a] sm:$0xff]
        %v998 = vld [vmem:[%s789 + $0x4a] sm:$0xff]
        %v999 = vld [vmem:[%s789 + $0x52] sm:$0xff]
        %v1000 = vld [vmem:[%s789 + $0x62] sm:$0xff]
        %v1001 = vld [vmem:[%s789 + $0x6a] sm:$0xff]
        %v1002 = vld [vmem:[%s789 + $0x7a] sm:$0xff]
        %v1003 = vld [vmem:[%s789 + $0x82] sm:$0xff]
        %v1004 = vld [vmem:[%s789 + $0x92] sm:$0xff]
        %v1005 = vld [vmem:[%s789 + $0x9a] sm:$0xff]
        %v1006 = vld [vmem:[%s789 + $0xaa] sm:$0xff]
        %v1007 = vld [vmem:[%s789 + $0xb2] sm:$0xff]
        %v1008 = vld [vmem:[%s789 + $0xc2] sm:$0xff]
        %v1009 = vld [vmem:[%s789 + $0xca] sm:$0xff]
        %v1010 = vld [vmem:[%s789 + $0xda] sm:$0xff]
        %v1011 = vld [vmem:[%s789 + $0xe2] sm:$0xff]
        %v1012 = vld [vmem:[%s789 + $0xf2] sm:$0xff]
        %v1013 = vld [vmem:[%s789 + $0xfa] sm:$0xff]
        %v1014 = vld [vmem:[%s789 + $0x10a] sm:$0xff]
        %v1015 = vld [vmem:[%s789 + $0x112] sm:$0xff]
        %v1016 = vld [vmem:[%s789 + $0x122] sm:$0xff]
        %v1017 = vld [vmem:[%s789 + $0x12a] sm:$0xff]
        %v1018 = vld [vmem:[%s789 + $0x13a] sm:$0xff]
        %v1019 = vld [vmem:[%s789 + $0x142] sm:$0xff]
        %v1020 = vld [vmem:[%s789 + $0x152] sm:$0xff]
        %v1021 = vld [vmem:[%s789 + $0x15a] sm:$0xff]
        %v1022 = vld [vmem:[%s789 + $0x16a] sm:$0xff]
        %v1023 = vld [vmem:[%s789 + $0x172] sm:$0xff]
        %v1024 = vld [vmem:[#allocation6 + $0x5] sm:$0x1]
        %v1025 = vlaneseq
        %v1026 = vshrl.u32 %v1025, 7
        %v1027 = vsub.s32 0, %v1026
        %v1028 = vrot.slane %v1024, %v1027
        %v1029 = vmul.f32 %v992, %v1028
        %v1030 = vmul.f32 %v993, %v1028
        %v1031 = vmul.f32 %v994, %v1028
        %v1032 = vmul.f32 %v995, %v1028
        %v1033 = vmul.f32 %v996, %v1028
        %v1034 = vmul.f32 %v997, %v1028
        %v1035 = vmul.f32 %v998, %v1028
        %v1036 = vmul.f32 %v999, %v1028
        %v1037 = vmul.f32 %v1000, %v1028
        %v1038 = vmul.f32 %v1001, %v1028
        %v1039 = vmul.f32 %v1002, %v1028
        %v1040 = vmul.f32 %v1003, %v1028
        %v1041 = vmul.f32 %v1004, %v1028
        %v1042 = vmul.f32 %v1005, %v1028
        %v1043 = vmul.f32 %v1006, %v1028
        %v1044 = vmul.f32 %v1007, %v1028
        %v1045 = vmul.f32 %v1008, %v1028
        %v1046 = vmul.f32 %v1009, %v1028
        %v1047 = vmul.f32 %v1010, %v1028
        %v1048 = vmul.f32 %v1011, %v1028
        %v1049 = vmul.f32 %v1012, %v1028
        %v1050 = vmul.f32 %v1013, %v1028
        %v1051 = vmul.f32 %v1014, %v1028
        %v1052 = vmul.f32 %v1015, %v1028
        %v1053 = vmul.f32 %v1016, %v1028
        %v1054 = vmul.f32 %v1017, %v1028
        %v1055 = vmul.f32 %v1018, %v1028
        %v1056 = vmul.f32 %v1019, %v1028
        %v1057 = vmul.f32 %v1020, %v1028
        %v1058 = vmul.f32 %v1021, %v1028
        %v1059 = vmul.f32 %v1022, %v1028
        %v1060 = vmul.f32 %v1023, %v1028
        %v1061 = vadd.f32 %v960, %v1029
        %v1062 = vadd.f32 %v961, %v1030
        %v1063 = vadd.f32 %v962, %v1031
        %v1064 = vadd.f32 %v963, %v1032
        %v1065 = vadd.f32 %v964, %v1033
        %v1066 = vadd.f32 %v965, %v1034
        %v1067 = vadd.f32 %v966, %v1035
        %v1068 = vadd.f32 %v967, %v1036
        %v1069 = vadd.f32 %v968, %v1037
        %v1070 = vadd.f32 %v969, %v1038
        %v1071 = vadd.f32 %v970, %v1039
        %v1072 = vadd.f32 %v971, %v1040
        %v1073 = vadd.f32 %v972, %v1041
        %v1074 = vadd.f32 %v973, %v1042
        %v1075 = vadd.f32 %v974, %v1043
        %v1076 = vadd.f32 %v975, %v1044
        %v1077 = vadd.f32 %v976, %v1045
        %v1078 = vadd.f32 %v977, %v1046
        %v1079 = vadd.f32 %v978, %v1047
        %v1080 = vadd.f32 %v979, %v1048
        %v1081 = vadd.f32 %v980, %v1049
        %v1082 = vadd.f32 %v981, %v1050
        %v1083 = vadd.f32 %v982, %v1051
        %v1084 = vadd.f32 %v983, %v1052
        %v1085 = vadd.f32 %v984, %v1053
        %v1086 = vadd.f32 %v985, %v1054
        %v1087 = vadd.f32 %v986, %v1055
        %v1088 = vadd.f32 %v987, %v1056
        %v1089 = vadd.f32 %v988, %v1057
        %v1090 = vadd.f32 %v989, %v1058
        %v1091 = vadd.f32 %v990, %v1059
        %v1092 = vadd.f32 %v991, %v1060
        %s1093 = scalar_lea.vmem %s392, 48 [#allocation3]
        %v1094 = vld [vmem:[%s1093] sm:$0xff]
        %v1095 = vld [vmem:[%s1093 + $0x8] sm:$0xff]
        %v1096 = vld [vmem:[%s1093 + $0x18] sm:$0xff]
        %v1097 = vld [vmem:[%s1093 + $0x20] sm:$0xff]
        %v1098 = vld [vmem:[%s1093 + $0x30] sm:$0xff]
        %v1099 = vld [vmem:[%s1093 + $0x38] sm:$0xff]
        %v1100 = vld [vmem:[%s1093 + $0x48] sm:$0xff]
        %v1101 = vld [vmem:[%s1093 + $0x50] sm:$0xff]
        %v1102 = vld [vmem:[%s1093 + $0x60] sm:$0xff]
        %v1103 = vld [vmem:[%s1093 + $0x68] sm:$0xff]
        %v1104 = vld [vmem:[%s1093 + $0x78] sm:$0xff]
        %v1105 = vld [vmem:[%s1093 + $0x80] sm:$0xff]
        %v1106 = vld [vmem:[%s1093 + $0x90] sm:$0xff]
        %v1107 = vld [vmem:[%s1093 + $0x98] sm:$0xff]
        %v1108 = vld [vmem:[%s1093 + $0xa8] sm:$0xff]
        %v1109 = vld [vmem:[%s1093 + $0xb0] sm:$0xff]
        %v1110 = vld [vmem:[%s1093 + $0xc0] sm:$0xff]
        %v1111 = vld [vmem:[%s1093 + $0xc8] sm:$0xff]
        %v1112 = vld [vmem:[%s1093 + $0xd8] sm:$0xff]
        %v1113 = vld [vmem:[%s1093 + $0xe0] sm:$0xff]
        %v1114 = vld [vmem:[%s1093 + $0xf0] sm:$0xff]
        %v1115 = vld [vmem:[%s1093 + $0xf8] sm:$0xff]
        %v1116 = vld [vmem:[%s1093 + $0x108] sm:$0xff]
        %v1117 = vld [vmem:[%s1093 + $0x110] sm:$0xff]
        %v1118 = vld [vmem:[%s1093 + $0x120] sm:$0xff]
        %v1119 = vld [vmem:[%s1093 + $0x128] sm:$0xff]
        %v1120 = vld [vmem:[%s1093 + $0x138] sm:$0xff]
        %v1121 = vld [vmem:[%s1093 + $0x140] sm:$0xff]
        %v1122 = vld [vmem:[%s1093 + $0x150] sm:$0xff]
        %v1123 = vld [vmem:[%s1093 + $0x158] sm:$0xff]
        %v1124 = vld [vmem:[%s1093 + $0x168] sm:$0xff]
        %v1125 = vld [vmem:[%s1093 + $0x170] sm:$0xff]
        %v1126 = vld [vmem:[#allocation6 + $0x6] sm:$0x1]
        %v1127 = vlaneseq
        %v1128 = vshrl.u32 %v1127, 7
        %v1129 = vsub.s32 0, %v1128
        %v1130 = vrot.slane %v1126, %v1129
        %v1131 = vmul.f32 %v1094, %v1130
        %v1132 = vmul.f32 %v1095, %v1130
        %v1133 = vmul.f32 %v1096, %v1130
        %v1134 = vmul.f32 %v1097, %v1130
        %v1135 = vmul.f32 %v1098, %v1130
        %v1136 = vmul.f32 %v1099, %v1130
        %v1137 = vmul.f32 %v1100, %v1130
        %v1138 = vmul.f32 %v1101, %v1130
        %v1139 = vmul.f32 %v1102, %v1130
        %v1140 = vmul.f32 %v1103, %v1130
        %v1141 = vmul.f32 %v1104, %v1130
        %v1142 = vmul.f32 %v1105, %v1130
        %v1143 = vmul.f32 %v1106, %v1130
        %v1144 = vmul.f32 %v1107, %v1130
        %v1145 = vmul.f32 %v1108, %v1130
        %v1146 = vmul.f32 %v1109, %v1130
        %v1147 = vmul.f32 %v1110, %v1130
        %v1148 = vmul.f32 %v1111, %v1130
        %v1149 = vmul.f32 %v1112, %v1130
        %v1150 = vmul.f32 %v1113, %v1130
        %v1151 = vmul.f32 %v1114, %v1130
        %v1152 = vmul.f32 %v1115, %v1130
        %v1153 = vmul.f32 %v1116, %v1130
        %v1154 = vmul.f32 %v1117, %v1130
        %v1155 = vmul.f32 %v1118, %v1130
        %v1156 = vmul.f32 %v1119, %v1130
        %v1157 = vmul.f32 %v1120, %v1130
        %v1158 = vmul.f32 %v1121, %v1130
        %v1159 = vmul.f32 %v1122, %v1130
        %v1160 = vmul.f32 %v1123, %v1130
        %v1161 = vmul.f32 %v1124, %v1130
        %v1162 = vmul.f32 %v1125, %v1130
        %v1163 = vadd.f32 %v1061, %v1131
        %v1164 = vadd.f32 %v1062, %v1132
        %v1165 = vadd.f32 %v1063, %v1133
        %v1166 = vadd.f32 %v1064, %v1134
        %v1167 = vadd.f32 %v1065, %v1135
        %v1168 = vadd.f32 %v1066, %v1136
        %v1169 = vadd.f32 %v1067, %v1137
        %v1170 = vadd.f32 %v1068, %v1138
        %v1171 = vadd.f32 %v1069, %v1139
        %v1172 = vadd.f32 %v1070, %v1140
        %v1173 = vadd.f32 %v1071, %v1141
        %v1174 = vadd.f32 %v1072, %v1142
        %v1175 = vadd.f32 %v1073, %v1143
        %v1176 = vadd.f32 %v1074, %v1144
        %v1177 = vadd.f32 %v1075, %v1145
        %v1178 = vadd.f32 %v1076, %v1146
        %v1179 = vadd.f32 %v1077, %v1147
        %v1180 = vadd.f32 %v1078, %v1148
        %v1181 = vadd.f32 %v1079, %v1149
        %v1182 = vadd.f32 %v1080, %v1150
        %v1183 = vadd.f32 %v1081, %v1151
        %v1184 = vadd.f32 %v1082, %v1152
        %v1185 = vadd.f32 %v1083, %v1153
        %v1186 = vadd.f32 %v1084, %v1154
        %v1187 = vadd.f32 %v1085, %v1155
        %v1188 = vadd.f32 %v1086, %v1156
        %v1189 = vadd.f32 %v1087, %v1157
        %v1190 = vadd.f32 %v1088, %v1158
        %v1191 = vadd.f32 %v1089, %v1159
        %v1192 = vadd.f32 %v1090, %v1160
        %v1193 = vadd.f32 %v1091, %v1161
        %v1194 = vadd.f32 %v1092, %v1162
        %v1195 = vld [vmem:[%s1093 + $0x1] sm:$0xff]
        %v1196 = vld [vmem:[%s1093 + $0x9] sm:$0xff]
        %v1197 = vld [vmem:[%s1093 + $0x19] sm:$0xff]
        %v1198 = vld [vmem:[%s1093 + $0x21] sm:$0xff]
        %v1199 = vld [vmem:[%s1093 + $0x31] sm:$0xff]
        %v1200 = vld [vmem:[%s1093 + $0x39] sm:$0xff]
        %v1201 = vld [vmem:[%s1093 + $0x49] sm:$0xff]
        %v1202 = vld [vmem:[%s1093 + $0x51] sm:$0xff]
        %v1203 = vld [vmem:[%s1093 + $0x61] sm:$0xff]
        %v1204 = vld [vmem:[%s1093 + $0x69] sm:$0xff]
        %v1205 = vld [vmem:[%s1093 + $0x79] sm:$0xff]
        %v1206 = vld [vmem:[%s1093 + $0x81] sm:$0xff]
        %v1207 = vld [vmem:[%s1093 + $0x91] sm:$0xff]
        %v1208 = vld [vmem:[%s1093 + $0x99] sm:$0xff]
        %v1209 = vld [vmem:[%s1093 + $0xa9] sm:$0xff]
        %v1210 = vld [vmem:[%s1093 + $0xb1] sm:$0xff]
        %v1211 = vld [vmem:[%s1093 + $0xc1] sm:$0xff]
        %v1212 = vld [vmem:[%s1093 + $0xc9] sm:$0xff]
        %v1213 = vld [vmem:[%s1093 + $0xd9] sm:$0xff]
        %v1214 = vld [vmem:[%s1093 + $0xe1] sm:$0xff]
        %v1215 = vld [vmem:[%s1093 + $0xf1] sm:$0xff]
        %v1216 = vld [vmem:[%s1093 + $0xf9] sm:$0xff]
        %v1217 = vld [vmem:[%s1093 + $0x109] sm:$0xff]
        %v1218 = vld [vmem:[%s1093 + $0x111] sm:$0xff]
        %v1219 = vld [vmem:[%s1093 + $0x121] sm:$0xff]
        %v1220 = vld [vmem:[%s1093 + $0x129] sm:$0xff]
        %v1221 = vld [vmem:[%s1093 + $0x139] sm:$0xff]
        %v1222 = vld [vmem:[%s1093 + $0x141] sm:$0xff]
        %v1223 = vld [vmem:[%s1093 + $0x151] sm:$0xff]
        %v1224 = vld [vmem:[%s1093 + $0x159] sm:$0xff]
        %v1225 = vld [vmem:[%s1093 + $0x169] sm:$0xff]
        %v1226 = vld [vmem:[%s1093 + $0x171] sm:$0xff]
        %v1227 = vld [vmem:[#allocation6 + $0x7] sm:$0x1]
        %v1228 = vlaneseq
        %v1229 = vshrl.u32 %v1228, 7
        %v1230 = vsub.s32 0, %v1229
        %v1231 = vrot.slane %v1227, %v1230
        %v1232 = vmul.f32 %v1195, %v1231
        %v1233 = vmul.f32 %v1196, %v1231
        %v1234 = vmul.f32 %v1197, %v1231
        %v1235 = vmul.f32 %v1198, %v1231
        %v1236 = vmul.f32 %v1199, %v1231
        %v1237 = vmul.f32 %v1200, %v1231
        %v1238 = vmul.f32 %v1201, %v1231
        %v1239 = vmul.f32 %v1202, %v1231
        %v1240 = vmul.f32 %v1203, %v1231
        %v1241 = vmul.f32 %v1204, %v1231
        %v1242 = vmul.f32 %v1205, %v1231
        %v1243 = vmul.f32 %v1206, %v1231
        %v1244 = vmul.f32 %v1207, %v1231
        %v1245 = vmul.f32 %v1208, %v1231
        %v1246 = vmul.f32 %v1209, %v1231
        %v1247 = vmul.f32 %v1210, %v1231
        %v1248 = vmul.f32 %v1211, %v1231
        %v1249 = vmul.f32 %v1212, %v1231
        %v1250 = vmul.f32 %v1213, %v1231
        %v1251 = vmul.f32 %v1214, %v1231
        %v1252 = vmul.f32 %v1215, %v1231
        %v1253 = vmul.f32 %v1216, %v1231
        %v1254 = vmul.f32 %v1217, %v1231
        %v1255 = vmul.f32 %v1218, %v1231
        %v1256 = vmul.f32 %v1219, %v1231
        %v1257 = vmul.f32 %v1220, %v1231
        %v1258 = vmul.f32 %v1221, %v1231
        %v1259 = vmul.f32 %v1222, %v1231
        %v1260 = vmul.f32 %v1223, %v1231
        %v1261 = vmul.f32 %v1224, %v1231
        %v1262 = vmul.f32 %v1225, %v1231
        %v1263 = vmul.f32 %v1226, %v1231
        %v1264 = vadd.f32 %v1163, %v1232
        %v1265 = vadd.f32 %v1164, %v1233
        %v1266 = vadd.f32 %v1165, %v1234
        %v1267 = vadd.f32 %v1166, %v1235
        %v1268 = vadd.f32 %v1167, %v1236
        %v1269 = vadd.f32 %v1168, %v1237
        %v1270 = vadd.f32 %v1169, %v1238
        %v1271 = vadd.f32 %v1170, %v1239
        %v1272 = vadd.f32 %v1171, %v1240
        %v1273 = vadd.f32 %v1172, %v1241
        %v1274 = vadd.f32 %v1173, %v1242
        %v1275 = vadd.f32 %v1174, %v1243
        %v1276 = vadd.f32 %v1175, %v1244
        %v1277 = vadd.f32 %v1176, %v1245
        %v1278 = vadd.f32 %v1177, %v1246
        %v1279 = vadd.f32 %v1178, %v1247
        %v1280 = vadd.f32 %v1179, %v1248
        %v1281 = vadd.f32 %v1180, %v1249
        %v1282 = vadd.f32 %v1181, %v1250
        %v1283 = vadd.f32 %v1182, %v1251
        %v1284 = vadd.f32 %v1183, %v1252
        %v1285 = vadd.f32 %v1184, %v1253
        %v1286 = vadd.f32 %v1185, %v1254
        %v1287 = vadd.f32 %v1186, %v1255
        %v1288 = vadd.f32 %v1187, %v1256
        %v1289 = vadd.f32 %v1188, %v1257
        %v1290 = vadd.f32 %v1189, %v1258
        %v1291 = vadd.f32 %v1190, %v1259
        %v1292 = vadd.f32 %v1191, %v1260
        %v1293 = vadd.f32 %v1192, %v1261
        %v1294 = vadd.f32 %v1193, %v1262
        %v1295 = vadd.f32 %v1194, %v1263
        %v1296 = vld [vmem:[%s1093 + $0x2] sm:$0xff]
        %v1297 = vld [vmem:[%s1093 + $0xa] sm:$0xff]
        %v1298 = vld [vmem:[%s1093 + $0x1a] sm:$0xff]
        %v1299 = vld [vmem:[%s1093 + $0x22] sm:$0xff]
        %v1300 = vld [vmem:[%s1093 + $0x32] sm:$0xff]
        %v1301 = vld [vmem:[%s1093 + $0x3a] sm:$0xff]
        %v1302 = vld [vmem:[%s1093 + $0x4a] sm:$0xff]
        %v1303 = vld [vmem:[%s1093 + $0x52] sm:$0xff]
        %v1304 = vld [vmem:[%s1093 + $0x62] sm:$0xff]
        %v1305 = vld [vmem:[%s1093 + $0x6a] sm:$0xff]
        %v1306 = vld [vmem:[%s1093 + $0x7a] sm:$0xff]
        %v1307 = vld [vmem:[%s1093 + $0x82] sm:$0xff]
        %v1308 = vld [vmem:[%s1093 + $0x92] sm:$0xff]
        %v1309 = vld [vmem:[%s1093 + $0x9a] sm:$0xff]
        %v1310 = vld [vmem:[%s1093 + $0xaa] sm:$0xff]
        %v1311 = vld [vmem:[%s1093 + $0xb2] sm:$0xff]
        %v1312 = vld [vmem:[%s1093 + $0xc2] sm:$0xff]
        %v1313 = vld [vmem:[%s1093 + $0xca] sm:$0xff]
        %v1314 = vld [vmem:[%s1093 + $0xda] sm:$0xff]
        %v1315 = vld [vmem:[%s1093 + $0xe2] sm:$0xff]
        %v1316 = vld [vmem:[%s1093 + $0xf2] sm:$0xff]
        %v1317 = vld [vmem:[%s1093 + $0xfa] sm:$0xff]
        %v1318 = vld [vmem:[%s1093 + $0x10a] sm:$0xff]
        %v1319 = vld [vmem:[%s1093 + $0x112] sm:$0xff]
        %v1320 = vld [vmem:[%s1093 + $0x122] sm:$0xff]
        %v1321 = vld [vmem:[%s1093 + $0x12a] sm:$0xff]
        %v1322 = vld [vmem:[%s1093 + $0x13a] sm:$0xff]
        %v1323 = vld [vmem:[%s1093 + $0x142] sm:$0xff]
        %v1324 = vld [vmem:[%s1093 + $0x152] sm:$0xff]
        %v1325 = vld [vmem:[%s1093 + $0x15a] sm:$0xff]
        %v1326 = vld [vmem:[%s1093 + $0x16a] sm:$0xff]
        %v1327 = vld [vmem:[%s1093 + $0x172] sm:$0xff]
        %v1328 = vld [vmem:[#allocation6 + $0x8] sm:$0x1]
        %v1329 = vlaneseq
        %v1330 = vshrl.u32 %v1329, 7
        %v1331 = vsub.s32 0, %v1330
        %v1332 = vrot.slane %v1328, %v1331
        %v1333 = vmul.f32 %v1296, %v1332
        %v1334 = vmul.f32 %v1297, %v1332
        %v1335 = vmul.f32 %v1298, %v1332
        %v1336 = vmul.f32 %v1299, %v1332
        %v1337 = vmul.f32 %v1300, %v1332
        %v1338 = vmul.f32 %v1301, %v1332
        %v1339 = vmul.f32 %v1302, %v1332
        %v1340 = vmul.f32 %v1303, %v1332
        %v1341 = vmul.f32 %v1304, %v1332
        %v1342 = vmul.f32 %v1305, %v1332
        %v1343 = vmul.f32 %v1306, %v1332
        %v1344 = vmul.f32 %v1307, %v1332
        %v1345 = vmul.f32 %v1308, %v1332
        %v1346 = vmul.f32 %v1309, %v1332
        %v1347 = vmul.f32 %v1310, %v1332
        %v1348 = vmul.f32 %v1311, %v1332
        %v1349 = vmul.f32 %v1312, %v1332
        %v1350 = vmul.f32 %v1313, %v1332
        %v1351 = vmul.f32 %v1314, %v1332
        %v1352 = vmul.f32 %v1315, %v1332
        %v1353 = vmul.f32 %v1316, %v1332
        %v1354 = vmul.f32 %v1317, %v1332
        %v1355 = vmul.f32 %v1318, %v1332
        %v1356 = vmul.f32 %v1319, %v1332
        %v1357 = vmul.f32 %v1320, %v1332
        %v1358 = vmul.f32 %v1321, %v1332
        %v1359 = vmul.f32 %v1322, %v1332
        %v1360 = vmul.f32 %v1323, %v1332
        %v1361 = vmul.f32 %v1324, %v1332
        %v1362 = vmul.f32 %v1325, %v1332
        %v1363 = vmul.f32 %v1326, %v1332
        %v1364 = vmul.f32 %v1327, %v1332
        %v1365 = vadd.f32 %v1264, %v1333
        %v1366 = vadd.f32 %v1265, %v1334
        %v1367 = vadd.f32 %v1266, %v1335
        %v1368 = vadd.f32 %v1267, %v1336
        %v1369 = vadd.f32 %v1268, %v1337
        %v1370 = vadd.f32 %v1269, %v1338
        %v1371 = vadd.f32 %v1270, %v1339
        %v1372 = vadd.f32 %v1271, %v1340
        %v1373 = vadd.f32 %v1272, %v1341
        %v1374 = vadd.f32 %v1273, %v1342
        %v1375 = vadd.f32 %v1274, %v1343
        %v1376 = vadd.f32 %v1275, %v1344
        %v1377 = vadd.f32 %v1276, %v1345
        %v1378 = vadd.f32 %v1277, %v1346
        %v1379 = vadd.f32 %v1278, %v1347
        %v1380 = vadd.f32 %v1279, %v1348
        %v1381 = vadd.f32 %v1280, %v1349
        %v1382 = vadd.f32 %v1281, %v1350
        %v1383 = vadd.f32 %v1282, %v1351
        %v1384 = vadd.f32 %v1283, %v1352
        %v1385 = vadd.f32 %v1284, %v1353
        %v1386 = vadd.f32 %v1285, %v1354
        %v1387 = vadd.f32 %v1286, %v1355
        %v1388 = vadd.f32 %v1287, %v1356
        %v1389 = vadd.f32 %v1288, %v1357
        %v1390 = vadd.f32 %v1289, %v1358
        %v1391 = vadd.f32 %v1290, %v1359
        %v1392 = vadd.f32 %v1291, %v1360
        %v1393 = vadd.f32 %v1292, %v1361
        %v1394 = vadd.f32 %v1293, %v1362
        %v1395 = vadd.f32 %v1294, %v1363
        %v1396 = vadd.f32 %v1295, %v1364
        %v1397 = vld [vmem:[#allocation8] sm:$0x1]
        %v1399 = vlaneseq
        %v1400 = vshrl.u32 %v1399, 7
        %v1401 = vsub.s32 0, %v1400
        %v1402 = vrot.slane %v1397, %v1401
        %v1404 = vadd.f32 %v1365, %v1402
        %v1405 = vadd.f32 %v1366, %v1402
        %v1406 = vadd.f32 %v1367, %v1402
        %v1407 = vadd.f32 %v1368, %v1402
        %v1408 = vadd.f32 %v1369, %v1402
        %v1409 = vadd.f32 %v1370, %v1402
        %v1410 = vadd.f32 %v1371, %v1402
        %v1411 = vadd.f32 %v1372, %v1402
        %v1412 = vadd.f32 %v1373, %v1402
        %v1413 = vadd.f32 %v1374, %v1402
        %v1414 = vadd.f32 %v1375, %v1402
        %v1415 = vadd.f32 %v1376, %v1402
        %v1416 = vadd.f32 %v1377, %v1402
        %v1417 = vadd.f32 %v1378, %v1402
        %v1418 = vadd.f32 %v1379, %v1402
        %v1419 = vadd.f32 %v1380, %v1402
        %v1420 = vadd.f32 %v1381, %v1402
        %v1421 = vadd.f32 %v1382, %v1402
        %v1422 = vadd.f32 %v1383, %v1402
        %v1423 = vadd.f32 %v1384, %v1402
        %v1424 = vadd.f32 %v1385, %v1402
        %v1425 = vadd.f32 %v1386, %v1402
        %v1426 = vadd.f32 %v1387, %v1402
        %v1427 = vadd.f32 %v1388, %v1402
        %v1428 = vadd.f32 %v1389, %v1402
        %v1429 = vadd.f32 %v1390, %v1402
        %v1430 = vadd.f32 %v1391, %v1402
        %v1431 = vadd.f32 %v1392, %v1402
        %v1432 = vadd.f32 %v1393, %v1402
        %v1433 = vadd.f32 %v1394, %v1402
        %v1434 = vadd.f32 %v1395, %v1402
        %v1435 = vadd.f32 %v1396, %v1402
        %v1436 = vmax.f32 %v1404, 0.0
        %v1437 = vmax.f32 %v1405, 0.0
        %v1438 = vmax.f32 %v1406, 0.0
        %v1439 = vmax.f32 %v1407, 0.0
        %v1440 = vmax.f32 %v1408, 0.0
        %v1441 = vmax.f32 %v1409, 0.0
        %v1442 = vmax.f32 %v1410, 0.0
        %v1443 = vmax.f32 %v1411, 0.0
        %v1444 = vmax.f32 %v1412, 0.0
        %v1445 = vmax.f32 %v1413, 0.0
        %v1446 = vmax.f32 %v1414, 0.0
        %v1447 = vmax.f32 %v1415, 0.0
        %v1448 = vmax.f32 %v1416, 0.0
        %v1449 = vmax.f32 %v1417, 0.0
        %v1450 = vmax.f32 %v1418, 0.0
        %v1451 = vmax.f32 %v1419, 0.0
        %v1452 = vmax.f32 %v1420, 0.0
        %v1453 = vmax.f32 %v1421, 0.0
        %v1454 = vmax.f32 %v1422, 0.0
        %v1455 = vmax.f32 %v1423, 0.0
        %v1456 = vmax.f32 %v1424, 0.0
        %v1457 = vmax.f32 %v1425, 0.0
        %v1458 = vmax.f32 %v1426, 0.0
        %v1459 = vmax.f32 %v1427, 0.0
        %v1460 = vmax.f32 %v1428, 0.0
        %v1461 = vmax.f32 %v1429, 0.0
        %v1462 = vmax.f32 %v1430, 0.0
        %v1463 = vmax.f32 %v1431, 0.0
        %v1464 = vmax.f32 %v1432, 0.0
        %v1465 = vmax.f32 %v1433, 0.0
        %v1466 = vmax.f32 %v1434, 0.0
        %v1467 = vmax.f32 %v1435, 0.0
        %v1468 = vmin.f32 %v1436, 6.0
        %v1469 = vmin.f32 %v1437, 6.0
        %v1470 = vmin.f32 %v1438, 6.0
        %v1471 = vmin.f32 %v1439, 6.0
        %v1472 = vmin.f32 %v1440, 6.0
        %v1473 = vmin.f32 %v1441, 6.0
        %v1474 = vmin.f32 %v1442, 6.0
        %v1475 = vmin.f32 %v1443, 6.0
        %v1476 = vmin.f32 %v1444, 6.0
        %v1477 = vmin.f32 %v1445, 6.0
        %v1478 = vmin.f32 %v1446, 6.0
        %v1479 = vmin.f32 %v1447, 6.0
        %v1480 = vmin.f32 %v1448, 6.0
        %v1481 = vmin.f32 %v1449, 6.0
        %v1482 = vmin.f32 %v1450, 6.0
        %v1483 = vmin.f32 %v1451, 6.0
        %v1484 = vmin.f32 %v1452, 6.0
        %v1485 = vmin.f32 %v1453, 6.0
        %v1486 = vmin.f32 %v1454, 6.0
        %v1487 = vmin.f32 %v1455, 6.0
        %v1488 = vmin.f32 %v1456, 6.0
        %v1489 = vmin.f32 %v1457, 6.0
        %v1490 = vmin.f32 %v1458, 6.0
        %v1491 = vmin.f32 %v1459, 6.0
        %v1492 = vmin.f32 %v1460, 6.0
        %v1493 = vmin.f32 %v1461, 6.0
        %v1494 = vmin.f32 %v1462, 6.0
        %v1495 = vmin.f32 %v1463, 6.0
        %v1496 = vmin.f32 %v1464, 6.0
        %v1497 = vmin.f32 %v1465, 6.0
        %v1498 = vmin.f32 %v1466, 6.0
        %v1499 = vmin.f32 %v1467, 6.0
        %v1500 = vpack.c.bf16 %v1469, %v1468
        %v1501 = vpack.c.bf16 %v1471, %v1470
        %v1502 = vpack.c.bf16 %v1473, %v1472
        %v1503 = vpack.c.bf16 %v1475, %v1474
        %v1504 = vpack.c.bf16 %v1477, %v1476
        %v1505 = vpack.c.bf16 %v1479, %v1478
        %v1506 = vpack.c.bf16 %v1481, %v1480
        %v1507 = vpack.c.bf16 %v1483, %v1482
        %v1508 = vpack.c.bf16 %v1485, %v1484
        %v1509 = vpack.c.bf16 %v1487, %v1486
        %v1510 = vpack.c.bf16 %v1489, %v1488
        %v1511 = vpack.c.bf16 %v1491, %v1490
        %v1512 = vpack.c.bf16 %v1493, %v1492
        %v1513 = vpack.c.bf16 %v1495, %v1494
        %v1514 = vpack.c.bf16 %v1497, %v1496
        %v1515 = vpack.c.bf16 %v1499, %v1498
        %v1516 = vld [vmem:[#allocation9] sm:$0xf]
        %v1517 = vld [vmem:[#allocation9 + $0x4] sm:$0xf]
        %v1518 = vld [vmem:[#allocation9 + $0x8] sm:$0xf]
        %v1519 = vld [vmem:[#allocation9 + $0xc] sm:$0xf]
        %v1520 = vld [vmem:[#allocation9 + $0x10] sm:$0xf]
        %v1521 = vld [vmem:[#allocation9 + $0x14] sm:$0xf]
        %v1522 = vld [vmem:[#allocation9 + $0x18] sm:$0xf]
        %v1523 = vld [vmem:[#allocation9 + $0x1c] sm:$0xf]
        %v1524 = vld [vmem:[#allocation9 + $0x20] sm:$0xf]
        %v1525 = vld [vmem:[#allocation9 + $0x24] sm:$0xf]
        %v1526 = vld [vmem:[#allocation9 + $0x28] sm:$0xf]
        %v1527 = vld [vmem:[#allocation9 + $0x2c] sm:$0xf]
        %v1528 = vld [vmem:[#allocation9 + $0x30] sm:$0xf]
        %v1529 = vld [vmem:[#allocation9 + $0x34] sm:$0xf]
        %v1530 = vld [vmem:[#allocation9 + $0x38] sm:$0xf]
        %v1531 = vld [vmem:[#allocation9 + $0x3c] sm:$0xf]
        %v1532 = vld [vmem:[#allocation11] sm:$0x1]
        %v1534 = vlaneseq
        %v1535 = vshrl.u32 %v1534, 7
        %v1536 = vsub.s32 0, %v1535
        %v1537 = vrot.slane %v1532, %v1536
        %v1555 = vunpack.c.l.b16 %v1516
        %v1556 = vunpack.c.l.b16 %v1517
        %v1557 = vunpack.c.l.b16 %v1518
        %v1558 = vunpack.c.l.b16 %v1519
        %v1559 = vunpack.c.l.b16 %v1520
        %v1560 = vunpack.c.l.b16 %v1521
        %v1561 = vunpack.c.l.b16 %v1522
        %v1562 = vunpack.c.l.b16 %v1523
        %v1563 = vunpack.c.l.b16 %v1524
        %v1564 = vunpack.c.l.b16 %v1525
        %v1565 = vunpack.c.l.b16 %v1526
        %v1566 = vunpack.c.l.b16 %v1527
        %v1567 = vunpack.c.l.b16 %v1528
        %v1568 = vunpack.c.l.b16 %v1529
        %v1569 = vunpack.c.l.b16 %v1530
        %v1570 = vunpack.c.l.b16 %v1531
        %v1571 = vpack.c.b16 %v1556, %v1555
        %v1572 = vpack.c.b16 %v1558, %v1557
        %v1573 = vpack.c.b16 %v1560, %v1559
        %v1574 = vpack.c.b16 %v1562, %v1561
        %v1575 = vpack.c.b16 %v1564, %v1563
        %v1576 = vpack.c.b16 %v1566, %v1565
        %v1577 = vpack.c.b16 %v1568, %v1567
        %v1578 = vpack.c.b16 %v1570, %v1569
        %1587 = vmatprep.subr.bf16.mxu0 0
        %1588 = vmatpush1.bf16.msra.mxu0 %v1571
        %1589 = vmatprep.subr.bf16.mxu0 0
        %1590 = vmatpush1.bf16.msra.mxu0 %v1572
        %1591 = vmatprep.subr.bf16.mxu0 0
        %1592 = vmatpush1.bf16.msra.mxu0 %v1573
        %1593 = vmatprep.subr.bf16.mxu0 0
        %1594 = vmatpush1.bf16.msra.mxu0 %v1574
        %1595 = vmatprep.subr.bf16.mxu0 0
        %1596 = vmatpush1.bf16.msra.mxu0 %v1575
        %1597 = vmatprep.subr.bf16.mxu0 0
        %1598 = vmatpush1.bf16.msra.mxu0 %v1576
        %1599 = vmatprep.subr.bf16.mxu0 0
        %1600 = vmatpush1.bf16.msra.mxu0 %v1577
        %1601 = vmatprep.subr.bf16.mxu0 0
        %1602 = vmatpush1.bf16.msra.mxu0 %v1578
        %1603 = vmatprep.subr.bf16.mxu0 0
        %1604 = vmatpush1.bf16.msra.mxu0 0
        %1605 = vmatprep.subr.bf16.mxu0 0
        %1606 = vmatpush1.bf16.msra.mxu0 0
        %1607 = vmatprep.subr.bf16.mxu0 0
        %1608 = vmatpush1.bf16.msra.mxu0 0
        %1609 = vmatprep.subr.bf16.mxu0 0
        %1610 = vmatpush1.bf16.msra.mxu0 0
        %1611 = vmatprep.subr.bf16.mxu0 0
        %1612 = vmatpush1.bf16.msra.mxu0 0
        %1613 = vmatprep.subr.bf16.mxu0 0
        %1614 = vmatpush1.bf16.msra.mxu0 0
        %1615 = vmatprep.subr.bf16.mxu0 0
        %1616 = vmatpush1.bf16.msra.mxu0 0
        %1617 = vmatprep.subr.bf16.mxu0 0
        %1618 = vmatpush1.bf16.msra.mxu0 0
        %1619 = vmatprep.mubr.bf16.mxu0 0
        %1620 = vmatmul.mubr.bf16.gmra.mrb[0].mxu0 %v1500
        %v1621 = vpop.f32.mrb[0].mxu0
        %v1622 = vadd.f32 %v1537, %v1621
        %v1623 = vpop.f32.mrb[0].mxu0
        %v1624 = vpop.f32.mrb[0].mxu0
        %v1625 = vadd.f32 %v1537, %v1624
        %v1626 = vpop.f32.mrb[0].mxu0
        %1627 = vmatprep.mubr.bf16.mxu0 0
        %1628 = vmatmul.mubr.bf16.gmra.mrb[0].mxu0 %v1501
        %v1629 = vpop.f32.mrb[0].mxu0
        %v1630 = vadd.f32 %v1537, %v1629
        %v1631 = vpop.f32.mrb[0].mxu0
        %v1632 = vpop.f32.mrb[0].mxu0
        %v1633 = vadd.f32 %v1537, %v1632
        %v1634 = vpop.f32.mrb[0].mxu0
        %1635 = vmatprep.mubr.bf16.mxu0 0
        %1636 = vmatmul.mubr.bf16.gmra.mrb[0].mxu0 %v1502
        %v1637 = vpop.f32.mrb[0].mxu0
        %v1638 = vadd.f32 %v1537, %v1637
        %v1639 = vpop.f32.mrb[0].mxu0
        %v1640 = vpop.f32.mrb[0].mxu0
        %v1641 = vadd.f32 %v1537, %v1640
        %v1642 = vpop.f32.mrb[0].mxu0
        %1643 = vmatprep.mubr.bf16.mxu0 0
        %1644 = vmatmul.mubr.bf16.gmra.mrb[0].mxu0 %v1503
        %v1645 = vpop.f32.mrb[0].mxu0
        %v1646 = vadd.f32 %v1537, %v1645
        %v1647 = vpop.f32.mrb[0].mxu0
        %v1648 = vpop.f32.mrb[0].mxu0
        %v1649 = vadd.f32 %v1537, %v1648
        %v1650 = vpop.f32.mrb[0].mxu0
        %1651 = vmatprep.mubr.bf16.mxu0 0
        %1652 = vmatmul.mubr.bf16.gmra.mrb[0].mxu0 %v1504
        %v1653 = vpop.f32.mrb[0].mxu0
        %v1654 = vadd.f32 %v1537, %v1653
        %v1655 = vpop.f32.mrb[0].mxu0
        %v1656 = vpop.f32.mrb[0].mxu0
        %v1657 = vadd.f32 %v1537, %v1656
        %v1658 = vpop.f32.mrb[0].mxu0
        %1659 = vmatprep.mubr.bf16.mxu0 0
        %1660 = vmatmul.mubr.bf16.gmra.mrb[0].mxu0 %v1505
        %v1661 = vpop.f32.mrb[0].mxu0
        %v1662 = vadd.f32 %v1537, %v1661
        %v1663 = vpop.f32.mrb[0].mxu0
        %v1664 = vpop.f32.mrb[0].mxu0
        %v1665 = vadd.f32 %v1537, %v1664
        %v1666 = vpop.f32.mrb[0].mxu0
        %1667 = vmatprep.mubr.bf16.mxu0 0
        %1668 = vmatmul.mubr.bf16.gmra.mrb[0].mxu0 %v1506
        %v1669 = vpop.f32.mrb[0].mxu0
        %v1670 = vadd.f32 %v1537, %v1669
        %v1671 = vpop.f32.mrb[0].mxu0
        %v1672 = vpop.f32.mrb[0].mxu0
        %v1673 = vadd.f32 %v1537, %v1672
        %v1674 = vpop.f32.mrb[0].mxu0
        %1675 = vmatprep.mubr.bf16.mxu0 0
        %1676 = vmatmul.mubr.bf16.gmra.mrb[0].mxu0 %v1507
        %v1677 = vpop.f32.mrb[0].mxu0
        %v1678 = vadd.f32 %v1537, %v1677
        %v1679 = vpop.f32.mrb[0].mxu0
        %v1680 = vpop.f32.mrb[0].mxu0
        %v1681 = vadd.f32 %v1537, %v1680
        %v1682 = vpop.f32.mrb[0].mxu0
        %1683 = vmatprep.mubr.bf16.mxu0 0
        %1684 = vmatmul.mubr.bf16.gmra.mrb[0].mxu0 %v1508
        %v1685 = vpop.f32.mrb[0].mxu0
        %v1686 = vadd.f32 %v1537, %v1685
        %v1687 = vpop.f32.mrb[0].mxu0
        %v1688 = vpop.f32.mrb[0].mxu0
        %v1689 = vadd.f32 %v1537, %v1688
        %v1690 = vpop.f32.mrb[0].mxu0
        %1691 = vmatprep.mubr.bf16.mxu0 0
        %1692 = vmatmul.mubr.bf16.gmra.mrb[0].mxu0 %v1509
        %v1693 = vpop.f32.mrb[0].mxu0
        %v1694 = vadd.f32 %v1537, %v1693
        %v1695 = vpop.f32.mrb[0].mxu0
        %v1696 = vpop.f32.mrb[0].mxu0
        %v1697 = vadd.f32 %v1537, %v1696
        %v1698 = vpop.f32.mrb[0].mxu0
        %1699 = vmatprep.mubr.bf16.mxu0 0
        %1700 = vmatmul.mubr.bf16.gmra.mrb[0].mxu0 %v1510
        %v1701 = vpop.f32.mrb[0].mxu0
        %v1702 = vadd.f32 %v1537, %v1701
        %v1703 = vpop.f32.mrb[0].mxu0
        %v1704 = vpop.f32.mrb[0].mxu0
        %v1705 = vadd.f32 %v1537, %v1704
        %v1706 = vpop.f32.mrb[0].mxu0
        %1707 = vmatprep.mubr.bf16.mxu0 0
        %1708 = vmatmul.mubr.bf16.gmra.mrb[0].mxu0 %v1511
        %v1709 = vpop.f32.mrb[0].mxu0
        %v1710 = vadd.f32 %v1537, %v1709
        %v1711 = vpop.f32.mrb[0].mxu0
        %v1712 = vpop.f32.mrb[0].mxu0
        %v1713 = vadd.f32 %v1537, %v1712
        %v1714 = vpop.f32.mrb[0].mxu0
        %1715 = vmatprep.mubr.bf16.mxu0 0
        %1716 = vmatmul.mubr.bf16.gmra.mrb[0].mxu0 %v1512
        %v1717 = vpop.f32.mrb[0].mxu0
        %v1718 = vadd.f32 %v1537, %v1717
        %v1719 = vpop.f32.mrb[0].mxu0
        %v1720 = vpop.f32.mrb[0].mxu0
        %v1721 = vadd.f32 %v1537, %v1720
        %v1722 = vpop.f32.mrb[0].mxu0
        %1723 = vmatprep.mubr.bf16.mxu0 0
        %1724 = vmatmul.mubr.bf16.gmra.mrb[0].mxu0 %v1513
        %v1725 = vpop.f32.mrb[0].mxu0
        %v1726 = vadd.f32 %v1537, %v1725
        %v1727 = vpop.f32.mrb[0].mxu0
        %v1728 = vpop.f32.mrb[0].mxu0
        %v1729 = vadd.f32 %v1537, %v1728
        %v1730 = vpop.f32.mrb[0].mxu0
        %1731 = vmatprep.mubr.bf16.mxu0 0
        %1732 = vmatmul.mubr.bf16.gmra.mrb[0].mxu0 %v1514
        %v1733 = vpop.f32.mrb[0].mxu0
        %v1734 = vadd.f32 %v1537, %v1733
        %v1735 = vpop.f32.mrb[0].mxu0
        %v1736 = vpop.f32.mrb[0].mxu0
        %v1737 = vadd.f32 %v1537, %v1736
        %v1738 = vpop.f32.mrb[0].mxu0
        %1739 = vmatprep.mubr.bf16.mxu0 0
        %1740 = vmatmul.mubr.bf16.gmra.mrb[0].mxu0 %v1515
        %v1741 = vpop.f32.mrb[0].mxu0
        %v1742 = vadd.f32 %v1537, %v1741
        %v1743 = vpop.f32.mrb[0].mxu0
        %v1744 = vpop.f32.mrb[0].mxu0
        %v1745 = vadd.f32 %v1537, %v1744
        %v1746 = vpop.f32.mrb[0].mxu0
        %1747 = vdwg.mxu0
        %v1748 = vpack.c.bf16 %v1625, %v1622
        %v1749 = vpack.c.bf16 %v1633, %v1630
        %v1750 = vpack.c.bf16 %v1641, %v1638
        %v1751 = vpack.c.bf16 %v1649, %v1646
        %v1752 = vpack.c.bf16 %v1657, %v1654
        %v1753 = vpack.c.bf16 %v1665, %v1662
        %v1754 = vpack.c.bf16 %v1673, %v1670
        %v1755 = vpack.c.bf16 %v1681, %v1678
        %v1756 = vpack.c.bf16 %v1689, %v1686
        %v1757 = vpack.c.bf16 %v1697, %v1694
        %v1758 = vpack.c.bf16 %v1705, %v1702
        %v1759 = vpack.c.bf16 %v1713, %v1710
        %v1760 = vpack.c.bf16 %v1721, %v1718
        %v1761 = vpack.c.bf16 %v1729, %v1726
        %v1762 = vpack.c.bf16 %v1737, %v1734
        %v1763 = vpack.c.bf16 %v1745, %v1742
        %v1764 = vld [vmem:[#allocation12] sm:$0xf]
        %v1765 = vld [vmem:[#allocation12 + $0x4] sm:$0xf]
        %v1766 = vld [vmem:[#allocation12 + $0x8] sm:$0xf]
        %v1767 = vld [vmem:[#allocation12 + $0xc] sm:$0xf]
        %v1768 = vld [vmem:[#allocation12 + $0x10] sm:$0xf]
        %v1769 = vld [vmem:[#allocation12 + $0x14] sm:$0xf]
        %v1770 = vld [vmem:[#allocation12 + $0x18] sm:$0xf]
        %v1771 = vld [vmem:[#allocation12 + $0x1c] sm:$0xf]
        %v1772 = vld [vmem:[#allocation12 + $0x20] sm:$0xf]
        %v1773 = vld [vmem:[#allocation12 + $0x24] sm:$0xf]
        %v1774 = vld [vmem:[#allocation12 + $0x28] sm:$0xf]
        %v1775 = vld [vmem:[#allocation12 + $0x2c] sm:$0xf]
        %v1776 = vld [vmem:[#allocation12 + $0x30] sm:$0xf]
        %v1777 = vld [vmem:[#allocation12 + $0x34] sm:$0xf]
        %v1778 = vld [vmem:[#allocation12 + $0x38] sm:$0xf]
        %v1779 = vld [vmem:[#allocation12 + $0x3c] sm:$0xf]
        %v1780 = vld [vmem:[#allocation14] sm:$0x1]
        %v1782 = vlaneseq
        %v1783 = vshrl.u32 %v1782, 7
        %v1784 = vsub.s32 0, %v1783
        %v1785 = vrot.slane %v1780, %v1784
        %v1803 = vunpack.c.l.b16 %v1764
        %v1804 = vunpack.c.l.b16 %v1765
        %v1805 = vunpack.c.l.b16 %v1766
        %v1806 = vunpack.c.l.b16 %v1767
        %v1807 = vunpack.c.l.b16 %v1768
        %v1808 = vunpack.c.l.b16 %v1769
        %v1809 = vunpack.c.l.b16 %v1770
        %v1810 = vunpack.c.l.b16 %v1771
        %v1811 = vunpack.c.l.b16 %v1772
        %v1812 = vunpack.c.l.b16 %v1773
        %v1813 = vunpack.c.l.b16 %v1774
        %v1814 = vunpack.c.l.b16 %v1775
        %v1815 = vunpack.c.l.b16 %v1776
        %v1816 = vunpack.c.l.b16 %v1777
        %v1817 = vunpack.c.l.b16 %v1778
        %v1818 = vunpack.c.l.b16 %v1779
        %v1819 = vpack.c.b16 %v1804, %v1803
        %v1820 = vpack.c.b16 %v1806, %v1805
        %v1821 = vpack.c.b16 %v1808, %v1807
        %v1822 = vpack.c.b16 %v1810, %v1809
        %v1823 = vpack.c.b16 %v1812, %v1811
        %v1824 = vpack.c.b16 %v1814, %v1813
        %v1825 = vpack.c.b16 %v1816, %v1815
        %v1826 = vpack.c.b16 %v1818, %v1817
        %1835 = vmatprep.subr.bf16.mxu0 0
        %1836 = vmatpush1.bf16.msra.mxu0 %v1819
        %1837 = vmatprep.subr.bf16.mxu0 0
        %1838 = vmatpush1.bf16.msra.mxu0 %v1820
        %1839 = vmatprep.subr.bf16.mxu0 0
        %1840 = vmatpush1.bf16.msra.mxu0 %v1821
        %1841 = vmatprep.subr.bf16.mxu0 0
        %1842 = vmatpush1.bf16.msra.mxu0 %v1822
        %1843 = vmatprep.subr.bf16.mxu0 0
        %1844 = vmatpush1.bf16.msra.mxu0 %v1823
        %1845 = vmatprep.subr.bf16.mxu0 0
        %1846 = vmatpush1.bf16.msra.mxu0 %v1824
        %1847 = vmatprep.subr.bf16.mxu0 0
        %1848 = vmatpush1.bf16.msra.mxu0 %v1825
        %1849 = vmatprep.subr.bf16.mxu0 0
        %1850 = vmatpush1.bf16.msra.mxu0 %v1826
        %1851 = vmatprep.subr.bf16.mxu0 0
        %1852 = vmatpush1.bf16.msra.mxu0 0
        %1853 = vmatprep.subr.bf16.mxu0 0
        %1854 = vmatpush1.bf16.msra.mxu0 0
        %1855 = vmatprep.subr.bf16.mxu0 0
        %1856 = vmatpush1.bf16.msra.mxu0 0
        %1857 = vmatprep.subr.bf16.mxu0 0
        %1858 = vmatpush1.bf16.msra.mxu0 0
        %1859 = vmatprep.subr.bf16.mxu0 0
        %1860 = vmatpush1.bf16.msra.mxu0 0
        %1861 = vmatprep.subr.bf16.mxu0 0
        %1862 = vmatpush1.bf16.msra.mxu0 0
        %1863 = vmatprep.subr.bf16.mxu0 0
        %1864 = vmatpush1.bf16.msra.mxu0 0
        %1865 = vmatprep.subr.bf16.mxu0 0
        %1866 = vmatpush1.bf16.msra.mxu0 0
        %1867 = vmatprep.mubr.bf16.mxu0 0
        %1868 = vmatmul.mubr.bf16.gmra.mrb[0].mxu0 %v1748
        %v1869 = vpop.f32.mrb[0].mxu0
        %v1870 = vadd.f32 %v1785, %v1869
        %v1871 = vpop.f32.mrb[0].mxu0
        %v1872 = vpop.f32.mrb[0].mxu0
        %v1873 = vadd.f32 %v1785, %v1872
        %v1874 = vpop.f32.mrb[0].mxu0
        %1875 = vmatprep.mubr.bf16.mxu0 0
        %1876 = vmatmul.mubr.bf16.gmra.mrb[0].mxu0 %v1749
        %v1877 = vpop.f32.mrb[0].mxu0
        %v1878 = vadd.f32 %v1785, %v1877
        %v1879 = vpop.f32.mrb[0].mxu0
        %v1880 = vpop.f32.mrb[0].mxu0
        %v1881 = vadd.f32 %v1785, %v1880
        %v1882 = vpop.f32.mrb[0].mxu0
        %1883 = vmatprep.mubr.bf16.mxu0 0
        %1884 = vmatmul.mubr.bf16.gmra.mrb[0].mxu0 %v1750
        %v1885 = vpop.f32.mrb[0].mxu0
        %v1886 = vadd.f32 %v1785, %v1885
        %v1887 = vpop.f32.mrb[0].mxu0
        %v1888 = vpop.f32.mrb[0].mxu0
        %v1889 = vadd.f32 %v1785, %v1888
        %v1890 = vpop.f32.mrb[0].mxu0
        %1891 = vmatprep.mubr.bf16.mxu0 0
        %1892 = vmatmul.mubr.bf16.gmra.mrb[0].mxu0 %v1751
        %v1893 = vpop.f32.mrb[0].mxu0
        %v1894 = vadd.f32 %v1785, %v1893
        %v1895 = vpop.f32.mrb[0].mxu0
        %v1896 = vpop.f32.mrb[0].mxu0
        %v1897 = vadd.f32 %v1785, %v1896
        %v1898 = vpop.f32.mrb[0].mxu0
        %1899 = vmatprep.mubr.bf16.mxu0 0
        %1900 = vmatmul.mubr.bf16.gmra.mrb[0].mxu0 %v1752
        %v1901 = vpop.f32.mrb[0].mxu0
        %v1902 = vadd.f32 %v1785, %v1901
        %v1903 = vpop.f32.mrb[0].mxu0
        %v1904 = vpop.f32.mrb[0].mxu0
        %v1905 = vadd.f32 %v1785, %v1904
        %v1906 = vpop.f32.mrb[0].mxu0
        %1907 = vmatprep.mubr.bf16.mxu0 0
        %1908 = vmatmul.mubr.bf16.gmra.mrb[0].mxu0 %v1753
        %v1909 = vpop.f32.mrb[0].mxu0
        %v1910 = vadd.f32 %v1785, %v1909
        %v1911 = vpop.f32.mrb[0].mxu0
        %v1912 = vpop.f32.mrb[0].mxu0
        %v1913 = vadd.f32 %v1785, %v1912
        %v1914 = vpop.f32.mrb[0].mxu0
        %1915 = vmatprep.mubr.bf16.mxu0 0
        %1916 = vmatmul.mubr.bf16.gmra.mrb[0].mxu0 %v1754
        %v1917 = vpop.f32.mrb[0].mxu0
        %v1918 = vadd.f32 %v1785, %v1917
        %v1919 = vpop.f32.mrb[0].mxu0
        %v1920 = vpop.f32.mrb[0].mxu0
        %v1921 = vadd.f32 %v1785, %v1920
        %v1922 = vpop.f32.mrb[0].mxu0
        %1923 = vmatprep.mubr.bf16.mxu0 0
        %1924 = vmatmul.mubr.bf16.gmra.mrb[0].mxu0 %v1755
        %v1925 = vpop.f32.mrb[0].mxu0
        %v1926 = vadd.f32 %v1785, %v1925
        %v1927 = vpop.f32.mrb[0].mxu0
        %v1928 = vpop.f32.mrb[0].mxu0
        %v1929 = vadd.f32 %v1785, %v1928
        %v1930 = vpop.f32.mrb[0].mxu0
        %1931 = vmatprep.mubr.bf16.mxu0 0
        %1932 = vmatmul.mubr.bf16.gmra.mrb[0].mxu0 %v1756
        %v1933 = vpop.f32.mrb[0].mxu0
        %v1934 = vadd.f32 %v1785, %v1933
        %v1935 = vpop.f32.mrb[0].mxu0
        %v1936 = vpop.f32.mrb[0].mxu0
        %v1937 = vadd.f32 %v1785, %v1936
        %v1938 = vpop.f32.mrb[0].mxu0
        %1939 = vmatprep.mubr.bf16.mxu0 0
        %1940 = vmatmul.mubr.bf16.gmra.mrb[0].mxu0 %v1757
        %v1941 = vpop.f32.mrb[0].mxu0
        %v1942 = vadd.f32 %v1785, %v1941
        %v1943 = vpop.f32.mrb[0].mxu0
        %v1944 = vpop.f32.mrb[0].mxu0
        %v1945 = vadd.f32 %v1785, %v1944
        %v1946 = vpop.f32.mrb[0].mxu0
        %1947 = vmatprep.mubr.bf16.mxu0 0
        %1948 = vmatmul.mubr.bf16.gmra.mrb[0].mxu0 %v1758
        %v1949 = vpop.f32.mrb[0].mxu0
        %v1950 = vadd.f32 %v1785, %v1949
        %v1951 = vpop.f32.mrb[0].mxu0
        %v1952 = vpop.f32.mrb[0].mxu0
        %v1953 = vadd.f32 %v1785, %v1952
        %v1954 = vpop.f32.mrb[0].mxu0
        %1955 = vmatprep.mubr.bf16.mxu0 0
        %1956 = vmatmul.mubr.bf16.gmra.mrb[0].mxu0 %v1759
        %v1957 = vpop.f32.mrb[0].mxu0
        %v1958 = vadd.f32 %v1785, %v1957
        %v1959 = vpop.f32.mrb[0].mxu0
        %v1960 = vpop.f32.mrb[0].mxu0
        %v1961 = vadd.f32 %v1785, %v1960
        %v1962 = vpop.f32.mrb[0].mxu0
        %1963 = vmatprep.mubr.bf16.mxu0 0
        %1964 = vmatmul.mubr.bf16.gmra.mrb[0].mxu0 %v1760
        %v1965 = vpop.f32.mrb[0].mxu0
        %v1966 = vadd.f32 %v1785, %v1965
        %v1967 = vpop.f32.mrb[0].mxu0
        %v1968 = vpop.f32.mrb[0].mxu0
        %v1969 = vadd.f32 %v1785, %v1968
        %v1970 = vpop.f32.mrb[0].mxu0
        %1971 = vmatprep.mubr.bf16.mxu0 0
        %1972 = vmatmul.mubr.bf16.gmra.mrb[0].mxu0 %v1761
        %v1973 = vpop.f32.mrb[0].mxu0
        %v1974 = vadd.f32 %v1785, %v1973
        %v1975 = vpop.f32.mrb[0].mxu0
        %v1976 = vpop.f32.mrb[0].mxu0
        %v1977 = vadd.f32 %v1785, %v1976
        %v1978 = vpop.f32.mrb[0].mxu0
        %1979 = vmatprep.mubr.bf16.mxu0 0
        %1980 = vmatmul.mubr.bf16.gmra.mrb[0].mxu0 %v1762
        %v1981 = vpop.f32.mrb[0].mxu0
        %v1982 = vadd.f32 %v1785, %v1981
        %v1983 = vpop.f32.mrb[0].mxu0
        %v1984 = vpop.f32.mrb[0].mxu0
        %v1985 = vadd.f32 %v1785, %v1984
        %v1986 = vpop.f32.mrb[0].mxu0
        %1987 = vmatprep.mubr.bf16.mxu0 0
        %1988 = vmatmul.mubr.bf16.gmra.mrb[0].mxu0 %v1763
        %v1989 = vpop.f32.mrb[0].mxu0
        %v1990 = vadd.f32 %v1785, %v1989
        %v1991 = vpop.f32.mrb[0].mxu0
        %v1992 = vpop.f32.mrb[0].mxu0
        %v1993 = vadd.f32 %v1785, %v1992
        %v1994 = vpop.f32.mrb[0].mxu0
        %1995 = vdwg.mxu0
        %v1996 = vmax.f32 %v1870, 0.0
        %v1997 = vmax.f32 %v1873, 0.0
        %v1998 = vmax.f32 %v1878, 0.0
        %v1999 = vmax.f32 %v1881, 0.0
        %v2000 = vmax.f32 %v1886, 0.0
        %v2001 = vmax.f32 %v1889, 0.0
        %v2002 = vmax.f32 %v1894, 0.0
        %v2003 = vmax.f32 %v1897, 0.0
        %v2004 = vmax.f32 %v1902, 0.0
        %v2005 = vmax.f32 %v1905, 0.0
        %v2006 = vmax.f32 %v1910, 0.0
        %v2007 = vmax.f32 %v1913, 0.0
        %v2008 = vmax.f32 %v1918, 0.0
        %v2009 = vmax.f32 %v1921, 0.0
        %v2010 = vmax.f32 %v1926, 0.0
        %v2011 = vmax.f32 %v1929, 0.0
        %v2012 = vmax.f32 %v1934, 0.0
        %v2013 = vmax.f32 %v1937, 0.0
        %v2014 = vmax.f32 %v1942, 0.0
        %v2015 = vmax.f32 %v1945, 0.0
        %v2016 = vmax.f32 %v1950, 0.0
        %v2017 = vmax.f32 %v1953, 0.0
        %v2018 = vmax.f32 %v1958, 0.0
        %v2019 = vmax.f32 %v1961, 0.0
        %v2020 = vmax.f32 %v1966, 0.0
        %v2021 = vmax.f32 %v1969, 0.0
        %v2022 = vmax.f32 %v1974, 0.0
        %v2023 = vmax.f32 %v1977, 0.0
        %v2024 = vmax.f32 %v1982, 0.0
        %v2025 = vmax.f32 %v1985, 0.0
        %v2026 = vmax.f32 %v1990, 0.0
        %v2027 = vmax.f32 %v1993, 0.0
        %v2028 = vmin.f32 %v1996, 6.0
        %v2029 = vmin.f32 %v1997, 6.0
        %v2030 = vmin.f32 %v1998, 6.0
        %v2031 = vmin.f32 %v1999, 6.0
        %v2032 = vmin.f32 %v2000, 6.0
        %v2033 = vmin.f32 %v2001, 6.0
        %v2034 = vmin.f32 %v2002, 6.0
        %v2035 = vmin.f32 %v2003, 6.0
        %v2036 = vmin.f32 %v2004, 6.0
        %v2037 = vmin.f32 %v2005, 6.0
        %v2038 = vmin.f32 %v2006, 6.0
        %v2039 = vmin.f32 %v2007, 6.0
        %v2040 = vmin.f32 %v2008, 6.0
        %v2041 = vmin.f32 %v2009, 6.0
        %v2042 = vmin.f32 %v2010, 6.0
        %v2043 = vmin.f32 %v2011, 6.0
        %v2044 = vmin.f32 %v2012, 6.0
        %v2045 = vmin.f32 %v2013, 6.0
        %v2046 = vmin.f32 %v2014, 6.0
        %v2047 = vmin.f32 %v2015, 6.0
        %v2048 = vmin.f32 %v2016, 6.0
        %v2049 = vmin.f32 %v2017, 6.0
        %v2050 = vmin.f32 %v2018, 6.0
        %v2051 = vmin.f32 %v2019, 6.0
        %v2052 = vmin.f32 %v2020, 6.0
        %v2053 = vmin.f32 %v2021, 6.0
        %v2054 = vmin.f32 %v2022, 6.0
        %v2055 = vmin.f32 %v2023, 6.0
        %v2056 = vmin.f32 %v2024, 6.0
        %v2057 = vmin.f32 %v2025, 6.0
        %v2058 = vmin.f32 %v2026, 6.0
        %v2059 = vmin.f32 %v2027, 6.0
        %s2060 = scalar_lea.vmem [#allocation2], 24
        %2061 = vst [vmem:[%s2060 + $0x1] sm:$0xff] %v2028
        %2062 = vst [vmem:[%s2060 + $0x9] sm:$0xff] %v2029
        %2063 = vst [vmem:[%s2060 + $0x19] sm:$0xff] %v2030
        %2064 = vst [vmem:[%s2060 + $0x21] sm:$0xff] %v2031
        %2065 = vst [vmem:[%s2060 + $0x31] sm:$0xff] %v2032
        %2066 = vst [vmem:[%s2060 + $0x39] sm:$0xff] %v2033
        %2067 = vst [vmem:[%s2060 + $0x49] sm:$0xff] %v2034
        %2068 = vst [vmem:[%s2060 + $0x51] sm:$0xff] %v2035
        %2069 = vst [vmem:[%s2060 + $0x61] sm:$0xff] %v2036
        %2070 = vst [vmem:[%s2060 + $0x69] sm:$0xff] %v2037
        %2071 = vst [vmem:[%s2060 + $0x79] sm:$0xff] %v2038
        %2072 = vst [vmem:[%s2060 + $0x81] sm:$0xff] %v2039
        %2073 = vst [vmem:[%s2060 + $0x91] sm:$0xff] %v2040
        %2074 = vst [vmem:[%s2060 + $0x99] sm:$0xff] %v2041
        %2075 = vst [vmem:[%s2060 + $0xa9] sm:$0xff] %v2042
        %2076 = vst [vmem:[%s2060 + $0xb1] sm:$0xff] %v2043
        %2077 = vst [vmem:[%s2060 + $0xc1] sm:$0xff] %v2044
        %2078 = vst [vmem:[%s2060 + $0xc9] sm:$0xff] %v2045
        %2079 = vst [vmem:[%s2060 + $0xd9] sm:$0xff] %v2046
        %2080 = vst [vmem:[%s2060 + $0xe1] sm:$0xff] %v2047
        %2081 = vst [vmem:[%s2060 + $0xf1] sm:$0xff] %v2048
        %2082 = vst [vmem:[%s2060 + $0xf9] sm:$0xff] %v2049
        %2083 = vst [vmem:[%s2060 + $0x109] sm:$0xff] %v2050
        %2084 = vst [vmem:[%s2060 + $0x111] sm:$0xff] %v2051
        %2085 = vst [vmem:[%s2060 + $0x121] sm:$0xff] %v2052
        %2086 = vst [vmem:[%s2060 + $0x129] sm:$0xff] %v2053
        %2087 = vst [vmem:[%s2060 + $0x139] sm:$0xff] %v2054
        %2088 = vst [vmem:[%s2060 + $0x141] sm:$0xff] %v2055
        %2089 = vst [vmem:[%s2060 + $0x151] sm:$0xff] %v2056
        %2090 = vst [vmem:[%s2060 + $0x159] sm:$0xff] %v2057
        %2091 = vst [vmem:[%s2060 + $0x169] sm:$0xff] %v2058
        %2092 = vst [vmem:[%s2060 + $0x171] sm:$0xff] %v2059
        %v2093 = vld [vmem:[#allocation2] sm:$0xff]
        %v2094 = vld [vmem:[#allocation2 + $0x8] sm:$0xff]
        %v2095 = vld [vmem:[#allocation2 + $0x18] sm:$0xff]
        %v2096 = vld [vmem:[#allocation2 + $0x20] sm:$0xff]
        %v2097 = vld [vmem:[#allocation2 + $0x30] sm:$0xff]
        %v2098 = vld [vmem:[#allocation2 + $0x38] sm:$0xff]
        %v2099 = vld [vmem:[#allocation2 + $0x48] sm:$0xff]
        %v2100 = vld [vmem:[#allocation2 + $0x50] sm:$0xff]
        %v2101 = vld [vmem:[#allocation2 + $0x60] sm:$0xff]
        %v2102 = vld [vmem:[#allocation2 + $0x68] sm:$0xff]
        %v2103 = vld [vmem:[#allocation2 + $0x78] sm:$0xff]
        %v2104 = vld [vmem:[#allocation2 + $0x80] sm:$0xff]
        %v2105 = vld [vmem:[#allocation2 + $0x90] sm:$0xff]
        %v2106 = vld [vmem:[#allocation2 + $0x98] sm:$0xff]
        %v2107 = vld [vmem:[#allocation2 + $0xa8] sm:$0xff]
        %v2108 = vld [vmem:[#allocation2 + $0xb0] sm:$0xff]
        %v2109 = vld [vmem:[#allocation2 + $0xc0] sm:$0xff]
        %v2110 = vld [vmem:[#allocation2 + $0xc8] sm:$0xff]
        %v2111 = vld [vmem:[#allocation2 + $0xd8] sm:$0xff]
        %v2112 = vld [vmem:[#allocation2 + $0xe0] sm:$0xff]
        %v2113 = vld [vmem:[#allocation2 + $0xf0] sm:$0xff]
        %v2114 = vld [vmem:[#allocation2 + $0xf8] sm:$0xff]
        %v2115 = vld [vmem:[#allocation2 + $0x108] sm:$0xff]
        %v2116 = vld [vmem:[#allocation2 + $0x110] sm:$0xff]
        %v2117 = vld [vmem:[#allocation2 + $0x120] sm:$0xff]
        %v2118 = vld [vmem:[#allocation2 + $0x128] sm:$0xff]
        %v2119 = vld [vmem:[#allocation2 + $0x138] sm:$0xff]
        %v2120 = vld [vmem:[#allocation2 + $0x140] sm:$0xff]
        %v2121 = vld [vmem:[#allocation2 + $0x150] sm:$0xff]
        %v2122 = vld [vmem:[#allocation2 + $0x158] sm:$0xff]
        %v2123 = vld [vmem:[#allocation2 + $0x168] sm:$0xff]
        %v2124 = vld [vmem:[#allocation2 + $0x170] sm:$0xff]
        %v2125 = vld [vmem:[#allocation15] sm:$0x1]
        %v2126 = vlaneseq
        %v2127 = vshrl.u32 %v2126, 7
        %v2128 = vsub.s32 0, %v2127
        %v2129 = vrot.slane %v2125, %v2128
        %v2130 = vmul.f32 %v2093, %v2129
        %v2131 = vmul.f32 %v2094, %v2129
        %v2132 = vmul.f32 %v2095, %v2129
        %v2133 = vmul.f32 %v2096, %v2129
        %v2134 = vmul.f32 %v2097, %v2129
        %v2135 = vmul.f32 %v2098, %v2129
        %v2136 = vmul.f32 %v2099, %v2129
        %v2137 = vmul.f32 %v2100, %v2129
        %v2138 = vmul.f32 %v2101, %v2129
        %v2139 = vmul.f32 %v2102, %v2129
        %v2140 = vmul.f32 %v2103, %v2129
        %v2141 = vmul.f32 %v2104, %v2129
        %v2142 = vmul.f32 %v2105, %v2129
        %v2143 = vmul.f32 %v2106, %v2129
        %v2144 = vmul.f32 %v2107, %v2129
        %v2145 = vmul.f32 %v2108, %v2129
        %v2146 = vmul.f32 %v2109, %v2129
        %v2147 = vmul.f32 %v2110, %v2129
        %v2148 = vmul.f32 %v2111, %v2129
        %v2149 = vmul.f32 %v2112, %v2129
        %v2150 = vmul.f32 %v2113, %v2129
        %v2151 = vmul.f32 %v2114, %v2129
        %v2152 = vmul.f32 %v2115, %v2129
        %v2153 = vmul.f32 %v2116, %v2129
        %v2154 = vmul.f32 %v2117, %v2129
        %v2155 = vmul.f32 %v2118, %v2129
        %v2156 = vmul.f32 %v2119, %v2129
        %v2157 = vmul.f32 %v2120, %v2129
        %v2158 = vmul.f32 %v2121, %v2129
        %v2159 = vmul.f32 %v2122, %v2129
        %v2160 = vmul.f32 %v2123, %v2129
        %v2161 = vmul.f32 %v2124, %v2129
        %v2162 = vld [vmem:[#allocation2 + $0x1] sm:$0xff]
        %v2163 = vld [vmem:[#allocation2 + $0x9] sm:$0xff]
        %v2164 = vld [vmem:[#allocation2 + $0x19] sm:$0xff]
        %v2165 = vld [vmem:[#allocation2 + $0x21] sm:$0xff]
        %v2166 = vld [vmem:[#allocation2 + $0x31] sm:$0xff]
        %v2167 = vld [vmem:[#allocation2 + $0x39] sm:$0xff]
        %v2168 = vld [vmem:[#allocation2 + $0x49] sm:$0xff]
        %v2169 = vld [vmem:[#allocation2 + $0x51] sm:$0xff]
        %v2170 = vld [vmem:[#allocation2 + $0x61] sm:$0xff]
        %v2171 = vld [vmem:[#allocation2 + $0x69] sm:$0xff]
        %v2172 = vld [vmem:[#allocation2 + $0x79] sm:$0xff]
        %v2173 = vld [vmem:[#allocation2 + $0x81] sm:$0xff]
        %v2174 = vld [vmem:[#allocation2 + $0x91] sm:$0xff]
        %v2175 = vld [vmem:[#allocation2 + $0x99] sm:$0xff]
        %v2176 = vld [vmem:[#allocation2 + $0xa9] sm:$0xff]
        %v2177 = vld [vmem:[#allocation2 + $0xb1] sm:$0xff]
        %v2178 = vld [vmem:[#allocation2 + $0xc1] sm:$0xff]
        %v2179 = vld [vmem:[#allocation2 + $0xc9] sm:$0xff]
        %v2180 = vld [vmem:[#allocation2 + $0xd9] sm:$0xff]
        %v2181 = vld [vmem:[#allocation2 + $0xe1] sm:$0xff]
        %v2182 = vld [vmem:[#allocation2 + $0xf1] sm:$0xff]
        %v2183 = vld [vmem:[#allocation2 + $0xf9] sm:$0xff]
        %v2184 = vld [vmem:[#allocation2 + $0x109] sm:$0xff]
        %v2185 = vld [vmem:[#allocation2 + $0x111] sm:$0xff]
        %v2186 = vld [vmem:[#allocation2 + $0x121] sm:$0xff]
        %v2187 = vld [vmem:[#allocation2 + $0x129] sm:$0xff]
        %v2188 = vld [vmem:[#allocation2 + $0x139] sm:$0xff]
        %v2189 = vld [vmem:[#allocation2 + $0x141] sm:$0xff]
        %v2190 = vld [vmem:[#allocation2 + $0x151] sm:$0xff]
        %v2191 = vld [vmem:[#allocation2 + $0x159] sm:$0xff]
        %v2192 = vld [vmem:[#allocation2 + $0x169] sm:$0xff]
        %v2193 = vld [vmem:[#allocation2 + $0x171] sm:$0xff]
        %v2194 = vld [vmem:[#allocation15 + $0x1] sm:$0x1]
        %v2195 = vlaneseq
        %v2196 = vshrl.u32 %v2195, 7
        %v2197 = vsub.s32 0, %v2196
        %v2198 = vrot.slane %v2194, %v2197
        %v2199 = vmul.f32 %v2162, %v2198
        %v2200 = vmul.f32 %v2163, %v2198
        %v2201 = vmul.f32 %v2164, %v2198
        %v2202 = vmul.f32 %v2165, %v2198
        %v2203 = vmul.f32 %v2166, %v2198
        %v2204 = vmul.f32 %v2167, %v2198
        %v2205 = vmul.f32 %v2168, %v2198
        %v2206 = vmul.f32 %v2169, %v2198
        %v2207 = vmul.f32 %v2170, %v2198
        %v2208 = vmul.f32 %v2171, %v2198
        %v2209 = vmul.f32 %v2172, %v2198
        %v2210 = vmul.f32 %v2173, %v2198
        %v2211 = vmul.f32 %v2174, %v2198
        %v2212 = vmul.f32 %v2175, %v2198
        %v2213 = vmul.f32 %v2176, %v2198
        %v2214 = vmul.f32 %v2177, %v2198
        %v2215 = vmul.f32 %v2178, %v2198
        %v2216 = vmul.f32 %v2179, %v2198
        %v2217 = vmul.f32 %v2180, %v2198
        %v2218 = vmul.f32 %v2181, %v2198
        %v2219 = vmul.f32 %v2182, %v2198
        %v2220 = vmul.f32 %v2183, %v2198
        %v2221 = vmul.f32 %v2184, %v2198
        %v2222 = vmul.f32 %v2185, %v2198
        %v2223 = vmul.f32 %v2186, %v2198
        %v2224 = vmul.f32 %v2187, %v2198
        %v2225 = vmul.f32 %v2188, %v2198
        %v2226 = vmul.f32 %v2189, %v2198
        %v2227 = vmul.f32 %v2190, %v2198
        %v2228 = vmul.f32 %v2191, %v2198
        %v2229 = vmul.f32 %v2192, %v2198
        %v2230 = vmul.f32 %v2193, %v2198
        %v2231 = vadd.f32 %v2130, %v2199
        %v2232 = vadd.f32 %v2131, %v2200
        %v2233 = vadd.f32 %v2132, %v2201
        %v2234 = vadd.f32 %v2133, %v2202
        %v2235 = vadd.f32 %v2134, %v2203
        %v2236 = vadd.f32 %v2135, %v2204
        %v2237 = vadd.f32 %v2136, %v2205
        %v2238 = vadd.f32 %v2137, %v2206
        %v2239 = vadd.f32 %v2138, %v2207
        %v2240 = vadd.f32 %v2139, %v2208
        %v2241 = vadd.f32 %v2140, %v2209
        %v2242 = vadd.f32 %v2141, %v2210
        %v2243 = vadd.f32 %v2142, %v2211
        %v2244 = vadd.f32 %v2143, %v2212
        %v2245 = vadd.f32 %v2144, %v2213
        %v2246 = vadd.f32 %v2145, %v2214
        %v2247 = vadd.f32 %v2146, %v2215
        %v2248 = vadd.f32 %v2147, %v2216
        %v2249 = vadd.f32 %v2148, %v2217
        %v2250 = vadd.f32 %v2149, %v2218
        %v2251 = vadd.f32 %v2150, %v2219
        %v2252 = vadd.f32 %v2151, %v2220
        %v2253 = vadd.f32 %v2152, %v2221
        %v2254 = vadd.f32 %v2153, %v2222
        %v2255 = vadd.f32 %v2154, %v2223
        %v2256 = vadd.f32 %v2155, %v2224
        %v2257 = vadd.f32 %v2156, %v2225
        %v2258 = vadd.f32 %v2157, %v2226
        %v2259 = vadd.f32 %v2158, %v2227
        %v2260 = vadd.f32 %v2159, %v2228
        %v2261 = vadd.f32 %v2160, %v2229
        %v2262 = vadd.f32 %v2161, %v2230
        %v2263 = vld [vmem:[#allocation2 + $0x2] sm:$0xff]
        %v2264 = vld [vmem:[#allocation2 + $0xa] sm:$0xff]
        %v2265 = vld [vmem:[#allocation2 + $0x1a] sm:$0xff]
        %v2266 = vld [vmem:[#allocation2 + $0x22] sm:$0xff]
        %v2267 = vld [vmem:[#allocation2 + $0x32] sm:$0xff]
        %v2268 = vld [vmem:[#allocation2 + $0x3a] sm:$0xff]
        %v2269 = vld [vmem:[#allocation2 + $0x4a] sm:$0xff]
        %v2270 = vld [vmem:[#allocation2 + $0x52] sm:$0xff]
        %v2271 = vld [vmem:[#allocation2 + $0x62] sm:$0xff]
        %v2272 = vld [vmem:[#allocation2 + $0x6a] sm:$0xff]
        %v2273 = vld [vmem:[#allocation2 + $0x7a] sm:$0xff]
        %v2274 = vld [vmem:[#allocation2 + $0x82] sm:$0xff]
        %v2275 = vld [vmem:[#allocation2 + $0x92] sm:$0xff]
        %v2276 = vld [vmem:[#allocation2 + $0x9a] sm:$0xff]
        %v2277 = vld [vmem:[#allocation2 + $0xaa] sm:$0xff]
        %v2278 = vld [vmem:[#allocation2 + $0xb2] sm:$0xff]
        %v2279 = vld [vmem:[#allocation2 + $0xc2] sm:$0xff]
        %v2280 = vld [vmem:[#allocation2 + $0xca] sm:$0xff]
        %v2281 = vld [vmem:[#allocation2 + $0xda] sm:$0xff]
        %v2282 = vld [vmem:[#allocation2 + $0xe2] sm:$0xff]
        %v2283 = vld [vmem:[#allocation2 + $0xf2] sm:$0xff]
        %v2284 = vld [vmem:[#allocation2 + $0xfa] sm:$0xff]
        %v2285 = vld [vmem:[#allocation2 + $0x10a] sm:$0xff]
        %v2286 = vld [vmem:[#allocation2 + $0x112] sm:$0xff]
        %v2287 = vld [vmem:[#allocation2 + $0x122] sm:$0xff]
        %v2288 = vld [vmem:[#allocation2 + $0x12a] sm:$0xff]
        %v2289 = vld [vmem:[#allocation2 + $0x13a] sm:$0xff]
        %v2290 = vld [vmem:[#allocation2 + $0x142] sm:$0xff]
        %v2291 = vld [vmem:[#allocation2 + $0x152] sm:$0xff]
        %v2292 = vld [vmem:[#allocation2 + $0x15a] sm:$0xff]
        %v2293 = vld [vmem:[#allocation2 + $0x16a] sm:$0xff]
        %v2294 = vld [vmem:[#allocation2 + $0x172] sm:$0xff]
        %v2295 = vld [vmem:[#allocation15 + $0x2] sm:$0x1]
        %v2296 = vlaneseq
        %v2297 = vshrl.u32 %v2296, 7
        %v2298 = vsub.s32 0, %v2297
        %v2299 = vrot.slane %v2295, %v2298
        %v2300 = vmul.f32 %v2263, %v2299
        %v2301 = vmul.f32 %v2264, %v2299
        %v2302 = vmul.f32 %v2265, %v2299
        %v2303 = vmul.f32 %v2266, %v2299
        %v2304 = vmul.f32 %v2267, %v2299
        %v2305 = vmul.f32 %v2268, %v2299
        %v2306 = vmul.f32 %v2269, %v2299
        %v2307 = vmul.f32 %v2270, %v2299
        %v2308 = vmul.f32 %v2271, %v2299
        %v2309 = vmul.f32 %v2272, %v2299
        %v2310 = vmul.f32 %v2273, %v2299
        %v2311 = vmul.f32 %v2274, %v2299
        %v2312 = vmul.f32 %v2275, %v2299
        %v2313 = vmul.f32 %v2276, %v2299
        %v2314 = vmul.f32 %v2277, %v2299
        %v2315 = vmul.f32 %v2278, %v2299
        %v2316 = vmul.f32 %v2279, %v2299
        %v2317 = vmul.f32 %v2280, %v2299
        %v2318 = vmul.f32 %v2281, %v2299
        %v2319 = vmul.f32 %v2282, %v2299
        %v2320 = vmul.f32 %v2283, %v2299
        %v2321 = vmul.f32 %v2284, %v2299
        %v2322 = vmul.f32 %v2285, %v2299
        %v2323 = vmul.f32 %v2286, %v2299
        %v2324 = vmul.f32 %v2287, %v2299
        %v2325 = vmul.f32 %v2288, %v2299
        %v2326 = vmul.f32 %v2289, %v2299
        %v2327 = vmul.f32 %v2290, %v2299
        %v2328 = vmul.f32 %v2291, %v2299
        %v2329 = vmul.f32 %v2292, %v2299
        %v2330 = vmul.f32 %v2293, %v2299
        %v2331 = vmul.f32 %v2294, %v2299
        %v2332 = vadd.f32 %v2231, %v2300
        %v2333 = vadd.f32 %v2232, %v2301
        %v2334 = vadd.f32 %v2233, %v2302
        %v2335 = vadd.f32 %v2234, %v2303
        %v2336 = vadd.f32 %v2235, %v2304
        %v2337 = vadd.f32 %v2236, %v2305
        %v2338 = vadd.f32 %v2237, %v2306
        %v2339 = vadd.f32 %v2238, %v2307
        %v2340 = vadd.f32 %v2239, %v2308
        %v2341 = vadd.f32 %v2240, %v2309
        %v2342 = vadd.f32 %v2241, %v2310
        %v2343 = vadd.f32 %v2242, %v2311
        %v2344 = vadd.f32 %v2243, %v2312
        %v2345 = vadd.f32 %v2244, %v2313
        %v2346 = vadd.f32 %v2245, %v2314
        %v2347 = vadd.f32 %v2246, %v2315
        %v2348 = vadd.f32 %v2247, %v2316
        %v2349 = vadd.f32 %v2248, %v2317
        %v2350 = vadd.f32 %v2249, %v2318
        %v2351 = vadd.f32 %v2250, %v2319
        %v2352 = vadd.f32 %v2251, %v2320
        %v2353 = vadd.f32 %v2252, %v2321
        %v2354 = vadd.f32 %v2253, %v2322
        %v2355 = vadd.f32 %v2254, %v2323
        %v2356 = vadd.f32 %v2255, %v2324
        %v2357 = vadd.f32 %v2256, %v2325
        %v2358 = vadd.f32 %v2257, %v2326
        %v2359 = vadd.f32 %v2258, %v2327
        %v2360 = vadd.f32 %v2259, %v2328
        %v2361 = vadd.f32 %v2260, %v2329
        %v2362 = vadd.f32 %v2261, %v2330
        %v2363 = vadd.f32 %v2262, %v2331
        %v2364 = vld [vmem:[%s2060] sm:$0xff]
        %v2365 = vld [vmem:[%s2060 + $0x8] sm:$0xff]
        %v2366 = vld [vmem:[%s2060 + $0x18] sm:$0xff]
        %v2367 = vld [vmem:[%s2060 + $0x20] sm:$0xff]
        %v2368 = vld [vmem:[%s2060 + $0x30] sm:$0xff]
        %v2369 = vld [vmem:[%s2060 + $0x38] sm:$0xff]
        %v2370 = vld [vmem:[%s2060 + $0x48] sm:$0xff]
        %v2371 = vld [vmem:[%s2060 + $0x50] sm:$0xff]
        %v2372 = vld [vmem:[%s2060 + $0x60] sm:$0xff]
        %v2373 = vld [vmem:[%s2060 + $0x68] sm:$0xff]
        %v2374 = vld [vmem:[%s2060 + $0x78] sm:$0xff]
        %v2375 = vld [vmem:[%s2060 + $0x80] sm:$0xff]
        %v2376 = vld [vmem:[%s2060 + $0x90] sm:$0xff]
        %v2377 = vld [vmem:[%s2060 + $0x98] sm:$0xff]
        %v2378 = vld [vmem:[%s2060 + $0xa8] sm:$0xff]
        %v2379 = vld [vmem:[%s2060 + $0xb0] sm:$0xff]
        %v2380 = vld [vmem:[%s2060 + $0xc0] sm:$0xff]
        %v2381 = vld [vmem:[%s2060 + $0xc8] sm:$0xff]
        %v2382 = vld [vmem:[%s2060 + $0xd8] sm:$0xff]
        %v2383 = vld [vmem:[%s2060 + $0xe0] sm:$0xff]
        %v2384 = vld [vmem:[%s2060 + $0xf0] sm:$0xff]
        %v2385 = vld [vmem:[%s2060 + $0xf8] sm:$0xff]
        %v2386 = vld [vmem:[%s2060 + $0x108] sm:$0xff]
        %v2387 = vld [vmem:[%s2060 + $0x110] sm:$0xff]
        %v2388 = vld [vmem:[%s2060 + $0x120] sm:$0xff]
        %v2389 = vld [vmem:[%s2060 + $0x128] sm:$0xff]
        %v2390 = vld [vmem:[%s2060 + $0x138] sm:$0xff]
        %v2391 = vld [vmem:[%s2060 + $0x140] sm:$0xff]
        %v2392 = vld [vmem:[%s2060 + $0x150] sm:$0xff]
        %v2393 = vld [vmem:[%s2060 + $0x158] sm:$0xff]
        %v2394 = vld [vmem:[%s2060 + $0x168] sm:$0xff]
        %v2395 = vld [vmem:[%s2060 + $0x170] sm:$0xff]
        %v2396 = vld [vmem:[#allocation15 + $0x3] sm:$0x1]
        %v2397 = vlaneseq
        %v2398 = vshrl.u32 %v2397, 7
        %v2399 = vsub.s32 0, %v2398
        %v2400 = vrot.slane %v2396, %v2399
        %v2401 = vmul.f32 %v2364, %v2400
        %v2402 = vmul.f32 %v2365, %v2400
        %v2403 = vmul.f32 %v2366, %v2400
        %v2404 = vmul.f32 %v2367, %v2400
        %v2405 = vmul.f32 %v2368, %v2400
        %v2406 = vmul.f32 %v2369, %v2400
        %v2407 = vmul.f32 %v2370, %v2400
        %v2408 = vmul.f32 %v2371, %v2400
        %v2409 = vmul.f32 %v2372, %v2400
        %v2410 = vmul.f32 %v2373, %v2400
        %v2411 = vmul.f32 %v2374, %v2400
        %v2412 = vmul.f32 %v2375, %v2400
        %v2413 = vmul.f32 %v2376, %v2400
        %v2414 = vmul.f32 %v2377, %v2400
        %v2415 = vmul.f32 %v2378, %v2400
        %v2416 = vmul.f32 %v2379, %v2400
        %v2417 = vmul.f32 %v2380, %v2400
        %v2418 = vmul.f32 %v2381, %v2400
        %v2419 = vmul.f32 %v2382, %v2400
        %v2420 = vmul.f32 %v2383, %v2400
        %v2421 = vmul.f32 %v2384, %v2400
        %v2422 = vmul.f32 %v2385, %v2400
        %v2423 = vmul.f32 %v2386, %v2400
        %v2424 = vmul.f32 %v2387, %v2400
        %v2425 = vmul.f32 %v2388, %v2400
        %v2426 = vmul.f32 %v2389, %v2400
        %v2427 = vmul.f32 %v2390, %v2400
        %v2428 = vmul.f32 %v2391, %v2400
        %v2429 = vmul.f32 %v2392, %v2400
        %v2430 = vmul.f32 %v2393, %v2400
        %v2431 = vmul.f32 %v2394, %v2400
        %v2432 = vmul.f32 %v2395, %v2400
        %v2433 = vadd.f32 %v2332, %v2401
        %v2434 = vadd.f32 %v2333, %v2402
        %v2435 = vadd.f32 %v2334, %v2403
        %v2436 = vadd.f32 %v2335, %v2404
        %v2437 = vadd.f32 %v2336, %v2405
        %v2438 = vadd.f32 %v2337, %v2406
        %v2439 = vadd.f32 %v2338, %v2407
        %v2440 = vadd.f32 %v2339, %v2408
        %v2441 = vadd.f32 %v2340, %v2409
        %v2442 = vadd.f32 %v2341, %v2410
        %v2443 = vadd.f32 %v2342, %v2411
        %v2444 = vadd.f32 %v2343, %v2412
        %v2445 = vadd.f32 %v2344, %v2413
        %v2446 = vadd.f32 %v2345, %v2414
        %v2447 = vadd.f32 %v2346, %v2415
        %v2448 = vadd.f32 %v2347, %v2416
        %v2449 = vadd.f32 %v2348, %v2417
        %v2450 = vadd.f32 %v2349, %v2418
        %v2451 = vadd.f32 %v2350, %v2419
        %v2452 = vadd.f32 %v2351, %v2420
        %v2453 = vadd.f32 %v2352, %v2421
        %v2454 = vadd.f32 %v2353, %v2422
        %v2455 = vadd.f32 %v2354, %v2423
        %v2456 = vadd.f32 %v2355, %v2424
        %v2457 = vadd.f32 %v2356, %v2425
        %v2458 = vadd.f32 %v2357, %v2426
        %v2459 = vadd.f32 %v2358, %v2427
        %v2460 = vadd.f32 %v2359, %v2428
        %v2461 = vadd.f32 %v2360, %v2429
        %v2462 = vadd.f32 %v2361, %v2430
        %v2463 = vadd.f32 %v2362, %v2431
        %v2464 = vadd.f32 %v2363, %v2432
        %v2465 = vld [vmem:[%s2060 + $0x1] sm:$0xff]
        %v2466 = vld [vmem:[%s2060 + $0x9] sm:$0xff]
        %v2467 = vld [vmem:[%s2060 + $0x19] sm:$0xff]
        %v2468 = vld [vmem:[%s2060 + $0x21] sm:$0xff]
        %v2469 = vld [vmem:[%s2060 + $0x31] sm:$0xff]
        %v2470 = vld [vmem:[%s2060 + $0x39] sm:$0xff]
        %v2471 = vld [vmem:[%s2060 + $0x49] sm:$0xff]
        %v2472 = vld [vmem:[%s2060 + $0x51] sm:$0xff]
        %v2473 = vld [vmem:[%s2060 + $0x61] sm:$0xff]
        %v2474 = vld [vmem:[%s2060 + $0x69] sm:$0xff]
        %v2475 = vld [vmem:[%s2060 + $0x79] sm:$0xff]
        %v2476 = vld [vmem:[%s2060 + $0x81] sm:$0xff]
        %v2477 = vld [vmem:[%s2060 + $0x91] sm:$0xff]
        %v2478 = vld [vmem:[%s2060 + $0x99] sm:$0xff]
        %v2479 = vld [vmem:[%s2060 + $0xa9] sm:$0xff]
        %v2480 = vld [vmem:[%s2060 + $0xb1] sm:$0xff]
        %v2481 = vld [vmem:[%s2060 + $0xc1] sm:$0xff]
        %v2482 = vld [vmem:[%s2060 + $0xc9] sm:$0xff]
        %v2483 = vld [vmem:[%s2060 + $0xd9] sm:$0xff]
        %v2484 = vld [vmem:[%s2060 + $0xe1] sm:$0xff]
        %v2485 = vld [vmem:[%s2060 + $0xf1] sm:$0xff]
        %v2486 = vld [vmem:[%s2060 + $0xf9] sm:$0xff]
        %v2487 = vld [vmem:[%s2060 + $0x109] sm:$0xff]
        %v2488 = vld [vmem:[%s2060 + $0x111] sm:$0xff]
        %v2489 = vld [vmem:[%s2060 + $0x121] sm:$0xff]
        %v2490 = vld [vmem:[%s2060 + $0x129] sm:$0xff]
        %v2491 = vld [vmem:[%s2060 + $0x139] sm:$0xff]
        %v2492 = vld [vmem:[%s2060 + $0x141] sm:$0xff]
        %v2493 = vld [vmem:[%s2060 + $0x151] sm:$0xff]
        %v2494 = vld [vmem:[%s2060 + $0x159] sm:$0xff]
        %v2495 = vld [vmem:[%s2060 + $0x169] sm:$0xff]
        %v2496 = vld [vmem:[%s2060 + $0x171] sm:$0xff]
        %v2497 = vld [vmem:[#allocation15 + $0x4] sm:$0x1]
        %v2498 = vlaneseq
        %v2499 = vshrl.u32 %v2498, 7
        %v2500 = vsub.s32 0, %v2499
        %v2501 = vrot.slane %v2497, %v2500
        %v2502 = vmul.f32 %v2465, %v2501
        %v2503 = vmul.f32 %v2466, %v2501
        %v2504 = vmul.f32 %v2467, %v2501
        %v2505 = vmul.f32 %v2468, %v2501
        %v2506 = vmul.f32 %v2469, %v2501
        %v2507 = vmul.f32 %v2470, %v2501
        %v2508 = vmul.f32 %v2471, %v2501
        %v2509 = vmul.f32 %v2472, %v2501
        %v2510 = vmul.f32 %v2473, %v2501
        %v2511 = vmul.f32 %v2474, %v2501
        %v2512 = vmul.f32 %v2475, %v2501
        %v2513 = vmul.f32 %v2476, %v2501
        %v2514 = vmul.f32 %v2477, %v2501
        %v2515 = vmul.f32 %v2478, %v2501
        %v2516 = vmul.f32 %v2479, %v2501
        %v2517 = vmul.f32 %v2480, %v2501
        %v2518 = vmul.f32 %v2481, %v2501
        %v2519 = vmul.f32 %v2482, %v2501
        %v2520 = vmul.f32 %v2483, %v2501
        %v2521 = vmul.f32 %v2484, %v2501
        %v2522 = vmul.f32 %v2485, %v2501
        %v2523 = vmul.f32 %v2486, %v2501
        %v2524 = vmul.f32 %v2487, %v2501
        %v2525 = vmul.f32 %v2488, %v2501
        %v2526 = vmul.f32 %v2489, %v2501
        %v2527 = vmul.f32 %v2490, %v2501
        %v2528 = vmul.f32 %v2491, %v2501
        %v2529 = vmul.f32 %v2492, %v2501
        %v2530 = vmul.f32 %v2493, %v2501
        %v2531 = vmul.f32 %v2494, %v2501
        %v2532 = vmul.f32 %v2495, %v2501
        %v2533 = vmul.f32 %v2496, %v2501
        %v2534 = vadd.f32 %v2433, %v2502
        %v2535 = vadd.f32 %v2434, %v2503
        %v2536 = vadd.f32 %v2435, %v2504
        %v2537 = vadd.f32 %v2436, %v2505
        %v2538 = vadd.f32 %v2437, %v2506
        %v2539 = vadd.f32 %v2438, %v2507
        %v2540 = vadd.f32 %v2439, %v2508
        %v2541 = vadd.f32 %v2440, %v2509
        %v2542 = vadd.f32 %v2441, %v2510
        %v2543 = vadd.f32 %v2442, %v2511
        %v2544 = vadd.f32 %v2443, %v2512
        %v2545 = vadd.f32 %v2444, %v2513
        %v2546 = vadd.f32 %v2445, %v2514
        %v2547 = vadd.f32 %v2446, %v2515
        %v2548 = vadd.f32 %v2447, %v2516
        %v2549 = vadd.f32 %v2448, %v2517
        %v2550 = vadd.f32 %v2449, %v2518
        %v2551 = vadd.f32 %v2450, %v2519
        %v2552 = vadd.f32 %v2451, %v2520
        %v2553 = vadd.f32 %v2452, %v2521
        %v2554 = vadd.f32 %v2453, %v2522
        %v2555 = vadd.f32 %v2454, %v2523
        %v2556 = vadd.f32 %v2455, %v2524
        %v2557 = vadd.f32 %v2456, %v2525
        %v2558 = vadd.f32 %v2457, %v2526
        %v2559 = vadd.f32 %v2458, %v2527
        %v2560 = vadd.f32 %v2459, %v2528
        %v2561 = vadd.f32 %v2460, %v2529
        %v2562 = vadd.f32 %v2461, %v2530
        %v2563 = vadd.f32 %v2462, %v2531
        %v2564 = vadd.f32 %v2463, %v2532
        %v2565 = vadd.f32 %v2464, %v2533
        %v2566 = vld [vmem:[%s2060 + $0x2] sm:$0xff]
        %v2567 = vld [vmem:[%s2060 + $0xa] sm:$0xff]
        %v2568 = vld [vmem:[%s2060 + $0x1a] sm:$0xff]
        %v2569 = vld [vmem:[%s2060 + $0x22] sm:$0xff]
        %v2570 = vld [vmem:[%s2060 + $0x32] sm:$0xff]
        %v2571 = vld [vmem:[%s2060 + $0x3a] sm:$0xff]
        %v2572 = vld [vmem:[%s2060 + $0x4a] sm:$0xff]
        %v2573 = vld [vmem:[%s2060 + $0x52] sm:$0xff]
        %v2574 = vld [vmem:[%s2060 + $0x62] sm:$0xff]
        %v2575 = vld [vmem:[%s2060 + $0x6a] sm:$0xff]
        %v2576 = vld [vmem:[%s2060 + $0x7a] sm:$0xff]
        %v2577 = vld [vmem:[%s2060 + $0x82] sm:$0xff]
        %v2578 = vld [vmem:[%s2060 + $0x92] sm:$0xff]
        %v2579 = vld [vmem:[%s2060 + $0x9a] sm:$0xff]
        %v2580 = vld [vmem:[%s2060 + $0xaa] sm:$0xff]
        %v2581 = vld [vmem:[%s2060 + $0xb2] sm:$0xff]
        %v2582 = vld [vmem:[%s2060 + $0xc2] sm:$0xff]
        %v2583 = vld [vmem:[%s2060 + $0xca] sm:$0xff]
        %v2584 = vld [vmem:[%s2060 + $0xda] sm:$0xff]
        %v2585 = vld [vmem:[%s2060 + $0xe2] sm:$0xff]
        %v2586 = vld [vmem:[%s2060 + $0xf2] sm:$0xff]
        %v2587 = vld [vmem:[%s2060 + $0xfa] sm:$0xff]
        %v2588 = vld [vmem:[%s2060 + $0x10a] sm:$0xff]
        %v2589 = vld [vmem:[%s2060 + $0x112] sm:$0xff]
        %v2590 = vld [vmem:[%s2060 + $0x122] sm:$0xff]
        %v2591 = vld [vmem:[%s2060 + $0x12a] sm:$0xff]
        %v2592 = vld [vmem:[%s2060 + $0x13a] sm:$0xff]
        %v2593 = vld [vmem:[%s2060 + $0x142] sm:$0xff]
        %v2594 = vld [vmem:[%s2060 + $0x152] sm:$0xff]
        %v2595 = vld [vmem:[%s2060 + $0x15a] sm:$0xff]
        %v2596 = vld [vmem:[%s2060 + $0x16a] sm:$0xff]
        %v2597 = vld [vmem:[%s2060 + $0x172] sm:$0xff]
        %v2598 = vld [vmem:[#allocation15 + $0x5] sm:$0x1]
        %v2599 = vlaneseq
        %v2600 = vshrl.u32 %v2599, 7
        %v2601 = vsub.s32 0, %v2600
        %v2602 = vrot.slane %v2598, %v2601
        %v2603 = vmul.f32 %v2566, %v2602
        %v2604 = vmul.f32 %v2567, %v2602
        %v2605 = vmul.f32 %v2568, %v2602
        %v2606 = vmul.f32 %v2569, %v2602
        %v2607 = vmul.f32 %v2570, %v2602
        %v2608 = vmul.f32 %v2571, %v2602
        %v2609 = vmul.f32 %v2572, %v2602
        %v2610 = vmul.f32 %v2573, %v2602
        %v2611 = vmul.f32 %v2574, %v2602
        %v2612 = vmul.f32 %v2575, %v2602
        %v2613 = vmul.f32 %v2576, %v2602
        %v2614 = vmul.f32 %v2577, %v2602
        %v2615 = vmul.f32 %v2578, %v2602
        %v2616 = vmul.f32 %v2579, %v2602
        %v2617 = vmul.f32 %v2580, %v2602
        %v2618 = vmul.f32 %v2581, %v2602
        %v2619 = vmul.f32 %v2582, %v2602
        %v2620 = vmul.f32 %v2583, %v2602
        %v2621 = vmul.f32 %v2584, %v2602
        %v2622 = vmul.f32 %v2585, %v2602
        %v2623 = vmul.f32 %v2586, %v2602
        %v2624 = vmul.f32 %v2587, %v2602
        %v2625 = vmul.f32 %v2588, %v2602
        %v2626 = vmul.f32 %v2589, %v2602
        %v2627 = vmul.f32 %v2590, %v2602
        %v2628 = vmul.f32 %v2591, %v2602
        %v2629 = vmul.f32 %v2592, %v2602
        %v2630 = vmul.f32 %v2593, %v2602
        %v2631 = vmul.f32 %v2594, %v2602
        %v2632 = vmul.f32 %v2595, %v2602
        %v2633 = vmul.f32 %v2596, %v2602
        %v2634 = vmul.f32 %v2597, %v2602
        %v2635 = vadd.f32 %v2534, %v2603
        %v2636 = vadd.f32 %v2535, %v2604
        %v2637 = vadd.f32 %v2536, %v2605
        %v2638 = vadd.f32 %v2537, %v2606
        %v2639 = vadd.f32 %v2538, %v2607
        %v2640 = vadd.f32 %v2539, %v2608
        %v2641 = vadd.f32 %v2540, %v2609
        %v2642 = vadd.f32 %v2541, %v2610
        %v2643 = vadd.f32 %v2542, %v2611
        %v2644 = vadd.f32 %v2543, %v2612
        %v2645 = vadd.f32 %v2544, %v2613
        %v2646 = vadd.f32 %v2545, %v2614
        %v2647 = vadd.f32 %v2546, %v2615
        %v2648 = vadd.f32 %v2547, %v2616
        %v2649 = vadd.f32 %v2548, %v2617
        %v2650 = vadd.f32 %v2549, %v2618
        %v2651 = vadd.f32 %v2550, %v2619
        %v2652 = vadd.f32 %v2551, %v2620
        %v2653 = vadd.f32 %v2552, %v2621
        %v2654 = vadd.f32 %v2553, %v2622
        %v2655 = vadd.f32 %v2554, %v2623
        %v2656 = vadd.f32 %v2555, %v2624
        %v2657 = vadd.f32 %v2556, %v2625
        %v2658 = vadd.f32 %v2557, %v2626
        %v2659 = vadd.f32 %v2558, %v2627
        %v2660 = vadd.f32 %v2559, %v2628
        %v2661 = vadd.f32 %v2560, %v2629
        %v2662 = vadd.f32 %v2561, %v2630
        %v2663 = vadd.f32 %v2562, %v2631
        %v2664 = vadd.f32 %v2563, %v2632
        %v2665 = vadd.f32 %v2564, %v2633
        %v2666 = vadd.f32 %v2565, %v2634
        %s2667 = scalar_lea.vmem [#allocation2], 48
        %v2668 = vld [vmem:[%s2667] sm:$0xff]
        %v2669 = vld [vmem:[%s2667 + $0x8] sm:$0xff]
        %v2670 = vld [vmem:[%s2667 + $0x18] sm:$0xff]
        %v2671 = vld [vmem:[%s2667 + $0x20] sm:$0xff]
        %v2672 = vld [vmem:[%s2667 + $0x30] sm:$0xff]
        %v2673 = vld [vmem:[%s2667 + $0x38] sm:$0xff]
        %v2674 = vld [vmem:[%s2667 + $0x48] sm:$0xff]
        %v2675 = vld [vmem:[%s2667 + $0x50] sm:$0xff]
        %v2676 = vld [vmem:[%s2667 + $0x60] sm:$0xff]
        %v2677 = vld [vmem:[%s2667 + $0x68] sm:$0xff]
        %v2678 = vld [vmem:[%s2667 + $0x78] sm:$0xff]
        %v2679 = vld [vmem:[%s2667 + $0x80] sm:$0xff]
        %v2680 = vld [vmem:[%s2667 + $0x90] sm:$0xff]
        %v2681 = vld [vmem:[%s2667 + $0x98] sm:$0xff]
        %v2682 = vld [vmem:[%s2667 + $0xa8] sm:$0xff]
        %v2683 = vld [vmem:[%s2667 + $0xb0] sm:$0xff]
        %v2684 = vld [vmem:[%s2667 + $0xc0] sm:$0xff]
        %v2685 = vld [vmem:[%s2667 + $0xc8] sm:$0xff]
        %v2686 = vld [vmem:[%s2667 + $0xd8] sm:$0xff]
        %v2687 = vld [vmem:[%s2667 + $0xe0] sm:$0xff]
        %v2688 = vld [vmem:[%s2667 + $0xf0] sm:$0xff]
        %v2689 = vld [vmem:[%s2667 + $0xf8] sm:$0xff]
        %v2690 = vld [vmem:[%s2667 + $0x108] sm:$0xff]
        %v2691 = vld [vmem:[%s2667 + $0x110] sm:$0xff]
        %v2692 = vld [vmem:[%s2667 + $0x120] sm:$0xff]
        %v2693 = vld [vmem:[%s2667 + $0x128] sm:$0xff]
        %v2694 = vld [vmem:[%s2667 + $0x138] sm:$0xff]
        %v2695 = vld [vmem:[%s2667 + $0x140] sm:$0xff]
        %v2696 = vld [vmem:[%s2667 + $0x150] sm:$0xff]
        %v2697 = vld [vmem:[%s2667 + $0x158] sm:$0xff]
        %v2698 = vld [vmem:[%s2667 + $0x168] sm:$0xff]
        %v2699 = vld [vmem:[%s2667 + $0x170] sm:$0xff]
        %v2700 = vld [vmem:[#allocation15 + $0x6] sm:$0x1]
        %v2701 = vlaneseq
        %v2702 = vshrl.u32 %v2701, 7
        %v2703 = vsub.s32 0, %v2702
        %v2704 = vrot.slane %v2700, %v2703
        %v2705 = vmul.f32 %v2668, %v2704
        %v2706 = vmul.f32 %v2669, %v2704
        %v2707 = vmul.f32 %v2670, %v2704
        %v2708 = vmul.f32 %v2671, %v2704
        %v2709 = vmul.f32 %v2672, %v2704
        %v2710 = vmul.f32 %v2673, %v2704
        %v2711 = vmul.f32 %v2674, %v2704
        %v2712 = vmul.f32 %v2675, %v2704
        %v2713 = vmul.f32 %v2676, %v2704
        %v2714 = vmul.f32 %v2677, %v2704
        %v2715 = vmul.f32 %v2678, %v2704
        %v2716 = vmul.f32 %v2679, %v2704
        %v2717 = vmul.f32 %v2680, %v2704
        %v2718 = vmul.f32 %v2681, %v2704
        %v2719 = vmul.f32 %v2682, %v2704
        %v2720 = vmul.f32 %v2683, %v2704
        %v2721 = vmul.f32 %v2684, %v2704
        %v2722 = vmul.f32 %v2685, %v2704
        %v2723 = vmul.f32 %v2686, %v2704
        %v2724 = vmul.f32 %v2687, %v2704
        %v2725 = vmul.f32 %v2688, %v2704
        %v2726 = vmul.f32 %v2689, %v2704
        %v2727 = vmul.f32 %v2690, %v2704
        %v2728 = vmul.f32 %v2691, %v2704
        %v2729 = vmul.f32 %v2692, %v2704
        %v2730 = vmul.f32 %v2693, %v2704
        %v2731 = vmul.f32 %v2694, %v2704
        %v2732 = vmul.f32 %v2695, %v2704
        %v2733 = vmul.f32 %v2696, %v2704
        %v2734 = vmul.f32 %v2697, %v2704
        %v2735 = vmul.f32 %v2698, %v2704
        %v2736 = vmul.f32 %v2699, %v2704
        %v2737 = vadd.f32 %v2635, %v2705
        %v2738 = vadd.f32 %v2636, %v2706
        %v2739 = vadd.f32 %v2637, %v2707
        %v2740 = vadd.f32 %v2638, %v2708
        %v2741 = vadd.f32 %v2639, %v2709
        %v2742 = vadd.f32 %v2640, %v2710
        %v2743 = vadd.f32 %v2641, %v2711
        %v2744 = vadd.f32 %v2642, %v2712
        %v2745 = vadd.f32 %v2643, %v2713
        %v2746 = vadd.f32 %v2644, %v2714
        %v2747 = vadd.f32 %v2645, %v2715
        %v2748 = vadd.f32 %v2646, %v2716
        %v2749 = vadd.f32 %v2647, %v2717
        %v2750 = vadd.f32 %v2648, %v2718
        %v2751 = vadd.f32 %v2649, %v2719
        %v2752 = vadd.f32 %v2650, %v2720
        %v2753 = vadd.f32 %v2651, %v2721
        %v2754 = vadd.f32 %v2652, %v2722
        %v2755 = vadd.f32 %v2653, %v2723
        %v2756 = vadd.f32 %v2654, %v2724
        %v2757 = vadd.f32 %v2655, %v2725
        %v2758 = vadd.f32 %v2656, %v2726
        %v2759 = vadd.f32 %v2657, %v2727
        %v2760 = vadd.f32 %v2658, %v2728
        %v2761 = vadd.f32 %v2659, %v2729
        %v2762 = vadd.f32 %v2660, %v2730
        %v2763 = vadd.f32 %v2661, %v2731
        %v2764 = vadd.f32 %v2662, %v2732
        %v2765 = vadd.f32 %v2663, %v2733
        %v2766 = vadd.f32 %v2664, %v2734
        %v2767 = vadd.f32 %v2665, %v2735
        %v2768 = vadd.f32 %v2666, %v2736
        %v2769 = vld [vmem:[%s2667 + $0x1] sm:$0xff]
        %v2770 = vld [vmem:[%s2667 + $0x9] sm:$0xff]
        %v2771 = vld [vmem:[%s2667 + $0x19] sm:$0xff]
        %v2772 = vld [vmem:[%s2667 + $0x21] sm:$0xff]
        %v2773 = vld [vmem:[%s2667 + $0x31] sm:$0xff]
        %v2774 = vld [vmem:[%s2667 + $0x39] sm:$0xff]
        %v2775 = vld [vmem:[%s2667 + $0x49] sm:$0xff]
        %v2776 = vld [vmem:[%s2667 + $0x51] sm:$0xff]
        %v2777 = vld [vmem:[%s2667 + $0x61] sm:$0xff]
        %v2778 = vld [vmem:[%s2667 + $0x69] sm:$0xff]
        %v2779 = vld [vmem:[%s2667 + $0x79] sm:$0xff]
        %v2780 = vld [vmem:[%s2667 + $0x81] sm:$0xff]
        %v2781 = vld [vmem:[%s2667 + $0x91] sm:$0xff]
        %v2782 = vld [vmem:[%s2667 + $0x99] sm:$0xff]
        %v2783 = vld [vmem:[%s2667 + $0xa9] sm:$0xff]
        %v2784 = vld [vmem:[%s2667 + $0xb1] sm:$0xff]
        %v2785 = vld [vmem:[%s2667 + $0xc1] sm:$0xff]
        %v2786 = vld [vmem:[%s2667 + $0xc9] sm:$0xff]
        %v2787 = vld [vmem:[%s2667 + $0xd9] sm:$0xff]
        %v2788 = vld [vmem:[%s2667 + $0xe1] sm:$0xff]
        %v2789 = vld [vmem:[%s2667 + $0xf1] sm:$0xff]
        %v2790 = vld [vmem:[%s2667 + $0xf9] sm:$0xff]
        %v2791 = vld [vmem:[%s2667 + $0x109] sm:$0xff]
        %v2792 = vld [vmem:[%s2667 + $0x111] sm:$0xff]
        %v2793 = vld [vmem:[%s2667 + $0x121] sm:$0xff]
        %v2794 = vld [vmem:[%s2667 + $0x129] sm:$0xff]
        %v2795 = vld [vmem:[%s2667 + $0x139] sm:$0xff]
        %v2796 = vld [vmem:[%s2667 + $0x141] sm:$0xff]
        %v2797 = vld [vmem:[%s2667 + $0x151] sm:$0xff]
        %v2798 = vld [vmem:[%s2667 + $0x159] sm:$0xff]
        %v2799 = vld [vmem:[%s2667 + $0x169] sm:$0xff]
        %v2800 = vld [vmem:[%s2667 + $0x171] sm:$0xff]
        %v2801 = vld [vmem:[#allocation15 + $0x7] sm:$0x1]
        %v2802 = vlaneseq
        %v2803 = vshrl.u32 %v2802, 7
        %v2804 = vsub.s32 0, %v2803
        %v2805 = vrot.slane %v2801, %v2804
        %v2806 = vmul.f32 %v2769, %v2805
        %v2807 = vmul.f32 %v2770, %v2805
        %v2808 = vmul.f32 %v2771, %v2805
        %v2809 = vmul.f32 %v2772, %v2805
        %v2810 = vmul.f32 %v2773, %v2805
        %v2811 = vmul.f32 %v2774, %v2805
        %v2812 = vmul.f32 %v2775, %v2805
        %v2813 = vmul.f32 %v2776, %v2805
        %v2814 = vmul.f32 %v2777, %v2805
        %v2815 = vmul.f32 %v2778, %v2805
        %v2816 = vmul.f32 %v2779, %v2805
        %v2817 = vmul.f32 %v2780, %v2805
        %v2818 = vmul.f32 %v2781, %v2805
        %v2819 = vmul.f32 %v2782, %v2805
        %v2820 = vmul.f32 %v2783, %v2805
        %v2821 = vmul.f32 %v2784, %v2805
        %v2822 = vmul.f32 %v2785, %v2805
        %v2823 = vmul.f32 %v2786, %v2805
        %v2824 = vmul.f32 %v2787, %v2805
        %v2825 = vmul.f32 %v2788, %v2805
        %v2826 = vmul.f32 %v2789, %v2805
        %v2827 = vmul.f32 %v2790, %v2805
        %v2828 = vmul.f32 %v2791, %v2805
        %v2829 = vmul.f32 %v2792, %v2805
        %v2830 = vmul.f32 %v2793, %v2805
        %v2831 = vmul.f32 %v2794, %v2805
        %v2832 = vmul.f32 %v2795, %v2805
        %v2833 = vmul.f32 %v2796, %v2805
        %v2834 = vmul.f32 %v2797, %v2805
        %v2835 = vmul.f32 %v2798, %v2805
        %v2836 = vmul.f32 %v2799, %v2805
        %v2837 = vmul.f32 %v2800, %v2805
        %v2838 = vadd.f32 %v2737, %v2806
        %v2839 = vadd.f32 %v2738, %v2807
        %v2840 = vadd.f32 %v2739, %v2808
        %v2841 = vadd.f32 %v2740, %v2809
        %v2842 = vadd.f32 %v2741, %v2810
        %v2843 = vadd.f32 %v2742, %v2811
        %v2844 = vadd.f32 %v2743, %v2812
        %v2845 = vadd.f32 %v2744, %v2813
        %v2846 = vadd.f32 %v2745, %v2814
        %v2847 = vadd.f32 %v2746, %v2815
        %v2848 = vadd.f32 %v2747, %v2816
        %v2849 = vadd.f32 %v2748, %v2817
        %v2850 = vadd.f32 %v2749, %v2818
        %v2851 = vadd.f32 %v2750, %v2819
        %v2852 = vadd.f32 %v2751, %v2820
        %v2853 = vadd.f32 %v2752, %v2821
        %v2854 = vadd.f32 %v2753, %v2822
        %v2855 = vadd.f32 %v2754, %v2823
        %v2856 = vadd.f32 %v2755, %v2824
        %v2857 = vadd.f32 %v2756, %v2825
        %v2858 = vadd.f32 %v2757, %v2826
        %v2859 = vadd.f32 %v2758, %v2827
        %v2860 = vadd.f32 %v2759, %v2828
        %v2861 = vadd.f32 %v2760, %v2829
        %v2862 = vadd.f32 %v2761, %v2830
        %v2863 = vadd.f32 %v2762, %v2831
        %v2864 = vadd.f32 %v2763, %v2832
        %v2865 = vadd.f32 %v2764, %v2833
        %v2866 = vadd.f32 %v2765, %v2834
        %v2867 = vadd.f32 %v2766, %v2835
        %v2868 = vadd.f32 %v2767, %v2836
        %v2869 = vadd.f32 %v2768, %v2837
        %v2870 = vld [vmem:[%s2667 + $0x2] sm:$0xff]
        %v2871 = vld [vmem:[%s2667 + $0xa] sm:$0xff]
        %v2872 = vld [vmem:[%s2667 + $0x1a] sm:$0xff]
        %v2873 = vld [vmem:[%s2667 + $0x22] sm:$0xff]
        %v2874 = vld [vmem:[%s2667 + $0x32] sm:$0xff]
        %v2875 = vld [vmem:[%s2667 + $0x3a] sm:$0xff]
        %v2876 = vld [vmem:[%s2667 + $0x4a] sm:$0xff]
        %v2877 = vld [vmem:[%s2667 + $0x52] sm:$0xff]
        %v2878 = vld [vmem:[%s2667 + $0x62] sm:$0xff]
        %v2879 = vld [vmem:[%s2667 + $0x6a] sm:$0xff]
        %v2880 = vld [vmem:[%s2667 + $0x7a] sm:$0xff]
        %v2881 = vld [vmem:[%s2667 + $0x82] sm:$0xff]
        %v2882 = vld [vmem:[%s2667 + $0x92] sm:$0xff]
        %v2883 = vld [vmem:[%s2667 + $0x9a] sm:$0xff]
        %v2884 = vld [vmem:[%s2667 + $0xaa] sm:$0xff]
        %v2885 = vld [vmem:[%s2667 + $0xb2] sm:$0xff]
        %v2886 = vld [vmem:[%s2667 + $0xc2] sm:$0xff]
        %v2887 = vld [vmem:[%s2667 + $0xca] sm:$0xff]
        %v2888 = vld [vmem:[%s2667 + $0xda] sm:$0xff]
        %v2889 = vld [vmem:[%s2667 + $0xe2] sm:$0xff]
        %v2890 = vld [vmem:[%s2667 + $0xf2] sm:$0xff]
        %v2891 = vld [vmem:[%s2667 + $0xfa] sm:$0xff]
        %v2892 = vld [vmem:[%s2667 + $0x10a] sm:$0xff]
        %v2893 = vld [vmem:[%s2667 + $0x112] sm:$0xff]
        %v2894 = vld [vmem:[%s2667 + $0x122] sm:$0xff]
        %v2895 = vld [vmem:[%s2667 + $0x12a] sm:$0xff]
        %v2896 = vld [vmem:[%s2667 + $0x13a] sm:$0xff]
        %v2897 = vld [vmem:[%s2667 + $0x142] sm:$0xff]
        %v2898 = vld [vmem:[%s2667 + $0x152] sm:$0xff]
        %v2899 = vld [vmem:[%s2667 + $0x15a] sm:$0xff]
        %v2900 = vld [vmem:[%s2667 + $0x16a] sm:$0xff]
        %v2901 = vld [vmem:[%s2667 + $0x172] sm:$0xff]
        %v2902 = vld [vmem:[#allocation15 + $0x8] sm:$0x1]
        %v2903 = vlaneseq
        %v2904 = vshrl.u32 %v2903, 7
        %v2905 = vsub.s32 0, %v2904
        %v2906 = vrot.slane %v2902, %v2905
        %v2907 = vmul.f32 %v2870, %v2906
        %v2908 = vmul.f32 %v2871, %v2906
        %v2909 = vmul.f32 %v2872, %v2906
        %v2910 = vmul.f32 %v2873, %v2906
        %v2911 = vmul.f32 %v2874, %v2906
        %v2912 = vmul.f32 %v2875, %v2906
        %v2913 = vmul.f32 %v2876, %v2906
        %v2914 = vmul.f32 %v2877, %v2906
        %v2915 = vmul.f32 %v2878, %v2906
        %v2916 = vmul.f32 %v2879, %v2906
        %v2917 = vmul.f32 %v2880, %v2906
        %v2918 = vmul.f32 %v2881, %v2906
        %v2919 = vmul.f32 %v2882, %v2906
        %v2920 = vmul.f32 %v2883, %v2906
        %v2921 = vmul.f32 %v2884, %v2906
        %v2922 = vmul.f32 %v2885, %v2906
        %v2923 = vmul.f32 %v2886, %v2906
        %v2924 = vmul.f32 %v2887, %v2906
        %v2925 = vmul.f32 %v2888, %v2906
        %v2926 = vmul.f32 %v2889, %v2906
        %v2927 = vmul.f32 %v2890, %v2906
        %v2928 = vmul.f32 %v2891, %v2906
        %v2929 = vmul.f32 %v2892, %v2906
        %v2930 = vmul.f32 %v2893, %v2906
        %v2931 = vmul.f32 %v2894, %v2906
        %v2932 = vmul.f32 %v2895, %v2906
        %v2933 = vmul.f32 %v2896, %v2906
        %v2934 = vmul.f32 %v2897, %v2906
        %v2935 = vmul.f32 %v2898, %v2906
        %v2936 = vmul.f32 %v2899, %v2906
        %v2937 = vmul.f32 %v2900, %v2906
        %v2938 = vmul.f32 %v2901, %v2906
        %v2939 = vadd.f32 %v2838, %v2907
        %v2940 = vadd.f32 %v2839, %v2908
        %v2941 = vadd.f32 %v2840, %v2909
        %v2942 = vadd.f32 %v2841, %v2910
        %v2943 = vadd.f32 %v2842, %v2911
        %v2944 = vadd.f32 %v2843, %v2912
        %v2945 = vadd.f32 %v2844, %v2913
        %v2946 = vadd.f32 %v2845, %v2914
        %v2947 = vadd.f32 %v2846, %v2915
        %v2948 = vadd.f32 %v2847, %v2916
        %v2949 = vadd.f32 %v2848, %v2917
        %v2950 = vadd.f32 %v2849, %v2918
        %v2951 = vadd.f32 %v2850, %v2919
        %v2952 = vadd.f32 %v2851, %v2920
        %v2953 = vadd.f32 %v2852, %v2921
        %v2954 = vadd.f32 %v2853, %v2922
        %v2955 = vadd.f32 %v2854, %v2923
        %v2956 = vadd.f32 %v2855, %v2924
        %v2957 = vadd.f32 %v2856, %v2925
        %v2958 = vadd.f32 %v2857, %v2926
        %v2959 = vadd.f32 %v2858, %v2927
        %v2960 = vadd.f32 %v2859, %v2928
        %v2961 = vadd.f32 %v2860, %v2929
        %v2962 = vadd.f32 %v2861, %v2930
        %v2963 = vadd.f32 %v2862, %v2931
        %v2964 = vadd.f32 %v2863, %v2932
        %v2965 = vadd.f32 %v2864, %v2933
        %v2966 = vadd.f32 %v2865, %v2934
        %v2967 = vadd.f32 %v2866, %v2935
        %v2968 = vadd.f32 %v2867, %v2936
        %v2969 = vadd.f32 %v2868, %v2937
        %v2970 = vadd.f32 %v2869, %v2938
        %v2971 = vld [vmem:[#allocation17] sm:$0x1]
        %v2973 = vlaneseq
        %v2974 = vshrl.u32 %v2973, 7
        %v2975 = vsub.s32 0, %v2974
        %v2976 = vrot.slane %v2971, %v2975
        %v2978 = vadd.f32 %v2939, %v2976
        %v2979 = vadd.f32 %v2940, %v2976
        %v2980 = vadd.f32 %v2941, %v2976
        %v2981 = vadd.f32 %v2942, %v2976
        %v2982 = vadd.f32 %v2943, %v2976
        %v2983 = vadd.f32 %v2944, %v2976
        %v2984 = vadd.f32 %v2945, %v2976
        %v2985 = vadd.f32 %v2946, %v2976
        %v2986 = vadd.f32 %v2947, %v2976
        %v2987 = vadd.f32 %v2948, %v2976
        %v2988 = vadd.f32 %v2949, %v2976
        %v2989 = vadd.f32 %v2950, %v2976
        %v2990 = vadd.f32 %v2951, %v2976
        %v2991 = vadd.f32 %v2952, %v2976
        %v2992 = vadd.f32 %v2953, %v2976
        %v2993 = vadd.f32 %v2954, %v2976
        %v2994 = vadd.f32 %v2955, %v2976
        %v2995 = vadd.f32 %v2956, %v2976
        %v2996 = vadd.f32 %v2957, %v2976
        %v2997 = vadd.f32 %v2958, %v2976
        %v2998 = vadd.f32 %v2959, %v2976
        %v2999 = vadd.f32 %v2960, %v2976
        %v3000 = vadd.f32 %v2961, %v2976
        %v3001 = vadd.f32 %v2962, %v2976
        %v3002 = vadd.f32 %v2963, %v2976
        %v3003 = vadd.f32 %v2964, %v2976
        %v3004 = vadd.f32 %v2965, %v2976
        %v3005 = vadd.f32 %v2966, %v2976
        %v3006 = vadd.f32 %v2967, %v2976
        %v3007 = vadd.f32 %v2968, %v2976
        %v3008 = vadd.f32 %v2969, %v2976
        %v3009 = vadd.f32 %v2970, %v2976
        %v3010 = vld [vmem:[%s789 + $0x1] sm:$0xff]
        %v3011 = vld [vmem:[%s789 + $0x9] sm:$0xff]
        %v3012 = vld [vmem:[%s789 + $0x19] sm:$0xff]
        %v3013 = vld [vmem:[%s789 + $0x21] sm:$0xff]
        %v3014 = vld [vmem:[%s789 + $0x31] sm:$0xff]
        %v3015 = vld [vmem:[%s789 + $0x39] sm:$0xff]
        %v3016 = vld [vmem:[%s789 + $0x49] sm:$0xff]
        %v3017 = vld [vmem:[%s789 + $0x51] sm:$0xff]
        %v3018 = vld [vmem:[%s789 + $0x61] sm:$0xff]
        %v3019 = vld [vmem:[%s789 + $0x69] sm:$0xff]
        %v3020 = vld [vmem:[%s789 + $0x79] sm:$0xff]
        %v3021 = vld [vmem:[%s789 + $0x81] sm:$0xff]
        %v3022 = vld [vmem:[%s789 + $0x91] sm:$0xff]
        %v3023 = vld [vmem:[%s789 + $0x99] sm:$0xff]
        %v3024 = vld [vmem:[%s789 + $0xa9] sm:$0xff]
        %v3025 = vld [vmem:[%s789 + $0xb1] sm:$0xff]
        %v3026 = vld [vmem:[%s789 + $0xc1] sm:$0xff]
        %v3027 = vld [vmem:[%s789 + $0xc9] sm:$0xff]
        %v3028 = vld [vmem:[%s789 + $0xd9] sm:$0xff]
        %v3029 = vld [vmem:[%s789 + $0xe1] sm:$0xff]
        %v3030 = vld [vmem:[%s789 + $0xf1] sm:$0xff]
        %v3031 = vld [vmem:[%s789 + $0xf9] sm:$0xff]
        %v3032 = vld [vmem:[%s789 + $0x109] sm:$0xff]
        %v3033 = vld [vmem:[%s789 + $0x111] sm:$0xff]
        %v3034 = vld [vmem:[%s789 + $0x121] sm:$0xff]
        %v3035 = vld [vmem:[%s789 + $0x129] sm:$0xff]
        %v3036 = vld [vmem:[%s789 + $0x139] sm:$0xff]
        %v3037 = vld [vmem:[%s789 + $0x141] sm:$0xff]
        %v3038 = vld [vmem:[%s789 + $0x151] sm:$0xff]
        %v3039 = vld [vmem:[%s789 + $0x159] sm:$0xff]
        %v3040 = vld [vmem:[%s789 + $0x169] sm:$0xff]
        %v3041 = vld [vmem:[%s789 + $0x171] sm:$0xff]
        %v3042 = vadd.f32 %v2978, %v3010
        %v3043 = vadd.f32 %v2979, %v3011
        %v3044 = vadd.f32 %v2980, %v3012
        %v3045 = vadd.f32 %v2981, %v3013
        %v3046 = vadd.f32 %v2982, %v3014
        %v3047 = vadd.f32 %v2983, %v3015
        %v3048 = vadd.f32 %v2984, %v3016
        %v3049 = vadd.f32 %v2985, %v3017
        %v3050 = vadd.f32 %v2986, %v3018
        %v3051 = vadd.f32 %v2987, %v3019
        %v3052 = vadd.f32 %v2988, %v3020
        %v3053 = vadd.f32 %v2989, %v3021
        %v3054 = vadd.f32 %v2990, %v3022
        %v3055 = vadd.f32 %v2991, %v3023
        %v3056 = vadd.f32 %v2992, %v3024
        %v3057 = vadd.f32 %v2993, %v3025
        %v3058 = vadd.f32 %v2994, %v3026
        %v3059 = vadd.f32 %v2995, %v3027
        %v3060 = vadd.f32 %v2996, %v3028
        %v3061 = vadd.f32 %v2997, %v3029
        %v3062 = vadd.f32 %v2998, %v3030
        %v3063 = vadd.f32 %v2999, %v3031
        %v3064 = vadd.f32 %v3000, %v3032
        %v3065 = vadd.f32 %v3001, %v3033
        %v3066 = vadd.f32 %v3002, %v3034
        %v3067 = vadd.f32 %v3003, %v3035
        %v3068 = vadd.f32 %v3004, %v3036
        %v3069 = vadd.f32 %v3005, %v3037
        %v3070 = vadd.f32 %v3006, %v3038
        %v3071 = vadd.f32 %v3007, %v3039
        %v3072 = vadd.f32 %v3008, %v3040
        %v3073 = vadd.f32 %v3009, %v3041
        %3074 = vst [vmem:[%s458] sm:$0xff] %v3042
        %3075 = vst [vmem:[%s458 + $0x8] sm:$0xff] %v3043
        %3076 = vst [vmem:[%s458 + $0x10] sm:$0xff] %v3044
        %3077 = vst [vmem:[%s458 + $0x18] sm:$0xff] %v3045
        %3078 = vst [vmem:[%s458 + $0x20] sm:$0xff] %v3046
        %3079 = vst [vmem:[%s458 + $0x28] sm:$0xff] %v3047
        %3080 = vst [vmem:[%s458 + $0x30] sm:$0xff] %v3048
        %3081 = vst [vmem:[%s458 + $0x38] sm:$0xff] %v3049
        %3082 = vst [vmem:[%s458 + $0x40] sm:$0xff] %v3050
        %3083 = vst [vmem:[%s458 + $0x48] sm:$0xff] %v3051
        %3084 = vst [vmem:[%s458 + $0x50] sm:$0xff] %v3052
        %3085 = vst [vmem:[%s458 + $0x58] sm:$0xff] %v3053
        %3086 = vst [vmem:[%s458 + $0x60] sm:$0xff] %v3054
        %3087 = vst [vmem:[%s458 + $0x68] sm:$0xff] %v3055
        %3088 = vst [vmem:[%s458 + $0x70] sm:$0xff] %v3056
        %3089 = vst [vmem:[%s458 + $0x78] sm:$0xff] %v3057
        %3090 = vst [vmem:[%s458 + $0x80] sm:$0xff] %v3058
        %3091 = vst [vmem:[%s458 + $0x88] sm:$0xff] %v3059
        %3092 = vst [vmem:[%s458 + $0x90] sm:$0xff] %v3060
        %3093 = vst [vmem:[%s458 + $0x98] sm:$0xff] %v3061
        %3094 = vst [vmem:[%s458 + $0xa0] sm:$0xff] %v3062
        %3095 = vst [vmem:[%s458 + $0xa8] sm:$0xff] %v3063
        %3096 = vst [vmem:[%s458 + $0xb0] sm:$0xff] %v3064
        %3097 = vst [vmem:[%s458 + $0xb8] sm:$0xff] %v3065
        %3098 = vst [vmem:[%s458 + $0xc0] sm:$0xff] %v3066
        %3099 = vst [vmem:[%s458 + $0xc8] sm:$0xff] %v3067
        %3100 = vst [vmem:[%s458 + $0xd0] sm:$0xff] %v3068
        %3101 = vst [vmem:[%s458 + $0xd8] sm:$0xff] %v3069
        %3102 = vst [vmem:[%s458 + $0xe0] sm:$0xff] %v3070
        %3103 = vst [vmem:[%s458 + $0xe8] sm:$0xff] %v3071
        %3104 = vst [vmem:[%s458 + $0xf0] sm:$0xff] %v3072
        %3105 = vst [vmem:[%s458 + $0xf8] sm:$0xff] %v3073
        %s3106 = sand.u32 %s232, 1
        %s3107 = scalar_lea.sflag [#allocation5], %s3106
        %s3108 = sand.u32 %s232, 1
        %s3109 = smul.addr %s3108, 256
        %s3110 = scalar_lea.vmem [#allocation18], %s3109
        // Predicated region
        $region97: #{tpu_custom_call.1} parent=55 // pred_check
          %p3111 = pneg %p242
        $region98: #{tpu_custom_call.1} parent=55 // pred_check_branch
          %3113 = sbr.rel (%p3111) target = $region100
        $region99: #{tpu_custom_call.1} parent=55 // pred_region
          %s3115 = ssub.s32 4096, 4096
          %3116 = vsyncadd %s3107, %s3115
          %s3117 = smul.addr %s30, 32
          %s3118 = smul.addr %s3117, 128
          %s3119 = scalar_lea.hbm %s9, %s3118
          %s3120 = sshll.u32 %s3110, 4
          %s3121 = int_to_ptr.vmem [resolvable:$true] %s3120
          %3126 = dma.vmem_to_hbm [thread:$0]  %s3121, 4096, %s3119, %s3107, 128, 128, 8
        $region100: #{tpu_custom_call.1} parent=55 // pred_fallthru
          _
      $region56: #{tpu_custom_call.1} parent=5 // pred_fallthru
        _
      %p3127 = scmp.le.s32.totalorder 2, %s25
      // Predicated region
      $region101: #{tpu_custom_call.1} parent=5 // pred_check
        %p3128 = pneg %p3127
      $region102: #{tpu_custom_call.1} parent=5 // pred_check_branch
        %3130 = sbr.rel (%p3128) target = $region104
      $region103: #{tpu_custom_call.1} parent=5 // pred_region
        %s3131 = ssub.s32 %s25, 2
        // Predicated region
        $region105: #{tpu_custom_call.1} parent=103 // pred_check
          %p3132 = pneg %p248
        $region106: #{tpu_custom_call.1} parent=103 // pred_check_branch
          %3134 = sbr.rel (%p3132) target = $region108
        $region107: #{tpu_custom_call.1} parent=103 // pred_region
          %s3135 = sand.u32 %s233, 1
          %s3136 = scalar_lea.sflag [#allocation5], %s3135
          %s3137 = sand.u32 %s233, 1
          %s3138 = smul.addr %s3137, 256
          %s3139 = scalar_lea.vmem [#allocation18], %s3138
          %3140 = dma.done %s3136, 4096
        $region108: #{tpu_custom_call.1} parent=103 // pred_fallthru
          _
      $region104: #{tpu_custom_call.1} parent=5 // pred_fallthru
        _
    $region6: #{tpu_custom_call.1} parent=1 // loop_footer
      %s29 = sadd.s32 1, %s25
    $region7: #{tpu_custom_call.1} parent=1 // loop_footer_branch
      %24 = sbr.rel target = $region3
    $region8: #{tpu_custom_call.1} parent=1 // loop_exit
      _
    %3141 = vsyncpa [#allocation4], 1
    %s3142 = scalar_lea.sflag [#allocation4], 1
    %3143 = vsyncpa %s3142, 1
    %3144 = vsyncpa [#allocation7], 1
    %3145 = vsyncpa [#allocation10], 1
    %3146 = vsyncpa [#allocation13], 1
    %3147 = vsyncpa [#allocation16], 1
    %3148 = vsyncpa [#allocation5], 1
    %s3149 = scalar_lea.sflag [#allocation5], 1
    %3150 = vsyncpa %s3149, 1

</llo_original>
